<compile_context>
chip_gen: v6e
topology: v6e:2x2x1
jax: 0.10.0
libtpu: 0.0.40
codegen_flags: <defaults>
</compile_context>

<pallas_src>
import functools
import random

import numpy as np

import jax
import jax.numpy as jnp
from jax import lax
from jax.experimental import pallas as pl
from jax.experimental.pallas import tpu as pltpu


# contraction on the last dim of both operands (A @ B^T) — natural MXU form
_NT = (((1,), (1,)), ((), ()))


def _rup(x, m):
    return ((x + m - 1) // m) * m


# ----------------------------------------------------------------------------
# Kernel 1: per-segment attention, tiled over the segment axis S.
#   KV = X @ Wkv                      (L, 2F)   (one fused matmul)
#   S  = Q_tile @ K^T * scale         (ts, L)
#   mask built in-kernel from seg_id row (no dense mask shipped from HBM)
#   out_tile = softmax(S) @ V         (ts, F)
# ----------------------------------------------------------------------------
def seg_attn_kernel(seg_ref, x_ref, wkv_ref, q_ref, o_ref, *, scale, fp, ts):
    lp = x_ref.shape[0]
    kv = jnp.dot(x_ref[...], wkv_ref[...],
                 preferred_element_type=jnp.float32)                 # (L, 2F) f32
    k = kv[:, :fp].astype(jnp.bfloat16)
    v = kv[:, fp:].astype(jnp.bfloat16)

    s = lax.dot_general(q_ref[...], k, _NT,
                        preferred_element_type=jnp.float32) * scale  # (ts, L) f32
    row = pl.program_id(0) * ts + lax.broadcasted_iota(jnp.int32, (ts, lp), 0)
    mask = seg_ref[...] == row                                       # (1,L) vs (ts,L)
    s = jnp.where(mask, s, -1e30)
    s = s - jnp.max(s, axis=1, keepdims=True)
    e = jnp.exp(s)                                                   # masked -> exp(-1e30-max) == 0
    p = e * pl.reciprocal(jnp.sum(e, axis=1, keepdims=True), approx=True)
    o_ref[...] = jnp.dot(p.astype(jnp.bfloat16), v,
                         preferred_element_type=jnp.float32)         # (ts, F) f32


def segment_attention_pallas(seg_row, x_t, wkv, q, *, scale, ts):
    Sp, Fp = q.shape
    Lp, Dp = x_t.shape
    kern = functools.partial(seg_attn_kernel, scale=scale, fp=Fp, ts=ts)
    return pl.pallas_call(
        kern,
        out_shape=jax.ShapeDtypeStruct((Sp, Fp), jnp.float32),
        grid_spec=pltpu.PrefetchScalarGridSpec(
            num_scalar_prefetch=0,
            grid=(Sp // ts,),
            in_specs=[pl.BlockSpec((1, Lp), lambda i: (0, 0)),
                      pl.BlockSpec((Lp, Dp), lambda i: (0, 0)),
                      pl.BlockSpec((Dp, 2 * Fp), lambda i: (0, 0)),
                      pl.BlockSpec((ts, Fp), lambda i: (i, 0))],
            out_specs=pl.BlockSpec((ts, Fp), lambda i: (i, 0))),
        compiler_params=pltpu.CompilerParams(
            dimension_semantics=("parallel",),
            vmem_limit_bytes=64 * 1024 * 1024),
    )(seg_row, x_t, wkv, q)


# ----------------------------------------------------------------------------
# Kernel 2: fused SparseSampleEmbedder conv stack.
#   Layout (T, C): time on sublanes, channels (padded to 128) on lanes.
#   Conv1d(k=3, pad=1) == [x_{t-1}|x_t|x_{t+1}] @ W_stacked   (single matmul)
# ----------------------------------------------------------------------------
def embedder_kernel(x_ref, wi_ref, bi_ref, bw_ref, bb_ref, o_ref, *, N, nb):
    def leaky(v):
        return jnp.where(v >= 0, v, 0.1 * v)

    def conv(x, w, b):
        # x: (Tc, Cin); w: (3*Cin, Cout) bf16; b: (1, Cout) f32
        tc, cin = x.shape
        z = jnp.zeros((1, cin), x.dtype)
        xp = jnp.concatenate([z, x, z], axis=0)                       # (Tc+2, Cin)
        xs = jnp.concatenate([xp[0:tc], xp[1:tc + 1], xp[2:tc + 2]], axis=1)  # (Tc, 3Cin)
        return jnp.dot(xs.astype(jnp.bfloat16), w,
                       preferred_element_type=jnp.float32) + b

    def one_sample(x):
        out = conv(x, wi_ref[...], bi_ref[...])                       # (nf, Fp) f32
        for b in range(nb):
            h = leaky(conv(out, bw_ref[2 * b], bb_ref[2 * b]))
            h = conv(h, bw_ref[2 * b + 1], bb_ref[2 * b + 1])
            out = leaky(out + h)
            tc = out.shape[0]
            if tc >= 2:                                               # PyTorch floor-pool
                out = jnp.max(out[:2 * (tc // 2)].reshape(tc // 2, 2, out.shape[1]),
                              axis=1)
            # TODO(synk): tc == 1 would need a length-0 output to match MaxPool1d(2,2);
            # unreachable while nb == log2(num_frames).
        return out                                                    # (Tf, Fp) f32

    def body(n, acc):
        return acc + one_sample(x_ref[n])

    acc = lax.fori_loop(0, N, body, jnp.zeros(o_ref.shape, jnp.float32))
    o_ref[...] = acc * (1.0 / N)                                      # mean over samples


def embedder_pallas(sampled, params):
    N, nf, _ = sampled.shape
    Fp = params['bi'].shape[1]
    nb = params['bw'].shape[0] // 2
    Tf = nf
    for _ in range(nb):
        if Tf >= 2:
            Tf = Tf // 2
    kern = functools.partial(embedder_kernel, N=N, nb=nb)
    return pl.pallas_call(
        kern,
        out_shape=jax.ShapeDtypeStruct((Tf, Fp), jnp.float32),
        compiler_params=pltpu.CompilerParams(vmem_limit_bytes=64 * 1024 * 1024),
    )(sampled, params['wi'], params['bi'], params['bw'], params['bb'])


# ----------------------------------------------------------------------------
# Kernel 3: bidirectional GRU (1 layer, batch=1) + fused output Linear.
#   * ONE input-projection matmul for both directions / all timesteps
#   * ONE recurrent matmul per step (block-diagonal hidden weight, h=[h_f|h_b])
#   * ONE output matmul on the concatenated direction scratches
#   PyTorch gate order [r, z, n]; gate layout here [r_f,z_f,n_f | r_b,z_b,n_b].
# ----------------------------------------------------------------------------
def bigru_kernel(x_ref, wih_ref, bih_ref, whh_ref, bhh_ref, wo_ref, bo_ref,
                 o_ref, gif_sc, gib_sc, of_sc, ob_sc, *, T, H):
    gi_all = lax.dot_general(x_ref[...], wih_ref[...], _NT,
                             preferred_element_type=jnp.float32) + bih_ref[...]  # (Tp, 6H)
    gif_sc[...] = gi_all[:, 0:3 * H]
    gib_sc[...] = gi_all[:, 3 * H:6 * H]
    of_sc[...] = jnp.zeros_like(of_sc)
    ob_sc[...] = jnp.zeros_like(ob_sc)

    whh = whh_ref[...]
    bhh = bhh_ref[...]

    def step(t, h):
        tb = T - 1 - t
        gi = jnp.concatenate([gif_sc[pl.ds(t, 1), :],
                              gib_sc[pl.ds(tb, 1), :]], axis=1)        # (1, 6H)
        gh = lax.dot_general(h.astype(jnp.bfloat16), whh, _NT,
                             preferred_element_type=jnp.float32) + bhh  # (1, 6H)
        r_f = jax.nn.sigmoid(gi[:, 0:H] + gh[:, 0:H])
        z_f = jax.nn.sigmoid(gi[:, H:2 * H] + gh[:, H:2 * H])
        n_f = jnp.tanh(gi[:, 2 * H:3 * H] + r_f * gh[:, 2 * H:3 * H])
        r_b = jax.nn.sigmoid(gi[:, 3 * H:4 * H] + gh[:, 3 * H:4 * H])
        z_b = jax.nn.sigmoid(gi[:, 4 * H:5 * H] + gh[:, 4 * H:5 * H])
        n_b = jnp.tanh(gi[:, 5 * H:6 * H] + r_b * gh[:, 5 * H:6 * H])
        h_f = (1.0 - z_f) * n_f + z_f * h[:, 0:H]
        h_b = (1.0 - z_b) * n_b + z_b * h[:, H:2 * H]
        of_sc[pl.ds(t, 1), :] = h_f
        ob_sc[pl.ds(tb, 1), :] = h_b
        return jnp.concatenate([h_f, h_b], axis=1)

    lax.fori_loop(0, T, step, jnp.zeros((1, 2 * H), jnp.float32))

    hfb = jnp.concatenate([of_sc[...], ob_sc[...]], axis=1)            # (Tp, 2H) f32
    o_ref[...] = (lax.dot_general(hfb.astype(jnp.bfloat16), wo_ref[...], _NT,
                                  preferred_element_type=jnp.float32)
                  + bo_ref[...])


def bigru_out_pallas(x, params, *, T):
    Tp, threeH = x.shape
    Hp = threeH // 3
    Ap = params['bo'].shape[1]
    kern = functools.partial(bigru_kernel, T=T, H=Hp)
    return pl.pallas_call(
        kern,
        out_shape=jax.ShapeDtypeStruct((Tp, Ap), jnp.float32),
        scratch_shapes=[pltpu.VMEM((Tp, 3 * Hp), jnp.float32),
                        pltpu.VMEM((Tp, 3 * Hp), jnp.float32),
                        pltpu.VMEM((Tp, Hp), jnp.float32),
                        pltpu.VMEM((Tp, Hp), jnp.float32)],
        compiler_params=pltpu.CompilerParams(vmem_limit_bytes=64 * 1024 * 1024),
    )(x, params['wih'], params['bih'], params['whh'], params['bhh'],
      params['wo'], params['bo'])


# ----------------------------------------------------------------------------
# Device-side forward (jitted): 3 Pallas kernels + tiny XLA gathers/pads/concats.
# ----------------------------------------------------------------------------
@functools.partial(jax.jit, static_argnames=('num_actions', 'feat_dim'))
def device_forward(params, batch_input, seg_id, labels, sample_idx,
                   *, num_actions, feat_dim):
    Fp = params['bi'].shape[1]
    Dp = params['wkv'].shape[0]
    Din = batch_input.shape[1]
    L = batch_input.shape[2]
    S = labels.shape[0]

    Lp = _rup(L, 8)
    if S <= 256:
        TS = _rup(S, 8)
        Sp = TS
    else:
        TS = 128
        Sp = _rup(S, TS)

    # ---- attention over the whole sequence, one row per segment ----
    x_t = jnp.transpose(batch_input[0])                               # (L, Din)
    x_t = jnp.pad(x_t, ((0, Lp - L), (0, Dp - Din))).astype(jnp.bfloat16)
    seg_row = jnp.pad(seg_id.astype(jnp.int32), (0, Lp - L),
                      constant_values=-1).reshape(1, Lp)
    labels_p = jnp.pad(labels, (0, Sp - S))
    q = jnp.take(params['q_emb'], labels_p, axis=0)                   # (Sp, Fp) bf16
    label_embed = jnp.take(params['label_emb'], labels_p, axis=0)     # (Sp, Fp) f32

    seg_feat = segment_attention_pallas(
        seg_row, x_t, params['wkv'], q,
        scale=1.0 / float(np.sqrt(feat_dim)), ts=TS)                  # (Sp, Fp) f32

    # ---- SparseSampleEmbedder (highlevel video feature) ----
    hl_inp = jnp.concatenate([seg_feat, label_embed], axis=-1)        # (Sp, 2Fp)
    ns, nf = sample_idx.shape
    sampled = jnp.take(hl_inp, sample_idx.reshape(-1), axis=0)
    sampled = sampled.reshape(ns, nf, 2 * Fp).astype(jnp.bfloat16)
    emb = embedder_pallas(sampled, params)                            # (Tf, Fp), Tf == 1
    hl_row = emb.reshape(1, -1)                                       # num_frames is 2^nb -> Tf == 1

    # ---- bidirectional GRU refiner + output linear ----
    refine_in = jnp.concatenate(
        [seg_feat, label_embed,
         jnp.broadcast_to(hl_row, (Sp, hl_row.shape[-1]))], axis=-1)  # (Sp, 3Fp)
    gru_out = bigru_out_pallas(refine_in.astype(jnp.bfloat16), params, T=S)  # (Sp, Ap)

    refine_pred = gru_out[:S, :num_actions]                           # (S, A)
    refine_rollout = jnp.take(refine_pred, seg_id, axis=0).T          # (A, L)
    return refine_pred[None], refine_rollout[None]


# ----------------------------------------------------------------------------
# Host wrapper: data-dependent Python work only (segment boundaries, `random`
# frame sampling), matching get_segment_info / SparseSampleEmbedder sampling.
# ----------------------------------------------------------------------------
def refiner_forward(prepared, cfg, action_idx_np, batch_input, py_rng):
    L = len(action_idx_np)
    segment_idx = [0]
    prev = action_idx_np[0]
    for ii, idx in enumerate(action_idx_np):
        if idx != prev:
            segment_idx.append(ii)
        prev = idx
    segment_idx.append(L)
    num_seg = len(segment_idx) - 1
    seg_lens = np.array([segment_idx[i + 1] - segment_idx[i] for i in range(num_seg)],
                        np.int32)
    # within a segment all action indices are equal => mean().long() == that value
    pred_labels = np.array([int(action_idx_np[segment_idx[i]]) for i in range(num_seg)],
                           np.int32)
    seg_id = np.repeat(np.arange(num_seg, dtype=np.int32), seg_lens)  # (L,)

    nf, ns = cfg['num_frames'], cfg['num_samples']
    samples = []
    for _ in range(ns):
        if num_seg >= nf:
            idx = sorted(py_rng.sample(range(num_seg), nf))
        else:
            idx = sorted(py_rng.randint(0, num_seg - 1) for _ in range(nf))
        samples.append(idx)
    sample_idx = np.array(samples, np.int32)                          # (ns, nf)

    refine_pred, refine_rollout = device_forward(
        prepared, batch_input, jnp.asarray(seg_id), jnp.asarray(pred_labels),
        jnp.asarray(sample_idx),
        num_actions=cfg['num_actions'], feat_dim=cfg['feat_dim'])

    gt_labels = jnp.zeros((1, 0), jnp.int32)   # eval mode / no batch_target
    return refine_pred, refine_rollout, gt_labels


# ----------------------------------------------------------------------------
# Raw (PyTorch-layout) parameters + host-side packing/padding/bf16 prep.
# ----------------------------------------------------------------------------
def init_raw_params(key, cfg):
    A, Din, F = cfg['num_actions'], cfg['input_dim'], cfg['feat_dim']
    nb = int(np.log2(cfg['num_frames']))
    keys = iter(jax.random.split(key, 64))

    def nrm(shape, scale=0.1):
        return jax.random.normal(next(keys), shape, jnp.float32) * scale

    return {
        'wk': nrm((F, Din)), 'wv': nrm((F, Din)),
        'query_embedding': nrm((A, F)), 'label_embedding': nrm((A, F)),
        'init_conv_w': nrm((F, 2 * F, 3)), 'init_conv_b': nrm((F,)),
        'blocks': [{'w1': nrm((F, F, 3)), 'b1': nrm((F,)),
                    'w2': nrm((F, F, 3)), 'b2': nrm((F,))} for _ in range(nb)],
        'wih_f': nrm((3 * F, 3 * F)), 'whh_f': nrm((3 * F, F)),
        'bih_f': nrm((3 * F,)), 'bhh_f': nrm((3 * F,)),
        'wih_b': nrm((3 * F, 3 * F)), 'whh_b': nrm((3 * F, F)),
        'bih_b': nrm((3 * F,)), 'bhh_b': nrm((3 * F,)),
        'w_out': nrm((A, 2 * F)), 'b_out': nrm((A,)),
    }


def prepare_params(raw, cfg):
    F, Din, A = cfg['feat_dim'], cfg['input_dim'], cfg['num_actions']
    Fp, Dp, Ap = _rup(F, 128), _rup(Din, 128), _rup(A, 128)
    nb = len(raw['blocks'])

    def np32(a):
        return np.asarray(a, np.float32)

    # fused K/V projection: columns [0:Fp)=K, [Fp:2Fp)=V
    wkv = np.zeros((Dp, 2 * Fp), np.float32)
    wkv[:Din, :F] = np32(raw['wk']).T
    wkv[:Din, Fp:Fp + F] = np32(raw['wv']).T

    q_emb = np.zeros((A, Fp), np.float32); q_emb[:, :F] = np32(raw['query_embedding'])
    l_emb = np.zeros((A, Fp), np.float32); l_emb[:, :F] = np32(raw['label_embedding'])

    # embedder init conv: input lanes [seg_feat(Fp) | label(Fp)], taps stacked on rows
    Cin2 = 2 * Fp
    w0 = np32(raw['init_conv_w'])                                     # (F, 2F, 3)
    wi = np.zeros((3 * Cin2, Fp), np.float32)
    for k in range(3):
        wi[k * Cin2:k * Cin2 + F, :F] = w0[:, :F, k].T
        wi[k * Cin2 + Fp:k * Cin2 + Fp + F, :F] = w0[:, F:, k].T
    bi = np.zeros((1, Fp), np.float32); bi[0, :F] = np32(raw['init_conv_b'])

    bw = np.zeros((2 * nb, 3 * Fp, Fp), np.float32)
    bb = np.zeros((2 * nb, 1, Fp), np.float32)
    for j, blk in enumerate(raw['blocks']):
        for c, (wk_, bk_) in enumerate((('w1', 'b1'), ('w2', 'b2'))):
            w = np32(blk[wk_])                                        # (F, F, 3)
            for k in range(3):
                bw[2 * j + c, k * Fp:k * Fp + F, :F] = w[:, :, k].T
            bb[2 * j + c, 0, :F] = np32(blk[bk_])

    # GRU: gate rows [r_f,z_f,n_f,r_b,z_b,n_b], each block padded to Fp
    H, Hp = F, Fp
    wih = np.zeros((6 * Hp, 3 * Fp), np.float32)
    whh = np.zeros((6 * Hp, 2 * Hp), np.float32)
    bih = np.zeros((1, 6 * Hp), np.float32)
    bhh = np.zeros((1, 6 * Hp), np.float32)
    for d, sfx in enumerate(('f', 'b')):
        wih_d = np32(raw['wih_' + sfx]); whh_d = np32(raw['whh_' + sfx])
        bih_d = np32(raw['bih_' + sfx]); bhh_d = np32(raw['bhh_' + sfx])
        for g in range(3):                                            # r, z, n
            ro = (3 * d + g) * Hp
            for cb in range(3):                                       # seg_feat, label, hl
                wih[ro:ro + H, cb * Fp:cb * Fp + F] = \
                    wih_d[g * H:(g + 1) * H, cb * F:(cb + 1) * F]
            whh[ro:ro + H, d * Hp:d * Hp + H] = whh_d[g * H:(g + 1) * H, :]
            bih[0, ro:ro + H] = bih_d[g * H:(g + 1) * H]
            bhh[0, ro:ro + H] = bhh_d[g * H:(g + 1) * H]

    w_out = np32(raw['w_out'])
    wo = np.zeros((Ap, 2 * Hp), np.float32)
    wo[:A, :H] = w_out[:, :H]
    wo[:A, Hp:Hp + H] = w_out[:, H:]
    bo = np.zeros((1, Ap), np.float32); bo[0, :A] = np32(raw['b_out'])

    bf = jnp.bfloat16
    return {
        'wkv': jnp.asarray(wkv, bf),
        'q_emb': jnp.asarray(q_emb, bf),
        'label_emb': jnp.asarray(l_emb, jnp.float32),
        'wi': jnp.asarray(wi, bf), 'bi': jnp.asarray(bi, jnp.float32),
        'bw': jnp.asarray(bw, bf), 'bb': jnp.asarray(bb, jnp.float32),
        'wih': jnp.asarray(wih, bf), 'bih': jnp.asarray(bih, jnp.float32),
        'whh': jnp.asarray(whh, bf), 'bhh': jnp.asarray(bhh, jnp.float32),
        'wo': jnp.asarray(wo, bf), 'bo': jnp.asarray(bo, jnp.float32),
    }


if __name__ == "__main__":
    cfg = dict(num_actions=8, input_dim=16, feat_dim=32,
               num_frames=4, num_samples=2)
    key = jax.random.PRNGKey(0)
    pkey, xkey = jax.random.split(key)
    raw = init_raw_params(pkey, cfg)
    prepared = prepare_params(raw, cfg)

    B, L = 1, 16
    batch_input = jax.random.normal(xkey, (B, cfg['input_dim'], L), jnp.float32)
    action_idx = np.array([0, 0, 0, 1, 1, 2, 2, 2, 2, 3, 3, 1, 1, 1, 0, 0], np.int32)

    py_rng = random.Random(0)   # deterministic stand-in for the module's `random` sampling
    refine_pred, refine_rollout, gt_labels = refiner_forward(
        prepared, cfg, action_idx, batch_input, py_rng)

    jax.block_until_ready((refine_pred, refine_rollout, gt_labels))
    assert refine_pred.shape == (1, 6, cfg['num_actions'])
    assert refine_rollout.shape == (1, cfg['num_actions'], L)
    print("KERNEL_OK")
</pallas_src>

<mosaic_0001>
module attributes {stable_mosaic.version = 11 : i64} {
  func.func @bigru_kernel(%arg0: memref<8x384xbf16, #tpu.memory_space<vmem>>, %arg1: memref<768x384xbf16, #tpu.memory_space<vmem>>, %arg2: memref<1x768xf32, #tpu.memory_space<vmem>>, %arg3: memref<768x256xbf16, #tpu.memory_space<vmem>>, %arg4: memref<1x768xf32, #tpu.memory_space<vmem>>, %arg5: memref<128x256xbf16, #tpu.memory_space<vmem>>, %arg6: memref<1x128xf32, #tpu.memory_space<vmem>>, %arg7: memref<8x128xf32, #tpu.memory_space<vmem>>, %arg8: memref<8x384xf32, #tpu.memory_space<vmem>>, %arg9: memref<8x384xf32, #tpu.memory_space<vmem>>, %arg10: memref<8x128xf32, #tpu.memory_space<vmem>>, %arg11: memref<8x128xf32, #tpu.memory_space<vmem>>) attributes {dimension_semantics = [], scalar_prefetch = 0 : i64, scratch_operands = 4 : i64, tpu.core_type = #tpu.core_type<tc>} {
    %c0 = arith.constant 0 : index
    %c0_0 = arith.constant 0 : index
    %0 = vector.load %arg0[%c0, %c0_0] : memref<8x384xbf16, #tpu.memory_space<vmem>>, vector<8x384xbf16>
    %c0_1 = arith.constant 0 : index
    %c0_2 = arith.constant 0 : index
    %1 = vector.load %arg1[%c0_1, %c0_2] : memref<768x384xbf16, #tpu.memory_space<vmem>>, vector<768x384xbf16>
    %cst = arith.constant dense<0.000000e+00> : vector<8x768xf32>
    %2 = tpu.matmul %0, %1, %cst {dimension_numbers = #tpu.dot_dimension_numbers<[1], [1], [0], [0], [0, 0, 1, 0], [], []>} : vector<8x384xbf16>, vector<768x384xbf16>, vector<8x768xf32> -> vector<8x768xf32>
    %c0_3 = arith.constant 0 : index
    %c0_4 = arith.constant 0 : index
    %3 = vector.load %arg2[%c0_3, %c0_4] : memref<1x768xf32, #tpu.memory_space<vmem>>, vector<1x768xf32>
    %4 = vector.broadcast %3 : vector<1x768xf32> to vector<8x768xf32>
    %5 = arith.addf %2, %4 : vector<8x768xf32>
    %6 = vector.extract_strided_slice %5 {offsets = [0, 0], sizes = [8, 384], strides = [1, 1]} : vector<8x768xf32> to vector<8x384xf32>
    %c0_5 = arith.constant 0 : index
    %c0_6 = arith.constant 0 : index
    %7 = vector.load %arg8[%c0_5, %c0_6] : memref<8x384xf32, #tpu.memory_space<vmem>>, vector<8x384xf32>
    tpu.vector_store %arg8[%c0_5, %c0_6], %6 {strides = array<i32>} : memref<8x384xf32, #tpu.memory_space<vmem>>, vector<8x384xf32>,
    %8 = vector.extract_strided_slice %5 {offsets = [0, 384], sizes = [8, 384], strides = [1, 1]} : vector<8x768xf32> to vector<8x384xf32>
    %c0_7 = arith.constant 0 : index
    %c0_8 = arith.constant 0 : index
    %9 = vector.load %arg9[%c0_7, %c0_8] : memref<8x384xf32, #tpu.memory_space<vmem>>, vector<8x384xf32>
    tpu.vector_store %arg9[%c0_7, %c0_8], %8 {strides = array<i32>} : memref<8x384xf32, #tpu.memory_space<vmem>>, vector<8x384xf32>,
    %cst_9 = arith.constant 0.000000e+00 : f32
    %10 = vector.broadcast %cst_9 : f32 to vector<8x128xf32>
    %c0_10 = arith.constant 0 : index
    %c0_11 = arith.constant 0 : index
    %11 = vector.load %arg10[%c0_10, %c0_11] : memref<8x128xf32, #tpu.memory_space<vmem>>, vector<8x128xf32>
    tpu.vector_store %arg10[%c0_10, %c0_11], %10 {strides = array<i32>} : memref<8x128xf32, #tpu.memory_space<vmem>>, vector<8x128xf32>,
    %cst_12 = arith.constant 0.000000e+00 : f32
    %12 = vector.broadcast %cst_12 : f32 to vector<8x128xf32>
    %c0_13 = arith.constant 0 : index
    %c0_14 = arith.constant 0 : index
    %13 = vector.load %arg11[%c0_13, %c0_14] : memref<8x128xf32, #tpu.memory_space<vmem>>, vector<8x128xf32>
    tpu.vector_store %arg11[%c0_13, %c0_14], %12 {strides = array<i32>} : memref<8x128xf32, #tpu.memory_space<vmem>>, vector<8x128xf32>,
    %c0_15 = arith.constant 0 : index
    %c0_16 = arith.constant 0 : index
    %14 = vector.load %arg3[%c0_15, %c0_16] : memref<768x256xbf16, #tpu.memory_space<vmem>>, vector<768x256xbf16>
    %c0_17 = arith.constant 0 : index
    %c0_18 = arith.constant 0 : index
    %15 = vector.load %arg4[%c0_17, %c0_18] : memref<1x768xf32, #tpu.memory_space<vmem>>, vector<1x768xf32>
    %cst_19 = arith.constant 0.000000e+00 : f32
    %16 = vector.broadcast %cst_19 : f32 to vector<1x256xf32>
    %c0_i32 = arith.constant 0 : i32
    %c6_i32 = arith.constant 6 : i32
    %17 = arith.addi %c0_i32, %c6_i32 : i32
    %c1_i32 = arith.constant 1 : i32
    %18 = scf.for %arg12 = %c0_i32 to %17 step %c1_i32 iter_args(%arg13 = %16) -> (vector<1x256xf32>)  : i32 {
      %c5_i32 = arith.constant 5 : i32
      %29 = arith.subi %c5_i32, %arg12 : i32
      %30 = arith.index_cast %arg12 : i32 to index
      %c0_32 = arith.constant 0 : index
      %31 = vector.load %arg8[%30, %c0_32] : memref<8x384xf32, #tpu.memory_space<vmem>>, vector<1x384xf32>
      %32 = arith.index_cast %29 : i32 to index
      %c0_33 = arith.constant 0 : index
      %33 = vector.load %arg9[%32, %c0_33] : memref<8x384xf32, #tpu.memory_space<vmem>>, vector<1x384xf32>
      %34 = tpu.concatenate %31, %33 in 1 : vector<1x384xf32>, vector<1x384xf32> -> vector<1x768xf32>
      %35 = arith.truncf %arg13 : vector<1x256xf32> to vector<1x256xbf16>
      %cst_34 = arith.constant dense<0.000000e+00> : vector<1x768xf32>
      %36 = tpu.matmul %35, %14, %cst_34 {dimension_numbers = #tpu.dot_dimension_numbers<[1], [1], [0], [0], [0, 0, 1, 0], [], []>} : vector<1x256xbf16>, vector<768x256xbf16>, vector<1x768xf32> -> vector<1x768xf32>
      %37 = arith.addf %36, %15 : vector<1x768xf32>
      %38 = vector.extract_strided_slice %34 {offsets = [0, 0], sizes = [1, 128], strides = [1, 1]} : vector<1x768xf32> to vector<1x128xf32>
      %39 = vector.extract_strided_slice %37 {offsets = [0, 0], sizes = [1, 128], strides = [1, 1]} : vector<1x768xf32> to vector<1x128xf32>
      %40 = arith.addf %38, %39 : vector<1x128xf32>
      %41 = arith.negf %40 : vector<1x128xf32>
      %42 = math.exp %41 : vector<1x128xf32>
      %cst_35 = arith.constant 1.000000e+00 : f32
      %43 = vector.broadcast %cst_35 : f32 to vector<1x128xf32>
      %44 = arith.addf %43, %42 : vector<1x128xf32>
      %45 = arith.divf %43, %44 : vector<1x128xf32>
      %46 = vector.extract_strided_slice %34 {offsets = [0, 128], sizes = [1, 128], strides = [1, 1]} : vector<1x768xf32> to vector<1x128xf32>
      %47 = vector.extract_strided_slice %37 {offsets = [0, 128], sizes = [1, 128], strides = [1, 1]} : vector<1x768xf32> to vector<1x128xf32>
      %48 = arith.addf %46, %47 : vector<1x128xf32>
      %49 = arith.negf %48 : vector<1x128xf32>
      %50 = math.exp %49 : vector<1x128xf32>
      %cst_36 = arith.constant 1.000000e+00 : f32
      %51 = vector.broadcast %cst_36 : f32 to vector<1x128xf32>
      %52 = arith.addf %51, %50 : vector<1x128xf32>
      %53 = arith.divf %51, %52 : vector<1x128xf32>
      %54 = vector.extract_strided_slice %34 {offsets = [0, 256], sizes = [1, 128], strides = [1, 1]} : vector<1x768xf32> to vector<1x128xf32>
      %55 = vector.extract_strided_slice %37 {offsets = [0, 256], sizes = [1, 128], strides = [1, 1]} : vector<1x768xf32> to vector<1x128xf32>
      %56 = arith.mulf %45, %55 : vector<1x128xf32>
      %57 = arith.addf %54, %56 : vector<1x128xf32>
      %58 = math.tanh %57 : vector<1x128xf32>
      %59 = vector.extract_strided_slice %34 {offsets = [0, 384], sizes = [1, 128], strides = [1, 1]} : vector<1x768xf32> to vector<1x128xf32>
      %60 = vector.extract_strided_slice %37 {offsets = [0, 384], sizes = [1, 128], strides = [1, 1]} : vector<1x768xf32> to vector<1x128xf32>
      %61 = arith.addf %59, %60 : vector<1x128xf32>
      %62 = arith.negf %61 : vector<1x128xf32>
      %63 = math.exp %62 : vector<1x128xf32>
      %cst_37 = arith.constant 1.000000e+00 : f32
      %64 = vector.broadcast %cst_37 : f32 to vector<1x128xf32>
      %65 = arith.addf %64, %63 : vector<1x128xf32>
      %66 = arith.divf %64, %65 : vector<1x128xf32>
      %67 = vector.extract_strided_slice %34 {offsets = [0, 512], sizes = [1, 128], strides = [1, 1]} : vector<1x768xf32> to vector<1x128xf32>
      %68 = vector.extract_strided_slice %37 {offsets = [0, 512], sizes = [1, 128], strides = [1, 1]} : vector<1x768xf32> to vector<1x128xf32>
      %69 = arith.addf %67, %68 : vector<1x128xf32>
      %70 = arith.negf %69 : vector<1x128xf32>
      %71 = math.exp %70 : vector<1x128xf32>
      %cst_38 = arith.constant 1.000000e+00 : f32
      %72 = vector.broadcast %cst_38 : f32 to vector<1x128xf32>
      %73 = arith.addf %72, %71 : vector<1x128xf32>
      %74 = arith.divf %72, %73 : vector<1x128xf32>
      %75 = vector.extract_strided_slice %34 {offsets = [0, 640], sizes = [1, 128], strides = [1, 1]} : vector<1x768xf32> to vector<1x128xf32>
      %76 = vector.extract_strided_slice %37 {offsets = [0, 640], sizes = [1, 128], strides = [1, 1]} : vector<1x768xf32> to vector<1x128xf32>
      %77 = arith.mulf %66, %76 : vector<1x128xf32>
      %78 = arith.addf %75, %77 : vector<1x128xf32>
      %79 = math.tanh %78 : vector<1x128xf32>
      %cst_39 = arith.constant 1.000000e+00 : f32
      %80 = vector.broadcast %cst_39 : f32 to vector<1x128xf32>
      %81 = arith.subf %80, %53 : vector<1x128xf32>
      %82 = arith.mulf %81, %58 : vector<1x128xf32>
      %83 = vector.extract_strided_slice %arg13 {offsets = [0, 0], sizes = [1, 128], strides = [1, 1]} : vector<1x256xf32> to vector<1x128xf32>
      %84 = arith.mulf %53, %83 : vector<1x128xf32>
      %85 = arith.addf %82, %84 : vector<1x128xf32>
      %cst_40 = arith.constant 1.000000e+00 : f32
      %86 = vector.broadcast %cst_40 : f32 to vector<1x128xf32>
      %87 = arith.subf %86, %74 : vector<1x128xf32>
      %88 = arith.mulf %87, %79 : vector<1x128xf32>
      %89 = vector.extract_strided_slice %arg13 {offsets = [0, 128], sizes = [1, 128], strides = [1, 1]} : vector<1x256xf32> to vector<1x128xf32>
      %90 = arith.mulf %74, %89 : vector<1x128xf32>
      %91 = arith.addf %88, %90 : vector<1x128xf32>
      %92 = arith.index_cast %arg12 : i32 to index
      %c0_41 = arith.constant 0 : index
      %93 = vector.load %arg10[%92, %c0_41] : memref<8x128xf32, #tpu.memory_space<vmem>>, vector<1x128xf32>
      tpu.vector_store %arg10[%92, %c0_41], %85 {strides = array<i32>} : memref<8x128xf32, #tpu.memory_space<vmem>>, vector<1x128xf32>,
      %94 = arith.index_cast %29 : i32 to index
      %c0_42 = arith.constant 0 : index
      %95 = vector.load %arg11[%94, %c0_42] : memref<8x128xf32, #tpu.memory_space<vmem>>, vector<1x128xf32>
      tpu.vector_store %arg11[%94, %c0_42], %91 {strides = array<i32>} : memref<8x128xf32, #tpu.memory_space<vmem>>, vector<1x128xf32>,
      %96 = tpu.concatenate %85, %91 in 1 : vector<1x128xf32>, vector<1x128xf32> -> vector<1x256xf32>
      scf.yield %96 : vector<1x256xf32>
    }
    %c6_i32_20 = arith.constant 6 : i32
    %c0_21 = arith.constant 0 : index
    %c0_22 = arith.constant 0 : index
    %19 = vector.load %arg10[%c0_21, %c0_22] : memref<8x128xf32, #tpu.memory_space<vmem>>, vector<8x128xf32>
    %c0_23 = arith.constant 0 : index
    %c0_24 = arith.constant 0 : index
    %20 = vector.load %arg11[%c0_23, %c0_24] : memref<8x128xf32, #tpu.memory_space<vmem>>, vector<8x128xf32>
    %21 = tpu.concatenate %19, %20 in 1 : vector<8x128xf32>, vector<8x128xf32> -> vector<8x256xf32>
    %22 = arith.truncf %21 : vector<8x256xf32> to vector<8x256xbf16>
    %c0_25 = arith.constant 0 : index
    %c0_26 = arith.constant 0 : index
    %23 = vector.load %arg5[%c0_25, %c0_26] : memref<128x256xbf16, #tpu.memory_space<vmem>>, vector<128x256xbf16>
    %cst_27 = arith.constant dense<0.000000e+00> : vector<8x128xf32>
    %24 = tpu.matmul %22, %23, %cst_27 {dimension_numbers = #tpu.dot_dimension_numbers<[1], [1], [0], [0], [0, 0, 1, 0], [], []>} : vector<8x256xbf16>, vector<128x256xbf16>, vector<8x128xf32> -> vector<8x128xf32>
    %c0_28 = arith.constant 0 : index
    %c0_29 = arith.constant 0 : index
    %25 = vector.load %arg6[%c0_28, %c0_29] : memref<1x128xf32, #tpu.memory_space<vmem>>, vector<1x128xf32>
    %26 = vector.broadcast %25 : vector<1x128xf32> to vector<8x128xf32>
    %27 = arith.addf %24, %26 : vector<8x128xf32>
    %c0_30 = arith.constant 0 : index
    %c0_31 = arith.constant 0 : index
    %28 = vector.load %arg7[%c0_30, %c0_31] : memref<8x128xf32, #tpu.memory_space<vmem>>, vector<8x128xf32>
    tpu.vector_store %arg7[%c0_30, %c0_31], %27 {strides = array<i32>} : memref<8x128xf32, #tpu.memory_space<vmem>>, vector<8x128xf32>,
    return
  }
}

module attributes {stable_mosaic.version = 11 : i64} {
  func.func @embedder_kernel(%arg0: memref<2x4x256xbf16, #tpu.memory_space<vmem>>, %arg1: memref<768x128xbf16, #tpu.memory_space<vmem>>, %arg2: memref<1x128xf32, #tpu.memory_space<vmem>>, %arg3: memref<4x384x128xbf16, #tpu.memory_space<vmem>>, %arg4: memref<4x1x128xf32, #tpu.memory_space<vmem>>, %arg5: memref<1x128xf32, #tpu.memory_space<vmem>>) attributes {dimension_semantics = [], scalar_prefetch = 0 : i64, scratch_operands = 0 : i64, tpu.core_type = #tpu.core_type<tc>} {
    %cst = arith.constant 0.000000e+00 : f32
    %0 = vector.broadcast %cst : f32 to vector<1x128xf32>
    %c0_i32 = arith.constant 0 : i32
    %c2_i32 = arith.constant 2 : i32
    %1 = arith.addi %c0_i32, %c2_i32 : i32
    %c1_i32 = arith.constant 1 : i32
    %2 = scf.for %arg6 = %c0_i32 to %1 step %c1_i32 iter_args(%arg7 = %0) -> (vector<1x128xf32>)  : i32 {
      %6 = arith.index_cast %arg6 : i32 to index
      %c0_3 = arith.constant 0 : index
      %c0_4 = arith.constant 0 : index
      %7 = vector.load %arg0[%6, %c0_3, %c0_4] : memref<2x4x256xbf16, #tpu.memory_space<vmem>>, vector<1x4x256xbf16>
      %8 = vector.shape_cast %7 : vector<1x4x256xbf16> to vector<4x256xbf16>
      %c0_5 = arith.constant 0 : index
      %c0_6 = arith.constant 0 : index
      %9 = vector.load %arg1[%c0_5, %c0_6] : memref<768x128xbf16, #tpu.memory_space<vmem>>, vector<768x128xbf16>
      %c0_7 = arith.constant 0 : index
      %c0_8 = arith.constant 0 : index
      %10 = vector.load %arg2[%c0_7, %c0_8] : memref<1x128xf32, #tpu.memory_space<vmem>>, vector<1x128xf32>
      %cst_9 = arith.constant 0.000000e+00 : bf16
      %11 = vector.broadcast %cst_9 : bf16 to vector<1x256xbf16>
      %12 = tpu.concatenate %11, %8, %11 in 0 : vector<1x256xbf16>, vector<4x256xbf16>, vector<1x256xbf16> -> vector<6x256xbf16>
      %13 = vector.extract_strided_slice %12 {offsets = [0, 0], sizes = [4, 256], strides = [1, 1]} : vector<6x256xbf16> to vector<4x256xbf16>
      %14 = vector.extract_strided_slice %12 {offsets = [1, 0], sizes = [4, 256], strides = [1, 1]} : vector<6x256xbf16> to vector<4x256xbf16>
      %15 = vector.extract_strided_slice %12 {offsets = [2, 0], sizes = [4, 256], strides = [1, 1]} : vector<6x256xbf16> to vector<4x256xbf16>
      %16 = tpu.concatenate %13, %14, %15 in 1 : vector<4x256xbf16>, vector<4x256xbf16>, vector<4x256xbf16> -> vector<4x768xbf16>
      %cst_10 = arith.constant dense<0.000000e+00> : vector<4x128xf32>
      %17 = tpu.matmul %16, %9, %cst_10 {dimension_numbers = #tpu.dot_dimension_numbers<[1], [0], [0], [1], [0, 0, 1, 1], [], []>} : vector<4x768xbf16>, vector<768x128xbf16>, vector<4x128xf32> -> vector<4x128xf32>
      %18 = vector.broadcast %10 : vector<1x128xf32> to vector<4x128xf32>
      %19 = arith.addf %17, %18 : vector<4x128xf32>
      %c0_11 = arith.constant 0 : index
      %c0_12 = arith.constant 0 : index
      %c0_13 = arith.constant 0 : index
      %20 = vector.load %arg3[%c0_11, %c0_12, %c0_13] : memref<4x384x128xbf16, #tpu.memory_space<vmem>>, vector<1x384x128xbf16>
      %21 = vector.shape_cast %20 : vector<1x384x128xbf16> to vector<384x128xbf16>
      %c0_14 = arith.constant 0 : index
      %c0_15 = arith.constant 0 : index
      %c0_16 = arith.constant 0 : index
      %22 = vector.load %arg4[%c0_14, %c0_15, %c0_16] : memref<4x1x128xf32, #tpu.memory_space<vmem>>, vector<1x1x128xf32>
      %23 = vector.shape_cast %22 : vector<1x1x128xf32> to vector<1x128xf32>
      %cst_17 = arith.constant 0.000000e+00 : f32
      %24 = vector.broadcast %cst_17 : f32 to vector<1x128xf32>
      %25 = tpu.concatenate %24, %19, %24 in 0 : vector<1x128xf32>, vector<4x128xf32>, vector<1x128xf32> -> vector<6x128xf32>
      %26 = vector.extract_strided_slice %25 {offsets = [0, 0], sizes = [4, 128], strides = [1, 1]} : vector<6x128xf32> to vector<4x128xf32>
      %27 = vector.extract_strided_slice %25 {offsets = [1, 0], sizes = [4, 128], strides = [1, 1]} : vector<6x128xf32> to vector<4x128xf32>
      %28 = vector.extract_strided_slice %25 {offsets = [2, 0], sizes = [4, 128], strides = [1, 1]} : vector<6x128xf32> to vector<4x128xf32>
      %29 = tpu.concatenate %26, %27, %28 in 1 : vector<4x128xf32>, vector<4x128xf32>, vector<4x128xf32> -> vector<4x384xf32>
      %30 = arith.truncf %29 : vector<4x384xf32> to vector<4x384xbf16>
      %cst_18 = arith.constant dense<0.000000e+00> : vector<4x128xf32>
      %31 = tpu.matmul %30, %21, %cst_18 {dimension_numbers = #tpu.dot_dimension_numbers<[1], [0], [0], [1], [0, 0, 1, 1], [], []>} : vector<4x384xbf16>, vector<384x128xbf16>, vector<4x128xf32> -> vector<4x128xf32>
      %32 = vector.broadcast %23 : vector<1x128xf32> to vector<4x128xf32>
      %33 = arith.addf %31, %32 : vector<4x128xf32>
      %cst_19 = arith.constant 0.000000e+00 : f32
      %34 = vector.broadcast %cst_19 : f32 to vector<4x128xf32>
      %35 = arith.cmpf oge, %33, %34 : vector<4x128xf32>
      %cst_20 = arith.constant 1.000000e-01 : f32
      %36 = vector.broadcast %cst_20 : f32 to vector<4x128xf32>
      %37 = arith.mulf %36, %33 : vector<4x128xf32>
      %38 = arith.select %35, %33, %37 : vector<4x128xi1>, vector<4x128xf32>
      %c1 = arith.constant 1 : index
      %c0_21 = arith.constant 0 : index
      %c0_22 = arith.constant 0 : index
      %39 = vector.load %arg3[%c1, %c0_21, %c0_22] : memref<4x384x128xbf16, #tpu.memory_space<vmem>>, vector<1x384x128xbf16>
      %40 = vector.shape_cast %39 : vector<1x384x128xbf16> to vector<384x128xbf16>
      %c1_23 = arith.constant 1 : index
      %c0_24 = arith.constant 0 : index
      %c0_25 = arith.constant 0 : index
      %41 = vector.load %arg4[%c1_23, %c0_24, %c0_25] : memref<4x1x128xf32, #tpu.memory_space<vmem>>, vector<1x1x128xf32>
      %42 = vector.shape_cast %41 : vector<1x1x128xf32> to vector<1x128xf32>
      %cst_26 = arith.constant 0.000000e+00 : f32
      %43 = vector.broadcast %cst_26 : f32 to vector<1x128xf32>
      %44 = tpu.concatenate %43, %38, %43 in 0 : vector<1x128xf32>, vector<4x128xf32>, vector<1x128xf32> -> vector<6x128xf32>
      %45 = vector.extract_strided_slice %44 {offsets = [0, 0], sizes = [4, 128], strides = [1, 1]} : vector<6x128xf32> to vector<4x128xf32>
      %46 = vector.extract_strided_slice %44 {offsets = [1, 0], sizes = [4, 128], strides = [1, 1]} : vector<6x128xf32> to vector<4x128xf32>
      %47 = vector.extract_strided_slice %44 {offsets = [2, 0], sizes = [4, 128], strides = [1, 1]} : vector<6x128xf32> to vector<4x128xf32>
      %48 = tpu.concatenate %45, %46, %47 in 1 : vector<4x128xf32>, vector<4x128xf32>, vector<4x128xf32> -> vector<4x384xf32>
      %49 = arith.truncf %48 : vector<4x384xf32> to vector<4x384xbf16>
      %cst_27 = arith.constant dense<0.000000e+00> : vector<4x128xf32>
      %50 = tpu.matmul %49, %40, %cst_27 {dimension_numbers = #tpu.dot_dimension_numbers<[1], [0], [0], [1], [0, 0, 1, 1], [], []>} : vector<4x384xbf16>, vector<384x128xbf16>, vector<4x128xf32> -> vector<4x128xf32>
      %51 = vector.broadcast %42 : vector<1x128xf32> to vector<4x128xf32>
      %52 = arith.addf %50, %51 : vector<4x128xf32>
      %53 = arith.addf %19, %52 : vector<4x128xf32>
      %cst_28 = arith.constant 0.000000e+00 : f32
      %54 = vector.broadcast %cst_28 : f32 to vector<4x128xf32>
      %55 = arith.cmpf oge, %53, %54 : vector<4x128xf32>
      %cst_29 = arith.constant 1.000000e-01 : f32
      %56 = vector.broadcast %cst_29 : f32 to vector<4x128xf32>
      %57 = arith.mulf %56, %53 : vector<4x128xf32>
      %58 = arith.select %55, %53, %57 : vector<4x128xi1>, vector<4x128xf32>
      %59 = vector.shape_cast %58 : vector<4x128xf32> to vector<2x2x128xf32>
      %cst_30 = arith.constant dense<0xFF800000> : vector<2x128xf32>
      %60 = vector.multi_reduction <maximumf>, %59, %cst_30 [1] : vector<2x2x128xf32> to vector<2x128xf32>
      %c2 = arith.constant 2 : index
      %c0_31 = arith.constant 0 : index
      %c0_32 = arith.constant 0 : index
      %61 = vector.load %arg3[%c2, %c0_31, %c0_32] : memref<4x384x128xbf16, #tpu.memory_space<vmem>>, vector<1x384x128xbf16>
      %62 = vector.shape_cast %61 : vector<1x384x128xbf16> to vector<384x128xbf16>
      %c2_33 = arith.constant 2 : index
      %c0_34 = arith.constant 0 : index
      %c0_35 = arith.constant 0 : index
      %63 = vector.load %arg4[%c2_33, %c0_34, %c0_35] : memref<4x1x128xf32, #tpu.memory_space<vmem>>, vector<1x1x128xf32>
      %64 = vector.shape_cast %63 : vector<1x1x128xf32> to vector<1x128xf32>
      %cst_36 = arith.constant 0.000000e+00 : f32
      %65 = vector.broadcast %cst_36 : f32 to vector<1x128xf32>
      %66 = tpu.concatenate %65, %60, %65 in 0 : vector<1x128xf32>, vector<2x128xf32>, vector<1x128xf32> -> vector<4x128xf32>
      %67 = vector.extract_strided_slice %66 {offsets = [0, 0], sizes = [2, 128], strides = [1, 1]} : vector<4x128xf32> to vector<2x128xf32>
      %68 = vector.extract_strided_slice %66 {offsets = [1, 0], sizes = [2, 128], strides = [1, 1]} : vector<4x128xf32> to vector<2x128xf32>
      %69 = vector.extract_strided_slice %66 {offsets = [2, 0], sizes = [2, 128], strides = [1, 1]} : vector<4x128xf32> to vector<2x128xf32>
      %70 = tpu.concatenate %67, %68, %69 in 1 : vector<2x128xf32>, vector<2x128xf32>, vector<2x128xf32> -> vector<2x384xf32>
      %71 = arith.truncf %70 : vector<2x384xf32> to vector<2x384xbf16>
      %cst_37 = arith.constant dense<0.000000e+00> : vector<2x128xf32>
      %72 = tpu.matmul %71, %62, %cst_37 {dimension_numbers = #tpu.dot_dimension_numbers<[1], [0], [0], [1], [0, 0, 1, 1], [], []>} : vector<2x384xbf16>, vector<384x128xbf16>, vector<2x128xf32> -> vector<2x128xf32>
      %73 = vector.broadcast %64 : vector<1x128xf32> to vector<2x128xf32>
      %74 = arith.addf %72, %73 : vector<2x128xf32>
      %cst_38 = arith.constant 0.000000e+00 : f32
      %75 = vector.broadcast %cst_38 : f32 to vector<2x128xf32>
      %76 = arith.cmpf oge, %74, %75 : vector<2x128xf32>
      %cst_39 = arith.constant 1.000000e-01 : f32
      %77 = vector.broadcast %cst_39 : f32 to vector<2x128xf32>
      %78 = arith.mulf %77, %74 : vector<2x128xf32>
      %79 = arith.select %76, %74, %78 : vector<2x128xi1>, vector<2x128xf32>
      %c3 = arith.constant 3 : index
      %c0_40 = arith.constant 0 : index
      %c0_41 = arith.constant 0 : index
      %80 = vector.load %arg3[%c3, %c0_40, %c0_41] : memref<4x384x128xbf16, #tpu.memory_space<vmem>>, vector<1x384x128xbf16>
      %81 = vector.shape_cast %80 : vector<1x384x128xbf16> to vector<384x128xbf16>
      %c3_42 = arith.constant 3 : index
      %c0_43 = arith.constant 0 : index
      %c0_44 = arith.constant 0 : index
      %82 = vector.load %arg4[%c3_42, %c0_43, %c0_44] : memref<4x1x128xf32, #tpu.memory_space<vmem>>, vector<1x1x128xf32>
      %83 = vector.shape_cast %82 : vector<1x1x128xf32> to vector<1x128xf32>
      %cst_45 = arith.constant 0.000000e+00 : f32
      %84 = vector.broadcast %cst_45 : f32 to vector<1x128xf32>
      %85 = tpu.concatenate %84, %79, %84 in 0 : vector<1x128xf32>, vector<2x128xf32>, vector<1x128xf32> -> vector<4x128xf32>
      %86 = vector.extract_strided_slice %85 {offsets = [0, 0], sizes = [2, 128], strides = [1, 1]} : vector<4x128xf32> to vector<2x128xf32>
      %87 = vector.extract_strided_slice %85 {offsets = [1, 0], sizes = [2, 128], strides = [1, 1]} : vector<4x128xf32> to vector<2x128xf32>
      %88 = vector.extract_strided_slice %85 {offsets = [2, 0], sizes = [2, 128], strides = [1, 1]} : vector<4x128xf32> to vector<2x128xf32>
      %89 = tpu.concatenate %86, %87, %88 in 1 : vector<2x128xf32>, vector<2x128xf32>, vector<2x128xf32> -> vector<2x384xf32>
      %90 = arith.truncf %89 : vector<2x384xf32> to vector<2x384xbf16>
      %cst_46 = arith.constant dense<0.000000e+00> : vector<2x128xf32>
      %91 = tpu.matmul %90, %81, %cst_46 {dimension_numbers = #tpu.dot_dimension_numbers<[1], [0], [0], [1], [0, 0, 1, 1], [], []>} : vector<2x384xbf16>, vector<384x128xbf16>, vector<2x128xf32> -> vector<2x128xf32>
      %92 = vector.broadcast %83 : vector<1x128xf32> to vector<2x128xf32>
      %93 = arith.addf %91, %92 : vector<2x128xf32>
      %94 = arith.addf %60, %93 : vector<2x128xf32>
      %cst_47 = arith.constant 0.000000e+00 : f32
      %95 = vector.broadcast %cst_47 : f32 to vector<2x128xf32>
      %96 = arith.cmpf oge, %94, %95 : vector<2x128xf32>
      %cst_48 = arith.constant 1.000000e-01 : f32
      %97 = vector.broadcast %cst_48 : f32 to vector<2x128xf32>
      %98 = arith.mulf %97, %94 : vector<2x128xf32>
      %99 = arith.select %96, %94, %98 : vector<2x128xi1>, vector<2x128xf32>
      %100 = vector.shape_cast %99 : vector<2x128xf32> to vector<1x2x128xf32>
      %cst_49 = arith.constant dense<0xFF800000> : vector<1x128xf32>
      %101 = vector.multi_reduction <maximumf>, %100, %cst_49 [1] : vector<1x2x128xf32> to vector<1x128xf32>
      %102 = arith.addf %arg7, %101 : vector<1x128xf32>
      scf.yield %102 : vector<1x128xf32>
    }
    %c2_i32_0 = arith.constant 2 : i32
    %cst_1 = arith.constant 5.000000e-01 : f32
    %3 = vector.broadcast %cst_1 : f32 to vector<1x128xf32>
    %4 = arith.mulf %2, %3 : vector<1x128xf32>
    %c0 = arith.constant 0 : index
    %c0_2 = arith.constant 0 : index
    %5 = vector.load %arg5[%c0, %c0_2] : memref<1x128xf32, #tpu.memory_space<vmem>>, vector<1x128xf32>
    tpu.vector_store %arg5[%c0, %c0_2], %4 {strides = array<i32>} : memref<1x128xf32, #tpu.memory_space<vmem>>, vector<1x128xf32>,
    return
  }
}

module attributes {stable_mosaic.version = 11 : i64} {
  func.func @seg_attn_kernel(%arg0: i32, %arg1: memref<1x16xi32, #tpu.memory_space<vmem>>, %arg2: memref<16x128xbf16, #tpu.memory_space<vmem>>, %arg3: memref<128x256xbf16, #tpu.memory_space<vmem>>, %arg4: memref<8x128xbf16, #tpu.memory_space<vmem>>, %arg5: memref<8x128xf32, #tpu.memory_space<vmem>>) attributes {dimension_semantics = [#tpu.dimension_semantics<parallel>], iteration_bounds = array<i64: 1>, scalar_prefetch = 0 : i64, scratch_operands = 0 : i64, tpu.core_type = #tpu.core_type<tc>, window_params = [{pipeline_mode = #tpu.pipeline_mode<synchronous>, transform_indices = @transform_0, window_bounds = array<i64: 1, 16>}, {pipeline_mode = #tpu.pipeline_mode<synchronous>, transform_indices = @transform_1, window_bounds = array<i64: 16, 128>}, {pipeline_mode = #tpu.pipeline_mode<synchronous>, transform_indices = @transform_2, window_bounds = array<i64: 128, 256>}, {transform_indices = @transform_3, window_bounds = array<i64: 8, 128>}, {transform_indices = @transform_4, window_bounds = array<i64: 8, 128>}]} {
    %c0 = arith.constant 0 : index
    %c0_0 = arith.constant 0 : index
    %0 = vector.load %arg2[%c0, %c0_0] : memref<16x128xbf16, #tpu.memory_space<vmem>>, vector<16x128xbf16>
    %c0_1 = arith.constant 0 : index
    %c0_2 = arith.constant 0 : index
    %1 = vector.load %arg3[%c0_1, %c0_2] : memref<128x256xbf16, #tpu.memory_space<vmem>>, vector<128x256xbf16>
    %cst = arith.constant dense<0.000000e+00> : vector<16x256xf32>
    %2 = tpu.matmul %0, %1, %cst {dimension_numbers = #tpu.dot_dimension_numbers<[1], [0], [0], [1], [0, 0, 1, 1], [], []>} : vector<16x128xbf16>, vector<128x256xbf16>, vector<16x256xf32> -> vector<16x256xf32>
    %3 = vector.extract_strided_slice %2 {offsets = [0, 0], sizes = [16, 128], strides = [1, 1]} : vector<16x256xf32> to vector<16x128xf32>
    %4 = arith.truncf %3 : vector<16x128xf32> to vector<16x128xbf16>
    %5 = vector.extract_strided_slice %2 {offsets = [0, 128], sizes = [16, 128], strides = [1, 1]} : vector<16x256xf32> to vector<16x128xf32>
    %6 = arith.truncf %5 : vector<16x128xf32> to vector<16x128xbf16>
    %c0_3 = arith.constant 0 : index
    %c0_4 = arith.constant 0 : index
    %7 = vector.load %arg4[%c0_3, %c0_4] : memref<8x128xbf16, #tpu.memory_space<vmem>>, vector<8x128xbf16>
    %cst_5 = arith.constant dense<0.000000e+00> : vector<8x16xf32>
    %8 = tpu.matmul %7, %4, %cst_5 {dimension_numbers = #tpu.dot_dimension_numbers<[1], [1], [0], [0], [0, 0, 1, 0], [], []>} : vector<8x128xbf16>, vector<16x128xbf16>, vector<8x16xf32> -> vector<8x16xf32>
    %cst_6 = arith.constant 0.176776692 : f32
    %9 = vector.broadcast %cst_6 : f32 to vector<8x16xf32>
    %10 = arith.mulf %8, %9 : vector<8x16xf32>
    %c8_i32 = arith.constant 8 : i32
    %11 = arith.muli %arg0, %c8_i32 : i32
    %12 = tpu.iota {dimensions = array<i32: 0>} : vector<8x16xi32>
    %13 = vector.broadcast %11 : i32 to vector<8x16xi32>
    %14 = arith.addi %13, %12 : vector<8x16xi32>
    %c0_7 = arith.constant 0 : index
    %c0_8 = arith.constant 0 : index
    %15 = vector.load %arg1[%c0_7, %c0_8] : memref<1x16xi32, #tpu.memory_space<vmem>>, vector<1x16xi32>
    %16 = vector.broadcast %15 : vector<1x16xi32> to vector<8x16xi32>
    %17 = arith.cmpi eq, %16, %14 : vector<8x16xi32>
    %cst_9 = arith.constant -1.000000e+30 : f32
    %18 = vector.broadcast %cst_9 : f32 to vector<8x16xf32>
    %19 = arith.select %17, %10, %18 : vector<8x16xi1>, vector<8x16xf32>
    %cst_10 = arith.constant dense<0xFF800000> : vector<8xf32>
    %20 = vector.multi_reduction <maximumf>, %19, %cst_10 [1] : vector<8x16xf32> to vector<8xf32>
    %21 = vector.shape_cast %20 : vector<8xf32> to vector<8x1xf32>
    %22 = vector.broadcast %21 : vector<8x1xf32> to vector<8x16xf32>
    %23 = arith.subf %19, %22 : vector<8x16xf32>
    %24 = math.exp %23 : vector<8x16xf32>
    %cst_11 = arith.constant dense<0.000000e+00> : vector<8xf32>
    %25 = vector.multi_reduction <add>, %24, %cst_11 [1] : vector<8x16xf32> to vector<8xf32>
    %26 = vector.shape_cast %25 : vector<8xf32> to vector<8x1xf32>
    %27 = tpu.reciprocal %26 {approx = true} : vector<8x1xf32> -> vector<8x1xf32>
    %28 = vector.broadcast %27 : vector<8x1xf32> to vector<8x16xf32>
    %29 = arith.mulf %24, %28 : vector<8x16xf32>
    %30 = arith.truncf %29 : vector<8x16xf32> to vector<8x16xbf16>
    %cst_12 = arith.constant dense<0.000000e+00> : vector<8x128xf32>
    %31 = tpu.matmul %30, %6, %cst_12 {dimension_numbers = #tpu.dot_dimension_numbers<[1], [0], [0], [1], [0, 0, 1, 1], [], []>} : vector<8x16xbf16>, vector<16x128xbf16>, vector<8x128xf32> -> vector<8x128xf32>
    %c0_13 = arith.constant 0 : index
    %c0_14 = arith.constant 0 : index
    %32 = vector.load %arg5[%c0_13, %c0_14] : memref<8x128xf32, #tpu.memory_space<vmem>>, vector<8x128xf32>
    tpu.vector_store %arg5[%c0_13, %c0_14], %31 {strides = array<i32>} : memref<8x128xf32, #tpu.memory_space<vmem>>, vector<8x128xf32>,
    return
  }
  func.func @transform_0(%arg0: i32) -> (i32, i32) {
    %c0_i32 = arith.constant 0 : i32
    %c0_i32_0 = arith.constant 0 : i32
    %c0_i32_1 = arith.constant 0 : i32
    return %c0_i32, %c0_i32_0 : i32, i32
  }
  func.func @transform_1(%arg0: i32) -> (i32, i32) {
    %c0_i32 = arith.constant 0 : i32
    %c0_i32_0 = arith.constant 0 : i32
    %c0_i32_1 = arith.constant 0 : i32
    return %c0_i32, %c0_i32_0 : i32, i32
  }
  func.func @transform_2(%arg0: i32) -> (i32, i32) {
    %c0_i32 = arith.constant 0 : i32
    %c0_i32_0 = arith.constant 0 : i32
    %c0_i32_1 = arith.constant 0 : i32
    return %c0_i32, %c0_i32_0 : i32, i32
  }
  func.func @transform_3(%arg0: i32) -> (i32, i32) {
    %c0_i32 = arith.constant 0 : i32
    %c0_i32_0 = arith.constant 0 : i32
    return %arg0, %c0_i32 : i32, i32
  }
  func.func @transform_4(%arg0: i32) -> (i32, i32) {
    %c0_i32 = arith.constant 0 : i32
    %c0_i32_0 = arith.constant 0 : i32
    return %arg0, %c0_i32 : i32, i32
  }
}

</mosaic_0001>

<llo_original>
// kernel: device_forward.3
$region0: #{device_forward.3}
  #allocation0 [shape = 'u32[]', space=smem, size = 0x4, offset = 0x4, fixed_abs, tag = 'smem constant byte address 0x4 - core index']
  #allocation1 [shape = 'u32[144,128]{1,0:T(1,128)}', space=vmem, size = 0x12000, scoped, tag = 'internal scratch']
  %s0 = inlined_call_operand.vmem [shape: s32[1,16], index: 0, kind: input, shape index: {}]
  %s1 = inlined_call_operand.vmem [shape: bf16[16,128], index: 1, kind: input, shape index: {}]
  %s2 = inlined_call_operand.hbm [shape: bf16[128,256], index: 2, kind: input, shape index: {}]
  %s3 = inlined_call_operand.vmem [shape: bf16[8,128], index: 3, kind: input, shape index: {}]
  %s4 = inlined_call_operand.vmem [shape: f32[8,128], index: 4, kind: output, shape index: {}]
  %s5 = sld [smem:[#allocation0]]
  $region30: #{device_forward.3} parent=0
    _
  %s7 = ssub.s32 1, %s5
  %s8 = scalar_select 0, %s7, %s5
  $region1: #{device_forward.3} parent=0
    #allocation2 [shape = 'u8[65536]{0}', space=vmem, size = 0x10000, scoped, tag = 'input window, operand 2, single buffered']
    #allocation3 [shape = 's32[1]{0}', space=sflag, size = 0x4, scoped, tag = 'scoped memory for device_forward.3']
    %9 = vsyncpa [#allocation3], 0
    // Predicated region
    $region2: #{device_forward.3} parent=1 // pred_check
      _
    $region3: #{device_forward.3} parent=1 // pred_check_branch
      %11 = sbr.rel (0) target = $region5
    $region4: #{device_forward.3} parent=1 // pred_region
      _
    $region5: #{device_forward.3} parent=1 // pred_fallthru
      _
    // Predicated region
    $region6: #{device_forward.3} parent=1 // pred_check
      _
    $region7: #{device_forward.3} parent=1 // pred_check_branch
      %13 = sbr.rel (0) target = $region9
    $region8: #{device_forward.3} parent=1 // pred_region
      _
    $region9: #{device_forward.3} parent=1 // pred_fallthru
      _
    // Predicated region
    $region10: #{device_forward.3} parent=1 // pred_check
      _
    $region11: #{device_forward.3} parent=1 // pred_check_branch
      %15 = sbr.rel (0) target = $region13
    $region12: #{device_forward.3} parent=1 // pred_region
      %s17 = ssub.s32 2048, 2048
      %18 = vsyncadd [#allocation3], %s17
      %s19 = sshll.u32 [#allocation2], 4
      %s20 = int_to_ptr.vmem [resolvable:$true] %s19
      %25 = dma.hbm_to_vmem [thread:$0]  %s2, 2048, %s20, [#allocation3], 128, 128, 8
    $region13: #{device_forward.3} parent=1 // pred_fallthru
      _
    // Predicated region
    $region14: #{device_forward.3} parent=1 // pred_check
      _
    $region15: #{device_forward.3} parent=1 // pred_check_branch
      %27 = sbr.rel (0) target = $region17
    $region16: #{device_forward.3} parent=1 // pred_region
      _
    $region17: #{device_forward.3} parent=1 // pred_fallthru
      _
    // Predicated region
    $region18: #{device_forward.3} parent=1 // pred_check
      _
    $region19: #{device_forward.3} parent=1 // pred_check_branch
      %29 = sbr.rel (0) target = $region21
    $region20: #{device_forward.3} parent=1 // pred_region
      %30 = dma.done [#allocation3], 2048
    $region21: #{device_forward.3} parent=1 // pred_fallthru
      _
    %v32 = vld [vmem:[%s1] sm:$0xf]
    %v33 = vld [vmem:[%s1 + $0x4] sm:$0xf]
    %v34 = vld [vmem:[#allocation2] sm:$0xff]
    %v35 = vld [vmem:[#allocation2 + $0x8] sm:$0xff]
    %v36 = vld [vmem:[#allocation2 + $0x10] sm:$0xff]
    %v37 = vld [vmem:[#allocation2 + $0x18] sm:$0xff]
    %v38 = vld [vmem:[#allocation2 + $0x20] sm:$0xff]
    %v39 = vld [vmem:[#allocation2 + $0x28] sm:$0xff]
    %v40 = vld [vmem:[#allocation2 + $0x30] sm:$0xff]
    %v41 = vld [vmem:[#allocation2 + $0x38] sm:$0xff]
    %v42 = vld [vmem:[#allocation2 + $0x40] sm:$0xff]
    %v43 = vld [vmem:[#allocation2 + $0x48] sm:$0xff]
    %v44 = vld [vmem:[#allocation2 + $0x50] sm:$0xff]
    %v45 = vld [vmem:[#allocation2 + $0x58] sm:$0xff]
    %v46 = vld [vmem:[#allocation2 + $0x60] sm:$0xff]
    %v47 = vld [vmem:[#allocation2 + $0x68] sm:$0xff]
    %v48 = vld [vmem:[#allocation2 + $0x70] sm:$0xff]
    %v49 = vld [vmem:[#allocation2 + $0x78] sm:$0xff]
    %v52 = vunpack.c.l.b16 %v32
    %v53 = vunpack.c.l.b16 %v33
    %v54 = vpack.c.b16 %v53, %v52
    %v72 = vunpack.c.l.b16 %v34
    %v73 = vunpack.c.h.b16 %v34
    %v74 = vunpack.c.l.b16 %v35
    %v75 = vunpack.c.h.b16 %v35
    %v76 = vunpack.c.l.b16 %v36
    %v77 = vunpack.c.h.b16 %v36
    %v78 = vunpack.c.l.b16 %v37
    %v79 = vunpack.c.h.b16 %v37
    %v80 = vunpack.c.l.b16 %v38
    %v81 = vunpack.c.h.b16 %v38
    %v82 = vunpack.c.l.b16 %v39
    %v83 = vunpack.c.h.b16 %v39
    %v84 = vunpack.c.l.b16 %v40
    %v85 = vunpack.c.h.b16 %v40
    %v86 = vunpack.c.l.b16 %v41
    %v87 = vunpack.c.h.b16 %v41
    %v88 = vunpack.c.l.b16 %v42
    %v89 = vunpack.c.h.b16 %v42
    %v90 = vunpack.c.l.b16 %v43
    %v91 = vunpack.c.h.b16 %v43
    %v92 = vunpack.c.l.b16 %v44
    %v93 = vunpack.c.h.b16 %v44
    %v94 = vunpack.c.l.b16 %v45
    %v95 = vunpack.c.h.b16 %v45
    %v96 = vunpack.c.l.b16 %v46
    %v97 = vunpack.c.h.b16 %v46
    %v98 = vunpack.c.l.b16 %v47
    %v99 = vunpack.c.h.b16 %v47
    %v100 = vunpack.c.l.b16 %v48
    %v101 = vunpack.c.h.b16 %v48
    %v102 = vunpack.c.l.b16 %v49
    %v103 = vunpack.c.h.b16 %v49
    %v104 = vpack.c.b16 %v74, %v72
    %v105 = vpack.c.b16 %v75, %v73
    %v106 = vpack.c.b16 %v78, %v76
    %v107 = vpack.c.b16 %v79, %v77
    %v108 = vpack.c.b16 %v82, %v80
    %v109 = vpack.c.b16 %v83, %v81
    %v110 = vpack.c.b16 %v86, %v84
    %v111 = vpack.c.b16 %v87, %v85
    %v112 = vpack.c.b16 %v90, %v88
    %v113 = vpack.c.b16 %v91, %v89
    %v114 = vpack.c.b16 %v94, %v92
    %v115 = vpack.c.b16 %v95, %v93
    %v116 = vpack.c.b16 %v98, %v96
    %v117 = vpack.c.b16 %v99, %v97
    %v118 = vpack.c.b16 %v102, %v100
    %v119 = vpack.c.b16 %v103, %v101
    %136 = vmatprep.subr.bf16.mxu0 %v119
    %137 = vmatpush1.bf16.msra.mxu0 %v118
    %138 = vmatprep.subr.bf16.mxu0 %v117
    %139 = vmatpush1.bf16.msra.mxu0 %v116
    %140 = vmatprep.subr.bf16.mxu0 %v115
    %141 = vmatpush1.bf16.msra.mxu0 %v114
    %142 = vmatprep.subr.bf16.mxu0 %v113
    %143 = vmatpush1.bf16.msra.mxu0 %v112
    %144 = vmatprep.subr.bf16.mxu0 %v111
    %145 = vmatpush1.bf16.msra.mxu0 %v110
    %146 = vmatprep.subr.bf16.mxu0 %v109
    %147 = vmatpush1.bf16.msra.mxu0 %v108
    %148 = vmatprep.subr.bf16.mxu0 %v107
    %149 = vmatpush1.bf16.msra.mxu0 %v106
    %150 = vmatprep.subr.bf16.mxu0 %v105
    %151 = vmatpush1.bf16.msra.mxu0 %v104
    %152 = vmatprep.subr.bf16.mxu0 0
    %153 = vmatpush2.bf16.msra.mxu0 0
    %154 = vmatprep.subr.bf16.mxu0 0
    %155 = vmatpush2.bf16.msra.mxu0 0
    %156 = vmatprep.subr.bf16.mxu0 0
    %157 = vmatpush2.bf16.msra.mxu0 0
    %158 = vmatprep.subr.bf16.mxu0 0
    %159 = vmatpush2.bf16.msra.mxu0 0
    %160 = vmatprep.subr.bf16.mxu0 0
    %161 = vmatpush2.bf16.msra.mxu0 0
    %162 = vmatprep.subr.bf16.mxu0 0
    %163 = vmatpush2.bf16.msra.mxu0 0
    %164 = vmatprep.subr.bf16.mxu0 0
    %165 = vmatpush2.bf16.msra.mxu0 0
    %166 = vmatprep.subr.bf16.mxu0 0
    %167 = vmatpush2.bf16.msra.mxu0 0
    %168 = vmatprep.mubr.bf16.mxu0 0
    %169 = vmatmul.mubr.bf16.gmra.mxu0 %v54
    %v170 = vpop.f32.mrf.mxu0
    %v171 = vadd.f32 0.0, %v170
    %v172 = vpop.f32.mrf.mxu0
    %v173 = vadd.f32 0.0, %v172
    %v174 = vpop.f32.mrf.mxu0
    %v175 = vadd.f32 0.0, %v174
    %v176 = vpop.f32.mrf.mxu0
    %v177 = vadd.f32 0.0, %v176
    %178 = vdwg.mxu0
    %v179 = vpack.c.bf16 %v175, %v171
    %v180 = vpack.c.bf16 %v177, %v173
    %v181 = vld [vmem:[%s3] sm:$0xf]
    %182 = vmatprep.subr.bf16.mxu0 0
    %183 = vmatpush1.bf16.xpose.msra.mxu0 0
    %184 = vmatprep.subr.bf16.mxu0 0
    %185 = vmatpush1.bf16.xpose.msra.mxu0 0
    %186 = vmatprep.subr.bf16.mxu0 0
    %187 = vmatpush1.bf16.xpose.msra.mxu0 0
    %188 = vmatprep.subr.bf16.mxu0 0
    %189 = vmatpush1.bf16.xpose.msra.mxu0 0
    %190 = vmatprep.subr.bf16.mxu0 0
    %191 = vmatpush1.bf16.xpose.msra.mxu0 0
    %192 = vmatprep.subr.bf16.mxu0 0
    %193 = vmatpush1.bf16.xpose.msra.mxu0 0
    %194 = vmatprep.subr.bf16.mxu0 0
    %195 = vmatpush1.bf16.xpose.msra.mxu0 0
    %196 = vmatprep.subr.bf16.mxu0 0
    %197 = vmatpush1.bf16.xpose.msra.mxu0 %v179
    %198 = vmatprep.subr.bf16.mxu0 0
    %199 = vmatpush2.bf16.xpose.msra.mxu0 0
    %200 = vmatprep.subr.bf16.mxu0 0
    %201 = vmatpush2.bf16.xpose.msra.mxu0 0
    %202 = vmatprep.subr.bf16.mxu0 0
    %203 = vmatpush2.bf16.xpose.msra.mxu0 0
    %204 = vmatprep.subr.bf16.mxu0 0
    %205 = vmatpush2.bf16.xpose.msra.mxu0 0
    %206 = vmatprep.subr.bf16.mxu0 0
    %207 = vmatpush2.bf16.xpose.msra.mxu0 0
    %208 = vmatprep.subr.bf16.mxu0 0
    %209 = vmatpush2.bf16.xpose.msra.mxu0 0
    %210 = vmatprep.subr.bf16.mxu0 0
    %211 = vmatpush2.bf16.xpose.msra.mxu0 0
    %212 = vmatprep.subr.bf16.mxu0 0
    %213 = vmatpush2.bf16.xpose.msra.mxu0 0
    %214 = vmatprep.mubr.bf16.mxu0 0
    %215 = vmatmul.mubr.bf16.gmra.mxu0 %v181
    %v216 = vpop.f32.mrf.mxu0
    %v217 = vadd.f32 0.0, %v216
    %v218 = vpop.f32.mrf.mxu0
    %v219 = vpop.f32.mrf.mxu0
    %v220 = vpop.f32.mrf.mxu0
    %221 = vdwg.mxu0
    %v222 = vmul.f32 %v217, 0.17677669
    %s223 = smul.u32 0, 8
    %v224 = vlaneseq
    %v225 = vshrl.u32 %v224, 7
    %v226 = vstv %s223
    %v227 = vadd.s32 %v226, %v225
    %v228 = vld [vmem:[%s0] sm:$0x1]
    %v229 = vlaneseq
    %v230 = vshrl.u32 %v229, 7
    %v231 = vsub.s32 0, %v230
    %v232 = vrot.slane %v228, %v231
    %vm233 = vcmp.eq.s32.totalorder %v232, %v227
    %v234 = vsel %vm233, %v222, -1e+30
    %vm235 = vcmask 130048
    %v236 = vsel %vm235, %v234, -inf
    %237 = vmax.xlane.f32.xlu0 %v236
    %v238 = vpop.xlane.xlu0 %237
    %v239 = vsub.f32 %v234, %v238
    %v240 = vmul.f32 %v239, 1.442695
    %v241 = vpow.pop %v240
    %v242 = vsel %vm235, %v241, 0.0
    %243 = vadd.xlane.f32.xlu0 %v242
    %v244 = vpop.xlane.xlu0 %243
    %v245 = vrcp.pop %v244
    %v246 = vmul.f32 %v241, %v245
    %v247 = vpack.c.bf16 %v246, %v246
    %v249 = vsel %vm235, %v247, 0
    %251 = vmatprep.subr.bf16.mxu0 0
    %252 = vmatpush1.bf16.msra.mxu0 0
    %253 = vmatprep.subr.bf16.mxu0 0
    %254 = vmatpush1.bf16.msra.mxu0 0
    %255 = vmatprep.subr.bf16.mxu0 0
    %256 = vmatpush1.bf16.msra.mxu0 0
    %257 = vmatprep.subr.bf16.mxu0 0
    %258 = vmatpush1.bf16.msra.mxu0 0
    %259 = vmatprep.subr.bf16.mxu0 0
    %260 = vmatpush1.bf16.msra.mxu0 0
    %261 = vmatprep.subr.bf16.mxu0 0
    %262 = vmatpush1.bf16.msra.mxu0 0
    %263 = vmatprep.subr.bf16.mxu0 0
    %264 = vmatpush1.bf16.msra.mxu0 0
    %265 = vmatprep.subr.bf16.mxu0 0
    %266 = vmatpush1.bf16.msra.mxu0 %v180
    %267 = vmatprep.subr.bf16.mxu0 0
    %268 = vmatpush2.bf16.msra.mxu0 0
    %269 = vmatprep.subr.bf16.mxu0 0
    %270 = vmatpush2.bf16.msra.mxu0 0
    %271 = vmatprep.subr.bf16.mxu0 0
    %272 = vmatpush2.bf16.msra.mxu0 0
    %273 = vmatprep.subr.bf16.mxu0 0
    %274 = vmatpush2.bf16.msra.mxu0 0
    %275 = vmatprep.subr.bf16.mxu0 0
    %276 = vmatpush2.bf16.msra.mxu0 0
    %277 = vmatprep.subr.bf16.mxu0 0
    %278 = vmatpush2.bf16.msra.mxu0 0
    %279 = vmatprep.subr.bf16.mxu0 0
    %280 = vmatpush2.bf16.msra.mxu0 0
    %281 = vmatprep.subr.bf16.mxu0 0
    %282 = vmatpush2.bf16.msra.mxu0 0
    %283 = vmatprep.mubr.bf16.mxu0 0
    %284 = vmatmul.mubr.bf16.gmra.mxu0 %v249
    %v285 = vpop.f32.mrf.mxu0
    %v286 = vadd.f32 0.0, %v285
    %v287 = vpop.f32.mrf.mxu0
    %v288 = vpop.f32.mrf.mxu0
    %v289 = vpop.f32.mrf.mxu0
    %290 = vdwg.mxu0
    %291 = vst [vmem:[%s4] sm:$0xff] %v286
    // Predicated region
    $region22: #{device_forward.3} parent=1 // pred_check
      _
    $region23: #{device_forward.3} parent=1 // pred_check_branch
      %293 = sbr.rel (0) target = $region25
    $region24: #{device_forward.3} parent=1 // pred_region
      _
    $region25: #{device_forward.3} parent=1 // pred_fallthru
      _
    // Predicated region
    $region26: #{device_forward.3} parent=1 // pred_check
      _
    $region27: #{device_forward.3} parent=1 // pred_check_branch
      %295 = sbr.rel (0) target = $region29
    $region28: #{device_forward.3} parent=1 // pred_region
      _
    $region29: #{device_forward.3} parent=1 // pred_fallthru
      _
    %296 = vsyncpa [#allocation3], 1

// kernel: device_forward.4
$region0: #{device_forward.4}
  #allocation0 [shape = 'u32[]', space=smem, size = 0x4, offset = 0x4, fixed_abs, tag = 'smem constant byte address 0x4 - core index']
  #allocation1 [shape = 'u32[144,128]{1,0:T(1,128)}', space=vmem, size = 0x12000, scoped, tag = 'internal scratch']
  %s0 = inlined_call_operand.vmem [shape: bf16[2,4,256], index: 0, kind: input, shape index: {}]
  %s1 = inlined_call_operand.vmem [shape: bf16[768,128], index: 1, kind: input, shape index: {}]
  %s2 = inlined_call_operand.hbm [shape: f32[1,128], index: 2, kind: input, shape index: {}]
  %s3 = inlined_call_operand.hbm [shape: bf16[4,384,128], index: 3, kind: input, shape index: {}]
  %s4 = inlined_call_operand.hbm [shape: f32[4,1,128], index: 4, kind: input, shape index: {}]
  %s5 = inlined_call_operand.vmem [shape: f32[1,128], index: 5, kind: output, shape index: {}]
  %s6 = sld [smem:[#allocation0]]
  $region49: #{device_forward.4} parent=0
    _
  %s8 = ssub.s32 1, %s6
  %s9 = scalar_select 0, %s8, %s6
  $region1: #{device_forward.4} parent=0
    #allocation2 [shape = 'u8[512]{0}', space=vmem, size = 0x400, scoped, tag = 'input window, operand 2, single buffered']
    #allocation3 [shape = 's32[1]{0}', space=sflag, size = 0x4, scoped, tag = 'scoped memory for device_forward.4']
    #allocation4 [shape = 'u8[393216]{0}', space=vmem, size = 0x60000, scoped, tag = 'input window, operand 3, single buffered']
    #allocation5 [shape = 's32[1]{0}', space=sflag, size = 0x4, scoped, tag = 'scoped memory for device_forward.4']
    #allocation6 [shape = 'u8[2048]{0}', space=vmem, size = 0x800, scoped, tag = 'input window, operand 4, single buffered']
    %10 = vsyncpa [#allocation3], 0
    %11 = vsyncpa [#allocation5], 0
    // Predicated region
    $region2: #{device_forward.4} parent=1 // pred_check
      _
    $region3: #{device_forward.4} parent=1 // pred_check_branch
      %13 = sbr.rel (0) target = $region5
    $region4: #{device_forward.4} parent=1 // pred_region
      _
    $region5: #{device_forward.4} parent=1 // pred_fallthru
      _
    // Predicated region
    $region6: #{device_forward.4} parent=1 // pred_check
      _
    $region7: #{device_forward.4} parent=1 // pred_check_branch
      %15 = sbr.rel (0) target = $region9
    $region8: #{device_forward.4} parent=1 // pred_region
      _
    $region9: #{device_forward.4} parent=1 // pred_fallthru
      _
    // Predicated region
    $region10: #{device_forward.4} parent=1 // pred_check
      _
    $region11: #{device_forward.4} parent=1 // pred_check_branch
      %17 = sbr.rel (0) target = $region13
    $region12: #{device_forward.4} parent=1 // pred_region
      %s19 = ssub.s32 16, 16
      %20 = vsyncadd [#allocation3], %s19
      %s22 = sshll.u32 [#allocation2], 4
      %s23 = int_to_ptr.vmem [resolvable:$true] %s22
      %25 = dma.hbm_to_vmem [thread:$0]  %s2, 16, %s23, [#allocation3]
    $region13: #{device_forward.4} parent=1 // pred_fallthru
      _
    // Predicated region
    $region14: #{device_forward.4} parent=1 // pred_check
      _
    $region15: #{device_forward.4} parent=1 // pred_check_branch
      %27 = sbr.rel (0) target = $region17
    $region16: #{device_forward.4} parent=1 // pred_region
      %s29 = ssub.s32 12288, 12288
      %30 = vsyncadd [#allocation5], %s29
      %s31 = sshll.u32 [#allocation4], 4
      %s32 = int_to_ptr.vmem [resolvable:$true] %s31
      %37 = dma.hbm_to_vmem [thread:$0]  %s3, 12288, %s32, [#allocation5], 64, 64, 4
    $region17: #{device_forward.4} parent=1 // pred_fallthru
      _
    // Predicated region
    $region18: #{device_forward.4} parent=1 // pred_check
      _
    $region19: #{device_forward.4} parent=1 // pred_check_branch
      %39 = sbr.rel (0) target = $region21
    $region20: #{device_forward.4} parent=1 // pred_region
      %s41 = ssub.s32 64, 64
      %42 = vsyncadd [#allocation5], %s41
      %s43 = sshll.u32 [#allocation6], 4
      %s44 = int_to_ptr.vmem [resolvable:$true] %s43
      %49 = dma.hbm_to_vmem [thread:$0]  %s4, 64, %s44, [#allocation5], 16, 16, 1
    $region21: #{device_forward.4} parent=1 // pred_fallthru
      _
    // Predicated region
    $region22: #{device_forward.4} parent=1 // pred_check
      _
    $region23: #{device_forward.4} parent=1 // pred_check_branch
      %51 = sbr.rel (0) target = $region25
    $region24: #{device_forward.4} parent=1 // pred_region
      %52 = dma.done [#allocation3], 16
    $region25: #{device_forward.4} parent=1 // pred_fallthru
      _
    // Predicated region
    $region26: #{device_forward.4} parent=1 // pred_check
      _
    $region27: #{device_forward.4} parent=1 // pred_check_branch
      %54 = sbr.rel (0) target = $region29
    $region28: #{device_forward.4} parent=1 // pred_region
      %55 = dma.done [#allocation5], 12288
    $region29: #{device_forward.4} parent=1 // pred_fallthru
      _
    // Predicated region
    $region30: #{device_forward.4} parent=1 // pred_check
      _
    $region31: #{device_forward.4} parent=1 // pred_check_branch
      %57 = sbr.rel (0) target = $region33
    $region32: #{device_forward.4} parent=1 // pred_region
      %58 = dma.done [#allocation5], 64
    $region33: #{device_forward.4} parent=1 // pred_fallthru
      _
    loop: start=0, step=1, limit=2
    $region34: #{device_forward.4} parent=1 // loop_pre_header
      _
    $region35: #{device_forward.4} parent=1 // loop_header
      %s61 = sphi 0, %s65
      %p62 = scmp.ge.s32.totalorder %s61, 2
      %v66 = vphi 0.0, %v1869
    $region36: #{device_forward.4} parent=1 // loop_header_branch
      %64 = sbr.rel (%p62) target = $region40
    $region37: #{device_forward.4} parent=1 // loop_body
      %s67 = smul.u32 %s61, 2
      %s68 = smul.addr %s67, 2
      %s69 = scalar_lea.vmem %s0, %s68
      %v70 = vld [vmem:[%s69] sm:$0xf]
      %v71 = vld [vmem:[%s1] sm:$0xf]
      %v72 = vld [vmem:[%s1 + $0x4] sm:$0xf]
      %v73 = vld [vmem:[%s1 + $0x8] sm:$0xf]
      %v74 = vld [vmem:[%s1 + $0xc] sm:$0xf]
      %v75 = vld [vmem:[%s1 + $0x10] sm:$0xf]
      %v76 = vld [vmem:[%s1 + $0x14] sm:$0xf]
      %v77 = vld [vmem:[%s1 + $0x18] sm:$0xf]
      %v78 = vld [vmem:[%s1 + $0x1c] sm:$0xf]
      %v79 = vld [vmem:[%s1 + $0x20] sm:$0xf]
      %v80 = vld [vmem:[%s1 + $0x24] sm:$0xf]
      %v81 = vld [vmem:[%s1 + $0x28] sm:$0xf]
      %v82 = vld [vmem:[%s1 + $0x2c] sm:$0xf]
      %v83 = vld [vmem:[%s1 + $0x30] sm:$0xf]
      %v84 = vld [vmem:[%s1 + $0x34] sm:$0xf]
      %v85 = vld [vmem:[%s1 + $0x38] sm:$0xf]
      %v86 = vld [vmem:[%s1 + $0x3c] sm:$0xf]
      %v87 = vld [vmem:[%s1 + $0x40] sm:$0xf]
      %v88 = vld [vmem:[%s1 + $0x44] sm:$0xf]
      %v89 = vld [vmem:[%s1 + $0x48] sm:$0xf]
      %v90 = vld [vmem:[%s1 + $0x4c] sm:$0xf]
      %v91 = vld [vmem:[%s1 + $0x50] sm:$0xf]
      %v92 = vld [vmem:[%s1 + $0x54] sm:$0xf]
      %v93 = vld [vmem:[%s1 + $0x58] sm:$0xf]
      %v94 = vld [vmem:[%s1 + $0x5c] sm:$0xf]
      %v95 = vld [vmem:[%s1 + $0x60] sm:$0xf]
      %v96 = vld [vmem:[%s1 + $0x64] sm:$0xf]
      %v97 = vld [vmem:[%s1 + $0x68] sm:$0xf]
      %v98 = vld [vmem:[%s1 + $0x6c] sm:$0xf]
      %v99 = vld [vmem:[%s1 + $0x70] sm:$0xf]
      %v100 = vld [vmem:[%s1 + $0x74] sm:$0xf]
      %v101 = vld [vmem:[%s1 + $0x78] sm:$0xf]
      %v102 = vld [vmem:[%s1 + $0x7c] sm:$0xf]
      %v103 = vld [vmem:[%s1 + $0x80] sm:$0xf]
      %v104 = vld [vmem:[%s1 + $0x84] sm:$0xf]
      %v105 = vld [vmem:[%s1 + $0x88] sm:$0xf]
      %v106 = vld [vmem:[%s1 + $0x8c] sm:$0xf]
      %v107 = vld [vmem:[%s1 + $0x90] sm:$0xf]
      %v108 = vld [vmem:[%s1 + $0x94] sm:$0xf]
      %v109 = vld [vmem:[%s1 + $0x98] sm:$0xf]
      %v110 = vld [vmem:[%s1 + $0x9c] sm:$0xf]
      %v111 = vld [vmem:[%s1 + $0xa0] sm:$0xf]
      %v112 = vld [vmem:[%s1 + $0xa4] sm:$0xf]
      %v113 = vld [vmem:[%s1 + $0xa8] sm:$0xf]
      %v114 = vld [vmem:[%s1 + $0xac] sm:$0xf]
      %v115 = vld [vmem:[%s1 + $0xb0] sm:$0xf]
      %v116 = vld [vmem:[%s1 + $0xb4] sm:$0xf]
      %v117 = vld [vmem:[%s1 + $0xb8] sm:$0xf]
      %v118 = vld [vmem:[%s1 + $0xbc] sm:$0xf]
      %v119 = vld [vmem:[%s1 + $0xc0] sm:$0xf]
      %v120 = vld [vmem:[%s1 + $0xc4] sm:$0xf]
      %v121 = vld [vmem:[%s1 + $0xc8] sm:$0xf]
      %v122 = vld [vmem:[%s1 + $0xcc] sm:$0xf]
      %v123 = vld [vmem:[%s1 + $0xd0] sm:$0xf]
      %v124 = vld [vmem:[%s1 + $0xd4] sm:$0xf]
      %v125 = vld [vmem:[%s1 + $0xd8] sm:$0xf]
      %v126 = vld [vmem:[%s1 + $0xdc] sm:$0xf]
      %v127 = vld [vmem:[%s1 + $0xe0] sm:$0xf]
      %v128 = vld [vmem:[%s1 + $0xe4] sm:$0xf]
      %v129 = vld [vmem:[%s1 + $0xe8] sm:$0xf]
      %v130 = vld [vmem:[%s1 + $0xec] sm:$0xf]
      %v131 = vld [vmem:[%s1 + $0xf0] sm:$0xf]
      %v132 = vld [vmem:[%s1 + $0xf4] sm:$0xf]
      %v133 = vld [vmem:[%s1 + $0xf8] sm:$0xf]
      %v134 = vld [vmem:[%s1 + $0xfc] sm:$0xf]
      %v135 = vld [vmem:[%s1 + $0x100] sm:$0xf]
      %v136 = vld [vmem:[%s1 + $0x104] sm:$0xf]
      %v137 = vld [vmem:[%s1 + $0x108] sm:$0xf]
      %v138 = vld [vmem:[%s1 + $0x10c] sm:$0xf]
      %v139 = vld [vmem:[%s1 + $0x110] sm:$0xf]
      %v140 = vld [vmem:[%s1 + $0x114] sm:$0xf]
      %v141 = vld [vmem:[%s1 + $0x118] sm:$0xf]
      %v142 = vld [vmem:[%s1 + $0x11c] sm:$0xf]
      %v143 = vld [vmem:[%s1 + $0x120] sm:$0xf]
      %v144 = vld [vmem:[%s1 + $0x124] sm:$0xf]
      %v145 = vld [vmem:[%s1 + $0x128] sm:$0xf]
      %v146 = vld [vmem:[%s1 + $0x12c] sm:$0xf]
      %v147 = vld [vmem:[%s1 + $0x130] sm:$0xf]
      %v148 = vld [vmem:[%s1 + $0x134] sm:$0xf]
      %v149 = vld [vmem:[%s1 + $0x138] sm:$0xf]
      %v150 = vld [vmem:[%s1 + $0x13c] sm:$0xf]
      %v151 = vld [vmem:[%s1 + $0x140] sm:$0xf]
      %v152 = vld [vmem:[%s1 + $0x144] sm:$0xf]
      %v153 = vld [vmem:[%s1 + $0x148] sm:$0xf]
      %v154 = vld [vmem:[%s1 + $0x14c] sm:$0xf]
      %v155 = vld [vmem:[%s1 + $0x150] sm:$0xf]
      %v156 = vld [vmem:[%s1 + $0x154] sm:$0xf]
      %v157 = vld [vmem:[%s1 + $0x158] sm:$0xf]
      %v158 = vld [vmem:[%s1 + $0x15c] sm:$0xf]
      %v159 = vld [vmem:[%s1 + $0x160] sm:$0xf]
      %v160 = vld [vmem:[%s1 + $0x164] sm:$0xf]
      %v161 = vld [vmem:[%s1 + $0x168] sm:$0xf]
      %v162 = vld [vmem:[%s1 + $0x16c] sm:$0xf]
      %v163 = vld [vmem:[%s1 + $0x170] sm:$0xf]
      %v164 = vld [vmem:[%s1 + $0x174] sm:$0xf]
      %v165 = vld [vmem:[%s1 + $0x178] sm:$0xf]
      %v166 = vld [vmem:[%s1 + $0x17c] sm:$0xf]
      %v167 = vld [vmem:[#allocation2] sm:$0x1]
      %v170 = vunpack.c.l.s4 1983009808
      %v171 = vunpack.c.0.s8 %v170
      %v172 = vlaneseq
      %v173 = vshrl.u32 %v172, 7
      %v174 = vsub.s32 %v171, %v173
      %v175 = vrot.slane %v70, %v174
      %v176 = vcombine.high %v175, %v175
      %v178 = vshrl.u32 %v175, 16
      %v180 = vrot.slane %v178, 7
      %v181 = vshll.u32 %v175, 16
      %v183 = vor.u32 %v180, %v181
      %v185 = vshrl.u32 %v176, 16
      %v187 = vrot.slane %v185, 7
      %v188 = vshll.u32 %v176, 16
      %v190 = vor.u32 %v187, %v188
      %vm193 = vcmask 1040384
      %vm194 = vsmask.f32 256
      %vm195 = vmand %vm193, %vm194
      %v196 = vsel %vm195, 0, %v183
      %v197 = vsel %vm195, 0, %v190
      %vm198 = vcmask 1042432
      %vm199 = vsmask.f32 2304
      %vm200 = vmand %vm198, %vm199
      %v201 = vsel %vm200, %v196, 0
      %v202 = vsel %vm200, %v197, 0
      %v204 = vshrl.u32 %v201, 16
      %v206 = vshll.u32 %v201, 16
      %v208 = vrot.slane %v206, 1
      %v209 = vor.u32 %v204, %v208
      %v211 = vshrl.u32 %v202, 16
      %v213 = vshll.u32 %v202, 16
      %v215 = vrot.slane %v213, 1
      %v216 = vor.u32 %v211, %v215
      %v221 = vrot.slane %v201, 1
      %v222 = vrot.slane %v202, 1
      %v226 = vlaneseq
      %v227 = vshrl.u32 %v226, 7
      %v228 = vsub.s32 0, %v227
      %v229 = vrot.slane %v167, %v228
      %v327 = vunpack.c.l.b16 %v71
      %v328 = vunpack.c.l.b16 %v72
      %v329 = vunpack.c.l.b16 %v73
      %v330 = vunpack.c.l.b16 %v74
      %v331 = vunpack.c.l.b16 %v75
      %v332 = vunpack.c.l.b16 %v76
      %v333 = vunpack.c.l.b16 %v77
      %v334 = vunpack.c.l.b16 %v78
      %v335 = vunpack.c.l.b16 %v79
      %v336 = vunpack.c.l.b16 %v80
      %v337 = vunpack.c.l.b16 %v81
      %v338 = vunpack.c.l.b16 %v82
      %v339 = vunpack.c.l.b16 %v83
      %v340 = vunpack.c.l.b16 %v84
      %v341 = vunpack.c.l.b16 %v85
      %v342 = vunpack.c.l.b16 %v86
      %v343 = vunpack.c.l.b16 %v87
      %v344 = vunpack.c.l.b16 %v88
      %v345 = vunpack.c.l.b16 %v89
      %v346 = vunpack.c.l.b16 %v90
      %v347 = vunpack.c.l.b16 %v91
      %v348 = vunpack.c.l.b16 %v92
      %v349 = vunpack.c.l.b16 %v93
      %v350 = vunpack.c.l.b16 %v94
      %v351 = vunpack.c.l.b16 %v95
      %v352 = vunpack.c.l.b16 %v96
      %v353 = vunpack.c.l.b16 %v97
      %v354 = vunpack.c.l.b16 %v98
      %v355 = vunpack.c.l.b16 %v99
      %v356 = vunpack.c.l.b16 %v100
      %v357 = vunpack.c.l.b16 %v101
      %v358 = vunpack.c.l.b16 %v102
      %v359 = vunpack.c.l.b16 %v103
      %v360 = vunpack.c.l.b16 %v104
      %v361 = vunpack.c.l.b16 %v105
      %v362 = vunpack.c.l.b16 %v106
      %v363 = vunpack.c.l.b16 %v107
      %v364 = vunpack.c.l.b16 %v108
      %v365 = vunpack.c.l.b16 %v109
      %v366 = vunpack.c.l.b16 %v110
      %v367 = vunpack.c.l.b16 %v111
      %v368 = vunpack.c.l.b16 %v112
      %v369 = vunpack.c.l.b16 %v113
      %v370 = vunpack.c.l.b16 %v114
      %v371 = vunpack.c.l.b16 %v115
      %v372 = vunpack.c.l.b16 %v116
      %v373 = vunpack.c.l.b16 %v117
      %v374 = vunpack.c.l.b16 %v118
      %v375 = vunpack.c.l.b16 %v119
      %v376 = vunpack.c.l.b16 %v120
      %v377 = vunpack.c.l.b16 %v121
      %v378 = vunpack.c.l.b16 %v122
      %v379 = vunpack.c.l.b16 %v123
      %v380 = vunpack.c.l.b16 %v124
      %v381 = vunpack.c.l.b16 %v125
      %v382 = vunpack.c.l.b16 %v126
      %v383 = vunpack.c.l.b16 %v127
      %v384 = vunpack.c.l.b16 %v128
      %v385 = vunpack.c.l.b16 %v129
      %v386 = vunpack.c.l.b16 %v130
      %v387 = vunpack.c.l.b16 %v131
      %v388 = vunpack.c.l.b16 %v132
      %v389 = vunpack.c.l.b16 %v133
      %v390 = vunpack.c.l.b16 %v134
      %v391 = vunpack.c.l.b16 %v135
      %v392 = vunpack.c.l.b16 %v136
      %v393 = vunpack.c.l.b16 %v137
      %v394 = vunpack.c.l.b16 %v138
      %v395 = vunpack.c.l.b16 %v139
      %v396 = vunpack.c.l.b16 %v140
      %v397 = vunpack.c.l.b16 %v141
      %v398 = vunpack.c.l.b16 %v142
      %v399 = vunpack.c.l.b16 %v143
      %v400 = vunpack.c.l.b16 %v144
      %v401 = vunpack.c.l.b16 %v145
      %v402 = vunpack.c.l.b16 %v146
      %v403 = vunpack.c.l.b16 %v147
      %v404 = vunpack.c.l.b16 %v148
      %v405 = vunpack.c.l.b16 %v149
      %v406 = vunpack.c.l.b16 %v150
      %v407 = vunpack.c.l.b16 %v151
      %v408 = vunpack.c.l.b16 %v152
      %v409 = vunpack.c.l.b16 %v153
      %v410 = vunpack.c.l.b16 %v154
      %v411 = vunpack.c.l.b16 %v155
      %v412 = vunpack.c.l.b16 %v156
      %v413 = vunpack.c.l.b16 %v157
      %v414 = vunpack.c.l.b16 %v158
      %v415 = vunpack.c.l.b16 %v159
      %v416 = vunpack.c.l.b16 %v160
      %v417 = vunpack.c.l.b16 %v161
      %v418 = vunpack.c.l.b16 %v162
      %v419 = vunpack.c.l.b16 %v163
      %v420 = vunpack.c.l.b16 %v164
      %v421 = vunpack.c.l.b16 %v165
      %v422 = vunpack.c.l.b16 %v166
      %v423 = vpack.c.b16 %v328, %v327
      %v424 = vpack.c.b16 %v330, %v329
      %v425 = vpack.c.b16 %v332, %v331
      %v426 = vpack.c.b16 %v334, %v333
      %v427 = vpack.c.b16 %v336, %v335
      %v428 = vpack.c.b16 %v338, %v337
      %v429 = vpack.c.b16 %v340, %v339
      %v430 = vpack.c.b16 %v342, %v341
      %v431 = vpack.c.b16 %v344, %v343
      %v432 = vpack.c.b16 %v346, %v345
      %v433 = vpack.c.b16 %v348, %v347
      %v434 = vpack.c.b16 %v350, %v349
      %v435 = vpack.c.b16 %v352, %v351
      %v436 = vpack.c.b16 %v354, %v353
      %v437 = vpack.c.b16 %v356, %v355
      %v438 = vpack.c.b16 %v358, %v357
      %v439 = vpack.c.b16 %v360, %v359
      %v440 = vpack.c.b16 %v362, %v361
      %v441 = vpack.c.b16 %v364, %v363
      %v442 = vpack.c.b16 %v366, %v365
      %v443 = vpack.c.b16 %v368, %v367
      %v444 = vpack.c.b16 %v370, %v369
      %v445 = vpack.c.b16 %v372, %v371
      %v446 = vpack.c.b16 %v374, %v373
      %v447 = vpack.c.b16 %v376, %v375
      %v448 = vpack.c.b16 %v378, %v377
      %v449 = vpack.c.b16 %v380, %v379
      %v450 = vpack.c.b16 %v382, %v381
      %v451 = vpack.c.b16 %v384, %v383
      %v452 = vpack.c.b16 %v386, %v385
      %v453 = vpack.c.b16 %v388, %v387
      %v454 = vpack.c.b16 %v390, %v389
      %v455 = vpack.c.b16 %v392, %v391
      %v456 = vpack.c.b16 %v394, %v393
      %v457 = vpack.c.b16 %v396, %v395
      %v458 = vpack.c.b16 %v398, %v397
      %v459 = vpack.c.b16 %v400, %v399
      %v460 = vpack.c.b16 %v402, %v401
      %v461 = vpack.c.b16 %v404, %v403
      %v462 = vpack.c.b16 %v406, %v405
      %v463 = vpack.c.b16 %v408, %v407
      %v464 = vpack.c.b16 %v410, %v409
      %v465 = vpack.c.b16 %v412, %v411
      %v466 = vpack.c.b16 %v414, %v413
      %v467 = vpack.c.b16 %v416, %v415
      %v468 = vpack.c.b16 %v418, %v417
      %v469 = vpack.c.b16 %v420, %v419
      %v470 = vpack.c.b16 %v422, %v421
      %519 = vmatprep.subr.bf16.mxu0 0
      %520 = vmatpush1.bf16.msra.mxu0 %v430
      %521 = vmatprep.subr.bf16.mxu0 0
      %522 = vmatpush1.bf16.msra.mxu0 %v429
      %523 = vmatprep.subr.bf16.mxu0 0
      %524 = vmatpush1.bf16.msra.mxu0 %v428
      %525 = vmatprep.subr.bf16.mxu0 0
      %526 = vmatpush1.bf16.msra.mxu0 %v427
      %527 = vmatprep.subr.bf16.mxu0 0
      %528 = vmatpush1.bf16.msra.mxu0 %v426
      %529 = vmatprep.subr.bf16.mxu0 0
      %530 = vmatpush1.bf16.msra.mxu0 %v425
      %531 = vmatprep.subr.bf16.mxu0 0
      %532 = vmatpush1.bf16.msra.mxu0 %v424
      %533 = vmatprep.subr.bf16.mxu0 0
      %534 = vmatpush1.bf16.msra.mxu0 %v423
      %535 = vmatprep.subr.bf16.mxu0 0
      %536 = vmatpush2.bf16.msra.mxu0 %v438
      %537 = vmatprep.subr.bf16.mxu0 0
      %538 = vmatpush2.bf16.msra.mxu0 %v437
      %539 = vmatprep.subr.bf16.mxu0 0
      %540 = vmatpush2.bf16.msra.mxu0 %v436
      %541 = vmatprep.subr.bf16.mxu0 0
      %542 = vmatpush2.bf16.msra.mxu0 %v435
      %543 = vmatprep.subr.bf16.mxu0 0
      %544 = vmatpush2.bf16.msra.mxu0 %v434
      %545 = vmatprep.subr.bf16.mxu0 0
      %546 = vmatpush2.bf16.msra.mxu0 %v433
      %547 = vmatprep.subr.bf16.mxu0 0
      %548 = vmatpush2.bf16.msra.mxu0 %v432
      %549 = vmatprep.subr.bf16.mxu0 0
      %550 = vmatpush2.bf16.msra.mxu0 %v431
      %551 = vmatprep.mubr.bf16.mxu0 %v202
      %552 = vmatmul.mubr.bf16.gmra.mxu0 %v201
      %v553 = vpop.f32.mrf.mxu0
      %v554 = vadd.f32 %v229, %v553
      %v555 = vpop.f32.mrf.mxu0
      %v556 = vpop.f32.mrf.mxu0
      %v557 = vpop.f32.mrf.mxu0
      %558 = vdwg.mxu0
      %559 = vmatprep.subr.bf16.mxu0 0
      %560 = vmatpush1.bf16.msra.mxu0 %v446
      %561 = vmatprep.subr.bf16.mxu0 0
      %562 = vmatpush1.bf16.msra.mxu0 %v445
      %563 = vmatprep.subr.bf16.mxu0 0
      %564 = vmatpush1.bf16.msra.mxu0 %v444
      %565 = vmatprep.subr.bf16.mxu0 0
      %566 = vmatpush1.bf16.msra.mxu0 %v443
      %567 = vmatprep.subr.bf16.mxu0 0
      %568 = vmatpush1.bf16.msra.mxu0 %v442
      %569 = vmatprep.subr.bf16.mxu0 0
      %570 = vmatpush1.bf16.msra.mxu0 %v441
      %571 = vmatprep.subr.bf16.mxu0 0
      %572 = vmatpush1.bf16.msra.mxu0 %v440
      %573 = vmatprep.subr.bf16.mxu0 0
      %574 = vmatpush1.bf16.msra.mxu0 %v439
      %575 = vmatprep.subr.bf16.mxu0 0
      %576 = vmatpush2.bf16.msra.mxu0 %v454
      %577 = vmatprep.subr.bf16.mxu0 0
      %578 = vmatpush2.bf16.msra.mxu0 %v453
      %579 = vmatprep.subr.bf16.mxu0 0
      %580 = vmatpush2.bf16.msra.mxu0 %v452
      %581 = vmatprep.subr.bf16.mxu0 0
      %582 = vmatpush2.bf16.msra.mxu0 %v451
      %583 = vmatprep.subr.bf16.mxu0 0
      %584 = vmatpush2.bf16.msra.mxu0 %v450
      %585 = vmatprep.subr.bf16.mxu0 0
      %586 = vmatpush2.bf16.msra.mxu0 %v449
      %587 = vmatprep.subr.bf16.mxu0 0
      %588 = vmatpush2.bf16.msra.mxu0 %v448
      %589 = vmatprep.subr.bf16.mxu0 0
      %590 = vmatpush2.bf16.msra.mxu0 %v447
      %591 = vmatprep.mubr.bf16.mxu0 %v216
      %592 = vmatmul.mubr.bf16.gmra.mxu0 %v209
      %v593 = vpop.f32.mrf.mxu0
      %v594 = vadd.f32 %v554, %v593
      %v595 = vpop.f32.mrf.mxu0
      %v596 = vpop.f32.mrf.mxu0
      %v597 = vpop.f32.mrf.mxu0
      %598 = vdwg.mxu0
      %599 = vmatprep.subr.bf16.mxu0 0
      %600 = vmatpush1.bf16.msra.mxu0 %v462
      %601 = vmatprep.subr.bf16.mxu0 0
      %602 = vmatpush1.bf16.msra.mxu0 %v461
      %603 = vmatprep.subr.bf16.mxu0 0
      %604 = vmatpush1.bf16.msra.mxu0 %v460
      %605 = vmatprep.subr.bf16.mxu0 0
      %606 = vmatpush1.bf16.msra.mxu0 %v459
      %607 = vmatprep.subr.bf16.mxu0 0
      %608 = vmatpush1.bf16.msra.mxu0 %v458
      %609 = vmatprep.subr.bf16.mxu0 0
      %610 = vmatpush1.bf16.msra.mxu0 %v457
      %611 = vmatprep.subr.bf16.mxu0 0
      %612 = vmatpush1.bf16.msra.mxu0 %v456
      %613 = vmatprep.subr.bf16.mxu0 0
      %614 = vmatpush1.bf16.msra.mxu0 %v455
      %615 = vmatprep.subr.bf16.mxu0 0
      %616 = vmatpush2.bf16.msra.mxu0 %v470
      %617 = vmatprep.subr.bf16.mxu0 0
      %618 = vmatpush2.bf16.msra.mxu0 %v469
      %619 = vmatprep.subr.bf16.mxu0 0
      %620 = vmatpush2.bf16.msra.mxu0 %v468
      %621 = vmatprep.subr.bf16.mxu0 0
      %622 = vmatpush2.bf16.msra.mxu0 %v467
      %623 = vmatprep.subr.bf16.mxu0 0
      %624 = vmatpush2.bf16.msra.mxu0 %v466
      %625 = vmatprep.subr.bf16.mxu0 0
      %626 = vmatpush2.bf16.msra.mxu0 %v465
      %627 = vmatprep.subr.bf16.mxu0 0
      %628 = vmatpush2.bf16.msra.mxu0 %v464
      %629 = vmatprep.subr.bf16.mxu0 0
      %630 = vmatpush2.bf16.msra.mxu0 %v463
      %631 = vmatprep.mubr.bf16.mxu0 %v222
      %632 = vmatmul.mubr.bf16.gmra.mxu0 %v221
      %v633 = vpop.f32.mrf.mxu0
      %v634 = vadd.f32 %v594, %v633
      %v635 = vpop.f32.mrf.mxu0
      %v636 = vpop.f32.mrf.mxu0
      %v637 = vpop.f32.mrf.mxu0
      %638 = vdwg.mxu0
      %v639 = vld [vmem:[#allocation4] sm:$0xf]
      %v640 = vld [vmem:[#allocation4 + $0x4] sm:$0xf]
      %v641 = vld [vmem:[#allocation4 + $0x8] sm:$0xf]
      %v642 = vld [vmem:[#allocation4 + $0xc] sm:$0xf]
      %v643 = vld [vmem:[#allocation4 + $0x10] sm:$0xf]
      %v644 = vld [vmem:[#allocation4 + $0x14] sm:$0xf]
      %v645 = vld [vmem:[#allocation4 + $0x18] sm:$0xf]
      %v646 = vld [vmem:[#allocation4 + $0x1c] sm:$0xf]
      %v647 = vld [vmem:[#allocation4 + $0x20] sm:$0xf]
      %v648 = vld [vmem:[#allocation4 + $0x24] sm:$0xf]
      %v649 = vld [vmem:[#allocation4 + $0x28] sm:$0xf]
      %v650 = vld [vmem:[#allocation4 + $0x2c] sm:$0xf]
      %v651 = vld [vmem:[#allocation4 + $0x30] sm:$0xf]
      %v652 = vld [vmem:[#allocation4 + $0x34] sm:$0xf]
      %v653 = vld [vmem:[#allocation4 + $0x38] sm:$0xf]
      %v654 = vld [vmem:[#allocation4 + $0x3c] sm:$0xf]
      %v655 = vld [vmem:[#allocation4 + $0x40] sm:$0xf]
      %v656 = vld [vmem:[#allocation4 + $0x44] sm:$0xf]
      %v657 = vld [vmem:[#allocation4 + $0x48] sm:$0xf]
      %v658 = vld [vmem:[#allocation4 + $0x4c] sm:$0xf]
      %v659 = vld [vmem:[#allocation4 + $0x50] sm:$0xf]
      %v660 = vld [vmem:[#allocation4 + $0x54] sm:$0xf]
      %v661 = vld [vmem:[#allocation4 + $0x58] sm:$0xf]
      %v662 = vld [vmem:[#allocation4 + $0x5c] sm:$0xf]
      %v663 = vld [vmem:[#allocation4 + $0x60] sm:$0xf]
      %v664 = vld [vmem:[#allocation4 + $0x64] sm:$0xf]
      %v665 = vld [vmem:[#allocation4 + $0x68] sm:$0xf]
      %v666 = vld [vmem:[#allocation4 + $0x6c] sm:$0xf]
      %v667 = vld [vmem:[#allocation4 + $0x70] sm:$0xf]
      %v668 = vld [vmem:[#allocation4 + $0x74] sm:$0xf]
      %v669 = vld [vmem:[#allocation4 + $0x78] sm:$0xf]
      %v670 = vld [vmem:[#allocation4 + $0x7c] sm:$0xf]
      %v671 = vld [vmem:[#allocation4 + $0x80] sm:$0xf]
      %v672 = vld [vmem:[#allocation4 + $0x84] sm:$0xf]
      %v673 = vld [vmem:[#allocation4 + $0x88] sm:$0xf]
      %v674 = vld [vmem:[#allocation4 + $0x8c] sm:$0xf]
      %v675 = vld [vmem:[#allocation4 + $0x90] sm:$0xf]
      %v676 = vld [vmem:[#allocation4 + $0x94] sm:$0xf]
      %v677 = vld [vmem:[#allocation4 + $0x98] sm:$0xf]
      %v678 = vld [vmem:[#allocation4 + $0x9c] sm:$0xf]
      %v679 = vld [vmem:[#allocation4 + $0xa0] sm:$0xf]
      %v680 = vld [vmem:[#allocation4 + $0xa4] sm:$0xf]
      %v681 = vld [vmem:[#allocation4 + $0xa8] sm:$0xf]
      %v682 = vld [vmem:[#allocation4 + $0xac] sm:$0xf]
      %v683 = vld [vmem:[#allocation4 + $0xb0] sm:$0xf]
      %v684 = vld [vmem:[#allocation4 + $0xb4] sm:$0xf]
      %v685 = vld [vmem:[#allocation4 + $0xb8] sm:$0xf]
      %v686 = vld [vmem:[#allocation4 + $0xbc] sm:$0xf]
      %v687 = vld [vmem:[#allocation6] sm:$0x1]
      %v689 = vrot.slane %v634, 7
      %vm691 = vcmask 1040384
      %v692 = vsel %vm691, 0.0, %v689
      %vm693 = vcmask 1044480
      %v694 = vsel %vm693, %v692, 0.0
      %v696 = vrot.slane %v694, 1
      %v698 = vrot.slane %v694, 2
      %v700 = vpack.c.bf16 %v694, %v694
      %v701 = vpack.c.bf16 %v696, %v696
      %v702 = vpack.c.bf16 %v698, %v698
      %v704 = vlaneseq
      %v705 = vshrl.u32 %v704, 7
      %v706 = vsub.s32 0, %v705
      %v707 = vrot.slane %v687, %v706
      %v757 = vunpack.c.l.b16 %v639
      %v758 = vunpack.c.l.b16 %v640
      %v759 = vunpack.c.l.b16 %v641
      %v760 = vunpack.c.l.b16 %v642
      %v761 = vunpack.c.l.b16 %v643
      %v762 = vunpack.c.l.b16 %v644
      %v763 = vunpack.c.l.b16 %v645
      %v764 = vunpack.c.l.b16 %v646
      %v765 = vunpack.c.l.b16 %v647
      %v766 = vunpack.c.l.b16 %v648
      %v767 = vunpack.c.l.b16 %v649
      %v768 = vunpack.c.l.b16 %v650
      %v769 = vunpack.c.l.b16 %v651
      %v770 = vunpack.c.l.b16 %v652
      %v771 = vunpack.c.l.b16 %v653
      %v772 = vunpack.c.l.b16 %v654
      %v773 = vunpack.c.l.b16 %v655
      %v774 = vunpack.c.l.b16 %v656
      %v775 = vunpack.c.l.b16 %v657
      %v776 = vunpack.c.l.b16 %v658
      %v777 = vunpack.c.l.b16 %v659
      %v778 = vunpack.c.l.b16 %v660
      %v779 = vunpack.c.l.b16 %v661
      %v780 = vunpack.c.l.b16 %v662
      %v781 = vunpack.c.l.b16 %v663
      %v782 = vunpack.c.l.b16 %v664
      %v783 = vunpack.c.l.b16 %v665
      %v784 = vunpack.c.l.b16 %v666
      %v785 = vunpack.c.l.b16 %v667
      %v786 = vunpack.c.l.b16 %v668
      %v787 = vunpack.c.l.b16 %v669
      %v788 = vunpack.c.l.b16 %v670
      %v789 = vunpack.c.l.b16 %v671
      %v790 = vunpack.c.l.b16 %v672
      %v791 = vunpack.c.l.b16 %v673
      %v792 = vunpack.c.l.b16 %v674
      %v793 = vunpack.c.l.b16 %v675
      %v794 = vunpack.c.l.b16 %v676
      %v795 = vunpack.c.l.b16 %v677
      %v796 = vunpack.c.l.b16 %v678
      %v797 = vunpack.c.l.b16 %v679
      %v798 = vunpack.c.l.b16 %v680
      %v799 = vunpack.c.l.b16 %v681
      %v800 = vunpack.c.l.b16 %v682
      %v801 = vunpack.c.l.b16 %v683
      %v802 = vunpack.c.l.b16 %v684
      %v803 = vunpack.c.l.b16 %v685
      %v804 = vunpack.c.l.b16 %v686
      %v805 = vpack.c.b16 %v758, %v757
      %v806 = vpack.c.b16 %v760, %v759
      %v807 = vpack.c.b16 %v762, %v761
      %v808 = vpack.c.b16 %v764, %v763
      %v809 = vpack.c.b16 %v766, %v765
      %v810 = vpack.c.b16 %v768, %v767
      %v811 = vpack.c.b16 %v770, %v769
      %v812 = vpack.c.b16 %v772, %v771
      %v813 = vpack.c.b16 %v774, %v773
      %v814 = vpack.c.b16 %v776, %v775
      %v815 = vpack.c.b16 %v778, %v777
      %v816 = vpack.c.b16 %v780, %v779
      %v817 = vpack.c.b16 %v782, %v781
      %v818 = vpack.c.b16 %v784, %v783
      %v819 = vpack.c.b16 %v786, %v785
      %v820 = vpack.c.b16 %v788, %v787
      %v821 = vpack.c.b16 %v790, %v789
      %v822 = vpack.c.b16 %v792, %v791
      %v823 = vpack.c.b16 %v794, %v793
      %v824 = vpack.c.b16 %v796, %v795
      %v825 = vpack.c.b16 %v798, %v797
      %v826 = vpack.c.b16 %v800, %v799
      %v827 = vpack.c.b16 %v802, %v801
      %v828 = vpack.c.b16 %v804, %v803
      %853 = vmatprep.subr.bf16.mxu0 0
      %854 = vmatpush1.bf16.msra.mxu0 %v812
      %855 = vmatprep.subr.bf16.mxu0 0
      %856 = vmatpush1.bf16.msra.mxu0 %v811
      %857 = vmatprep.subr.bf16.mxu0 0
      %858 = vmatpush1.bf16.msra.mxu0 %v810
      %859 = vmatprep.subr.bf16.mxu0 0
      %860 = vmatpush1.bf16.msra.mxu0 %v809
      %861 = vmatprep.subr.bf16.mxu0 0
      %862 = vmatpush1.bf16.msra.mxu0 %v808
      %863 = vmatprep.subr.bf16.mxu0 0
      %864 = vmatpush1.bf16.msra.mxu0 %v807
      %865 = vmatprep.subr.bf16.mxu0 0
      %866 = vmatpush1.bf16.msra.mxu0 %v806
      %867 = vmatprep.subr.bf16.mxu0 0
      %868 = vmatpush1.bf16.msra.mxu0 %v805
      %869 = vmatprep.subr.bf16.mxu0 0
      %870 = vmatpush2.bf16.msra.mxu0 %v820
      %871 = vmatprep.subr.bf16.mxu0 0
      %872 = vmatpush2.bf16.msra.mxu0 %v819
      %873 = vmatprep.subr.bf16.mxu0 0
      %874 = vmatpush2.bf16.msra.mxu0 %v818
      %875 = vmatprep.subr.bf16.mxu0 0
      %876 = vmatpush2.bf16.msra.mxu0 %v817
      %877 = vmatprep.subr.bf16.mxu0 0
      %878 = vmatpush2.bf16.msra.mxu0 %v816
      %879 = vmatprep.subr.bf16.mxu0 0
      %880 = vmatpush2.bf16.msra.mxu0 %v815
      %881 = vmatprep.subr.bf16.mxu0 0
      %882 = vmatpush2.bf16.msra.mxu0 %v814
      %883 = vmatprep.subr.bf16.mxu0 0
      %884 = vmatpush2.bf16.msra.mxu0 %v813
      %885 = vmatprep.mubr.bf16.mxu0 %v701
      %886 = vmatmul.mubr.bf16.gmra.mxu0 %v700
      %v887 = vpop.f32.mrf.mxu0
      %v888 = vadd.f32 %v707, %v887
      %v889 = vpop.f32.mrf.mxu0
      %v890 = vpop.f32.mrf.mxu0
      %v891 = vpop.f32.mrf.mxu0
      %892 = vdwg.mxu0
      %893 = vmatprep.subr.bf16.mxu0 0
      %894 = vmatpush1.bf16.msra.mxu0 %v828
      %895 = vmatprep.subr.bf16.mxu0 0
      %896 = vmatpush1.bf16.msra.mxu0 %v827
      %897 = vmatprep.subr.bf16.mxu0 0
      %898 = vmatpush1.bf16.msra.mxu0 %v826
      %899 = vmatprep.subr.bf16.mxu0 0
      %900 = vmatpush1.bf16.msra.mxu0 %v825
      %901 = vmatprep.subr.bf16.mxu0 0
      %902 = vmatpush1.bf16.msra.mxu0 %v824
      %903 = vmatprep.subr.bf16.mxu0 0
      %904 = vmatpush1.bf16.msra.mxu0 %v823
      %905 = vmatprep.subr.bf16.mxu0 0
      %906 = vmatpush1.bf16.msra.mxu0 %v822
      %907 = vmatprep.subr.bf16.mxu0 0
      %908 = vmatpush1.bf16.msra.mxu0 %v821
      %909 = vmatprep.subr.bf16.mxu0 0
      %910 = vmatpush2.bf16.msra.mxu0 0
      %911 = vmatprep.subr.bf16.mxu0 0
      %912 = vmatpush2.bf16.msra.mxu0 0
      %913 = vmatprep.subr.bf16.mxu0 0
      %914 = vmatpush2.bf16.msra.mxu0 0
      %915 = vmatprep.subr.bf16.mxu0 0
      %916 = vmatpush2.bf16.msra.mxu0 0
      %917 = vmatprep.subr.bf16.mxu0 0
      %918 = vmatpush2.bf16.msra.mxu0 0
      %919 = vmatprep.subr.bf16.mxu0 0
      %920 = vmatpush2.bf16.msra.mxu0 0
      %921 = vmatprep.subr.bf16.mxu0 0
      %922 = vmatpush2.bf16.msra.mxu0 0
      %923 = vmatprep.subr.bf16.mxu0 0
      %924 = vmatpush2.bf16.msra.mxu0 0
      %925 = vmatprep.mubr.bf16.mxu0 0
      %926 = vmatmul.mubr.bf16.gmra.mxu0 %v702
      %v927 = vpop.f32.mrf.mxu0
      %v928 = vadd.f32 %v888, %v927
      %v929 = vpop.f32.mrf.mxu0
      %v930 = vpop.f32.mrf.mxu0
      %v931 = vpop.f32.mrf.mxu0
      %932 = vdwg.mxu0
      %vm933 = vcmp.ge.f32.partialorder %v928, 0.0
      %v934 = vmul.f32 %v928, 0.1
      %v935 = vsel %vm933, %v928, %v934
      %s936 = scalar_lea.vmem [#allocation4], 192
      %v937 = vld [vmem:[%s936] sm:$0xf]
      %v938 = vld [vmem:[%s936 + $0x4] sm:$0xf]
      %v939 = vld [vmem:[%s936 + $0x8] sm:$0xf]
      %v940 = vld [vmem:[%s936 + $0xc] sm:$0xf]
      %v941 = vld [vmem:[%s936 + $0x10] sm:$0xf]
      %v942 = vld [vmem:[%s936 + $0x14] sm:$0xf]
      %v943 = vld [vmem:[%s936 + $0x18] sm:$0xf]
      %v944 = vld [vmem:[%s936 + $0x1c] sm:$0xf]
      %v945 = vld [vmem:[%s936 + $0x20] sm:$0xf]
      %v946 = vld [vmem:[%s936 + $0x24] sm:$0xf]
      %v947 = vld [vmem:[%s936 + $0x28] sm:$0xf]
      %v948 = vld [vmem:[%s936 + $0x2c] sm:$0xf]
      %v949 = vld [vmem:[%s936 + $0x30] sm:$0xf]
      %v950 = vld [vmem:[%s936 + $0x34] sm:$0xf]
      %v951 = vld [vmem:[%s936 + $0x38] sm:$0xf]
      %v952 = vld [vmem:[%s936 + $0x3c] sm:$0xf]
      %v953 = vld [vmem:[%s936 + $0x40] sm:$0xf]
      %v954 = vld [vmem:[%s936 + $0x44] sm:$0xf]
      %v955 = vld [vmem:[%s936 + $0x48] sm:$0xf]
      %v956 = vld [vmem:[%s936 + $0x4c] sm:$0xf]
      %v957 = vld [vmem:[%s936 + $0x50] sm:$0xf]
      %v958 = vld [vmem:[%s936 + $0x54] sm:$0xf]
      %v959 = vld [vmem:[%s936 + $0x58] sm:$0xf]
      %v960 = vld [vmem:[%s936 + $0x5c] sm:$0xf]
      %v961 = vld [vmem:[%s936 + $0x60] sm:$0xf]
      %v962 = vld [vmem:[%s936 + $0x64] sm:$0xf]
      %v963 = vld [vmem:[%s936 + $0x68] sm:$0xf]
      %v964 = vld [vmem:[%s936 + $0x6c] sm:$0xf]
      %v965 = vld [vmem:[%s936 + $0x70] sm:$0xf]
      %v966 = vld [vmem:[%s936 + $0x74] sm:$0xf]
      %v967 = vld [vmem:[%s936 + $0x78] sm:$0xf]
      %v968 = vld [vmem:[%s936 + $0x7c] sm:$0xf]
      %v969 = vld [vmem:[%s936 + $0x80] sm:$0xf]
      %v970 = vld [vmem:[%s936 + $0x84] sm:$0xf]
      %v971 = vld [vmem:[%s936 + $0x88] sm:$0xf]
      %v972 = vld [vmem:[%s936 + $0x8c] sm:$0xf]
      %v973 = vld [vmem:[%s936 + $0x90] sm:$0xf]
      %v974 = vld [vmem:[%s936 + $0x94] sm:$0xf]
      %v975 = vld [vmem:[%s936 + $0x98] sm:$0xf]
      %v976 = vld [vmem:[%s936 + $0x9c] sm:$0xf]
      %v977 = vld [vmem:[%s936 + $0xa0] sm:$0xf]
      %v978 = vld [vmem:[%s936 + $0xa4] sm:$0xf]
      %v979 = vld [vmem:[%s936 + $0xa8] sm:$0xf]
      %v980 = vld [vmem:[%s936 + $0xac] sm:$0xf]
      %v981 = vld [vmem:[%s936 + $0xb0] sm:$0xf]
      %v982 = vld [vmem:[%s936 + $0xb4] sm:$0xf]
      %v983 = vld [vmem:[%s936 + $0xb8] sm:$0xf]
      %v984 = vld [vmem:[%s936 + $0xbc] sm:$0xf]
      %s985 = scalar_lea.vmem [#allocation6], 1
      %v986 = vld [vmem:[%s985] sm:$0x1]
      %v988 = vrot.slane %v935, 7
      %v990 = vsel %vm691, 0.0, %v988
      %v991 = vsel %vm693, %v990, 0.0
      %v993 = vrot.slane %v991, 1
      %v995 = vrot.slane %v991, 2
      %v997 = vpack.c.bf16 %v991, %v991
      %v998 = vpack.c.bf16 %v993, %v993
      %v999 = vpack.c.bf16 %v995, %v995
      %v1001 = vlaneseq
      %v1002 = vshrl.u32 %v1001, 7
      %v1003 = vsub.s32 0, %v1002
      %v1004 = vrot.slane %v986, %v1003
      %v1054 = vunpack.c.l.b16 %v937
      %v1055 = vunpack.c.l.b16 %v938
      %v1056 = vunpack.c.l.b16 %v939
      %v1057 = vunpack.c.l.b16 %v940
      %v1058 = vunpack.c.l.b16 %v941
      %v1059 = vunpack.c.l.b16 %v942
      %v1060 = vunpack.c.l.b16 %v943
      %v1061 = vunpack.c.l.b16 %v944
      %v1062 = vunpack.c.l.b16 %v945
      %v1063 = vunpack.c.l.b16 %v946
      %v1064 = vunpack.c.l.b16 %v947
      %v1065 = vunpack.c.l.b16 %v948
      %v1066 = vunpack.c.l.b16 %v949
      %v1067 = vunpack.c.l.b16 %v950
      %v1068 = vunpack.c.l.b16 %v951
      %v1069 = vunpack.c.l.b16 %v952
      %v1070 = vunpack.c.l.b16 %v953
      %v1071 = vunpack.c.l.b16 %v954
      %v1072 = vunpack.c.l.b16 %v955
      %v1073 = vunpack.c.l.b16 %v956
      %v1074 = vunpack.c.l.b16 %v957
      %v1075 = vunpack.c.l.b16 %v958
      %v1076 = vunpack.c.l.b16 %v959
      %v1077 = vunpack.c.l.b16 %v960
      %v1078 = vunpack.c.l.b16 %v961
      %v1079 = vunpack.c.l.b16 %v962
      %v1080 = vunpack.c.l.b16 %v963
      %v1081 = vunpack.c.l.b16 %v964
      %v1082 = vunpack.c.l.b16 %v965
      %v1083 = vunpack.c.l.b16 %v966
      %v1084 = vunpack.c.l.b16 %v967
      %v1085 = vunpack.c.l.b16 %v968
      %v1086 = vunpack.c.l.b16 %v969
      %v1087 = vunpack.c.l.b16 %v970
      %v1088 = vunpack.c.l.b16 %v971
      %v1089 = vunpack.c.l.b16 %v972
      %v1090 = vunpack.c.l.b16 %v973
      %v1091 = vunpack.c.l.b16 %v974
      %v1092 = vunpack.c.l.b16 %v975
      %v1093 = vunpack.c.l.b16 %v976
      %v1094 = vunpack.c.l.b16 %v977
      %v1095 = vunpack.c.l.b16 %v978
      %v1096 = vunpack.c.l.b16 %v979
      %v1097 = vunpack.c.l.b16 %v980
      %v1098 = vunpack.c.l.b16 %v981
      %v1099 = vunpack.c.l.b16 %v982
      %v1100 = vunpack.c.l.b16 %v983
      %v1101 = vunpack.c.l.b16 %v984
      %v1102 = vpack.c.b16 %v1055, %v1054
      %v1103 = vpack.c.b16 %v1057, %v1056
      %v1104 = vpack.c.b16 %v1059, %v1058
      %v1105 = vpack.c.b16 %v1061, %v1060
      %v1106 = vpack.c.b16 %v1063, %v1062
      %v1107 = vpack.c.b16 %v1065, %v1064
      %v1108 = vpack.c.b16 %v1067, %v1066
      %v1109 = vpack.c.b16 %v1069, %v1068
      %v1110 = vpack.c.b16 %v1071, %v1070
      %v1111 = vpack.c.b16 %v1073, %v1072
      %v1112 = vpack.c.b16 %v1075, %v1074
      %v1113 = vpack.c.b16 %v1077, %v1076
      %v1114 = vpack.c.b16 %v1079, %v1078
      %v1115 = vpack.c.b16 %v1081, %v1080
      %v1116 = vpack.c.b16 %v1083, %v1082
      %v1117 = vpack.c.b16 %v1085, %v1084
      %v1118 = vpack.c.b16 %v1087, %v1086
      %v1119 = vpack.c.b16 %v1089, %v1088
      %v1120 = vpack.c.b16 %v1091, %v1090
      %v1121 = vpack.c.b16 %v1093, %v1092
      %v1122 = vpack.c.b16 %v1095, %v1094
      %v1123 = vpack.c.b16 %v1097, %v1096
      %v1124 = vpack.c.b16 %v1099, %v1098
      %v1125 = vpack.c.b16 %v1101, %v1100
      %1150 = vmatprep.subr.bf16.mxu0 0
      %1151 = vmatpush1.bf16.msra.mxu0 %v1109
      %1152 = vmatprep.subr.bf16.mxu0 0
      %1153 = vmatpush1.bf16.msra.mxu0 %v1108
      %1154 = vmatprep.subr.bf16.mxu0 0
      %1155 = vmatpush1.bf16.msra.mxu0 %v1107
      %1156 = vmatprep.subr.bf16.mxu0 0
      %1157 = vmatpush1.bf16.msra.mxu0 %v1106
      %1158 = vmatprep.subr.bf16.mxu0 0
      %1159 = vmatpush1.bf16.msra.mxu0 %v1105
      %1160 = vmatprep.subr.bf16.mxu0 0
      %1161 = vmatpush1.bf16.msra.mxu0 %v1104
      %1162 = vmatprep.subr.bf16.mxu0 0
      %1163 = vmatpush1.bf16.msra.mxu0 %v1103
      %1164 = vmatprep.subr.bf16.mxu0 0
      %1165 = vmatpush1.bf16.msra.mxu0 %v1102
      %1166 = vmatprep.subr.bf16.mxu0 0
      %1167 = vmatpush2.bf16.msra.mxu0 %v1117
      %1168 = vmatprep.subr.bf16.mxu0 0
      %1169 = vmatpush2.bf16.msra.mxu0 %v1116
      %1170 = vmatprep.subr.bf16.mxu0 0
      %1171 = vmatpush2.bf16.msra.mxu0 %v1115
      %1172 = vmatprep.subr.bf16.mxu0 0
      %1173 = vmatpush2.bf16.msra.mxu0 %v1114
      %1174 = vmatprep.subr.bf16.mxu0 0
      %1175 = vmatpush2.bf16.msra.mxu0 %v1113
      %1176 = vmatprep.subr.bf16.mxu0 0
      %1177 = vmatpush2.bf16.msra.mxu0 %v1112
      %1178 = vmatprep.subr.bf16.mxu0 0
      %1179 = vmatpush2.bf16.msra.mxu0 %v1111
      %1180 = vmatprep.subr.bf16.mxu0 0
      %1181 = vmatpush2.bf16.msra.mxu0 %v1110
      %1182 = vmatprep.mubr.bf16.mxu0 %v998
      %1183 = vmatmul.mubr.bf16.gmra.mxu0 %v997
      %v1184 = vpop.f32.mrf.mxu0
      %v1185 = vadd.f32 %v1004, %v1184
      %v1186 = vpop.f32.mrf.mxu0
      %v1187 = vpop.f32.mrf.mxu0
      %v1188 = vpop.f32.mrf.mxu0
      %1189 = vdwg.mxu0
      %1190 = vmatprep.subr.bf16.mxu0 0
      %1191 = vmatpush1.bf16.msra.mxu0 %v1125
      %1192 = vmatprep.subr.bf16.mxu0 0
      %1193 = vmatpush1.bf16.msra.mxu0 %v1124
      %1194 = vmatprep.subr.bf16.mxu0 0
      %1195 = vmatpush1.bf16.msra.mxu0 %v1123
      %1196 = vmatprep.subr.bf16.mxu0 0
      %1197 = vmatpush1.bf16.msra.mxu0 %v1122
      %1198 = vmatprep.subr.bf16.mxu0 0
      %1199 = vmatpush1.bf16.msra.mxu0 %v1121
      %1200 = vmatprep.subr.bf16.mxu0 0
      %1201 = vmatpush1.bf16.msra.mxu0 %v1120
      %1202 = vmatprep.subr.bf16.mxu0 0
      %1203 = vmatpush1.bf16.msra.mxu0 %v1119
      %1204 = vmatprep.subr.bf16.mxu0 0
      %1205 = vmatpush1.bf16.msra.mxu0 %v1118
      %1206 = vmatprep.subr.bf16.mxu0 0
      %1207 = vmatpush2.bf16.msra.mxu0 0
      %1208 = vmatprep.subr.bf16.mxu0 0
      %1209 = vmatpush2.bf16.msra.mxu0 0
      %1210 = vmatprep.subr.bf16.mxu0 0
      %1211 = vmatpush2.bf16.msra.mxu0 0
      %1212 = vmatprep.subr.bf16.mxu0 0
      %1213 = vmatpush2.bf16.msra.mxu0 0
      %1214 = vmatprep.subr.bf16.mxu0 0
      %1215 = vmatpush2.bf16.msra.mxu0 0
      %1216 = vmatprep.subr.bf16.mxu0 0
      %1217 = vmatpush2.bf16.msra.mxu0 0
      %1218 = vmatprep.subr.bf16.mxu0 0
      %1219 = vmatpush2.bf16.msra.mxu0 0
      %1220 = vmatprep.subr.bf16.mxu0 0
      %1221 = vmatpush2.bf16.msra.mxu0 0
      %1222 = vmatprep.mubr.bf16.mxu0 0
      %1223 = vmatmul.mubr.bf16.gmra.mxu0 %v999
      %v1224 = vpop.f32.mrf.mxu0
      %v1225 = vadd.f32 %v1185, %v1224
      %v1226 = vpop.f32.mrf.mxu0
      %v1227 = vpop.f32.mrf.mxu0
      %v1228 = vpop.f32.mrf.mxu0
      %1229 = vdwg.mxu0
      %v1230 = vadd.f32 %v634, %v1225
      %vm1231 = vcmp.ge.f32.partialorder %v1230, 0.0
      %v1232 = vmul.f32 %v1230, 0.1
      %v1233 = vsel %vm1231, %v1230, %v1232
      %v1236 = vunpack.c.l.s4 1983009808
      %v1237 = vunpack.c.0.s8 %v1236
      %v1238 = vlaneseq
      %v1239 = vshrl.u32 %v1238, 7
      %v1240 = vsub.s32 %v1237, %v1239
      %v1241 = vrot.slane %v1233, %v1240
      %v1242 = vcombine.high %v1241, %v1241
      %vm1245 = vcmask 1041408
      %v1246 = vsel %vm1245, %v1241, -inf
      %v1247 = vrot.slane %v1246, 4
      %v1248 = vmax.f32 %v1246, %v1247
      %v1249 = vrot.slane %v1248, 2
      %v1250 = vmax.f32 %v1248, %v1249
      %v1251 = vrot.slane %v1250, 1
      %v1252 = vmax.f32 %v1250, %v1251
      %v1253 = vsel %vm1245, %v1242, -inf
      %v1254 = vrot.slane %v1253, 4
      %v1255 = vmax.f32 %v1253, %v1254
      %v1256 = vrot.slane %v1255, 2
      %v1257 = vmax.f32 %v1255, %v1256
      %v1258 = vrot.slane %v1257, 1
      %v1259 = vmax.f32 %v1257, %v1258
      %s1260 = scalar_lea.vmem [#allocation4], 384
      %v1261 = vld [vmem:[%s1260] sm:$0xf]
      %v1262 = vld [vmem:[%s1260 + $0x4] sm:$0xf]
      %v1263 = vld [vmem:[%s1260 + $0x8] sm:$0xf]
      %v1264 = vld [vmem:[%s1260 + $0xc] sm:$0xf]
      %v1265 = vld [vmem:[%s1260 + $0x10] sm:$0xf]
      %v1266 = vld [vmem:[%s1260 + $0x14] sm:$0xf]
      %v1267 = vld [vmem:[%s1260 + $0x18] sm:$0xf]
      %v1268 = vld [vmem:[%s1260 + $0x1c] sm:$0xf]
      %v1269 = vld [vmem:[%s1260 + $0x20] sm:$0xf]
      %v1270 = vld [vmem:[%s1260 + $0x24] sm:$0xf]
      %v1271 = vld [vmem:[%s1260 + $0x28] sm:$0xf]
      %v1272 = vld [vmem:[%s1260 + $0x2c] sm:$0xf]
      %v1273 = vld [vmem:[%s1260 + $0x30] sm:$0xf]
      %v1274 = vld [vmem:[%s1260 + $0x34] sm:$0xf]
      %v1275 = vld [vmem:[%s1260 + $0x38] sm:$0xf]
      %v1276 = vld [vmem:[%s1260 + $0x3c] sm:$0xf]
      %v1277 = vld [vmem:[%s1260 + $0x40] sm:$0xf]
      %v1278 = vld [vmem:[%s1260 + $0x44] sm:$0xf]
      %v1279 = vld [vmem:[%s1260 + $0x48] sm:$0xf]
      %v1280 = vld [vmem:[%s1260 + $0x4c] sm:$0xf]
      %v1281 = vld [vmem:[%s1260 + $0x50] sm:$0xf]
      %v1282 = vld [vmem:[%s1260 + $0x54] sm:$0xf]
      %v1283 = vld [vmem:[%s1260 + $0x58] sm:$0xf]
      %v1284 = vld [vmem:[%s1260 + $0x5c] sm:$0xf]
      %v1285 = vld [vmem:[%s1260 + $0x60] sm:$0xf]
      %v1286 = vld [vmem:[%s1260 + $0x64] sm:$0xf]
      %v1287 = vld [vmem:[%s1260 + $0x68] sm:$0xf]
      %v1288 = vld [vmem:[%s1260 + $0x6c] sm:$0xf]
      %v1289 = vld [vmem:[%s1260 + $0x70] sm:$0xf]
      %v1290 = vld [vmem:[%s1260 + $0x74] sm:$0xf]
      %v1291 = vld [vmem:[%s1260 + $0x78] sm:$0xf]
      %v1292 = vld [vmem:[%s1260 + $0x7c] sm:$0xf]
      %v1293 = vld [vmem:[%s1260 + $0x80] sm:$0xf]
      %v1294 = vld [vmem:[%s1260 + $0x84] sm:$0xf]
      %v1295 = vld [vmem:[%s1260 + $0x88] sm:$0xf]
      %v1296 = vld [vmem:[%s1260 + $0x8c] sm:$0xf]
      %v1297 = vld [vmem:[%s1260 + $0x90] sm:$0xf]
      %v1298 = vld [vmem:[%s1260 + $0x94] sm:$0xf]
      %v1299 = vld [vmem:[%s1260 + $0x98] sm:$0xf]
      %v1300 = vld [vmem:[%s1260 + $0x9c] sm:$0xf]
      %v1301 = vld [vmem:[%s1260 + $0xa0] sm:$0xf]
      %v1302 = vld [vmem:[%s1260 + $0xa4] sm:$0xf]
      %v1303 = vld [vmem:[%s1260 + $0xa8] sm:$0xf]
      %v1304 = vld [vmem:[%s1260 + $0xac] sm:$0xf]
      %v1305 = vld [vmem:[%s1260 + $0xb0] sm:$0xf]
      %v1306 = vld [vmem:[%s1260 + $0xb4] sm:$0xf]
      %v1307 = vld [vmem:[%s1260 + $0xb8] sm:$0xf]
      %v1308 = vld [vmem:[%s1260 + $0xbc] sm:$0xf]
      %s1309 = scalar_lea.vmem [#allocation6], 2
      %v1310 = vld [vmem:[%s1309] sm:$0x1]
      %vm1313 = vcmask 1042434
      %v1314 = vsel %vm1313, %v1259, %v1252
      %v1316 = vsel %vm691, 0.0, %v1314
      %vm1317 = vcmask 1042432
      %v1318 = vsel %vm1317, %v1316, 0.0
      %v1320 = vrot.slane %v1318, 1
      %v1322 = vrot.slane %v1318, 2
      %v1324 = vpack.c.bf16 %v1318, %v1318
      %v1325 = vpack.c.bf16 %v1320, %v1320
      %v1326 = vpack.c.bf16 %v1322, %v1322
      %v1328 = vlaneseq
      %v1329 = vshrl.u32 %v1328, 7
      %v1330 = vsub.s32 0, %v1329
      %v1331 = vrot.slane %v1310, %v1330
      %v1381 = vunpack.c.l.b16 %v1261
      %v1382 = vunpack.c.l.b16 %v1262
      %v1383 = vunpack.c.l.b16 %v1263
      %v1384 = vunpack.c.l.b16 %v1264
      %v1385 = vunpack.c.l.b16 %v1265
      %v1386 = vunpack.c.l.b16 %v1266
      %v1387 = vunpack.c.l.b16 %v1267
      %v1388 = vunpack.c.l.b16 %v1268
      %v1389 = vunpack.c.l.b16 %v1269
      %v1390 = vunpack.c.l.b16 %v1270
      %v1391 = vunpack.c.l.b16 %v1271
      %v1392 = vunpack.c.l.b16 %v1272
      %v1393 = vunpack.c.l.b16 %v1273
      %v1394 = vunpack.c.l.b16 %v1274
      %v1395 = vunpack.c.l.b16 %v1275
      %v1396 = vunpack.c.l.b16 %v1276
      %v1397 = vunpack.c.l.b16 %v1277
      %v1398 = vunpack.c.l.b16 %v1278
      %v1399 = vunpack.c.l.b16 %v1279
      %v1400 = vunpack.c.l.b16 %v1280
      %v1401 = vunpack.c.l.b16 %v1281
      %v1402 = vunpack.c.l.b16 %v1282
      %v1403 = vunpack.c.l.b16 %v1283
      %v1404 = vunpack.c.l.b16 %v1284
      %v1405 = vunpack.c.l.b16 %v1285
      %v1406 = vunpack.c.l.b16 %v1286
      %v1407 = vunpack.c.l.b16 %v1287
      %v1408 = vunpack.c.l.b16 %v1288
      %v1409 = vunpack.c.l.b16 %v1289
      %v1410 = vunpack.c.l.b16 %v1290
      %v1411 = vunpack.c.l.b16 %v1291
      %v1412 = vunpack.c.l.b16 %v1292
      %v1413 = vunpack.c.l.b16 %v1293
      %v1414 = vunpack.c.l.b16 %v1294
      %v1415 = vunpack.c.l.b16 %v1295
      %v1416 = vunpack.c.l.b16 %v1296
      %v1417 = vunpack.c.l.b16 %v1297
      %v1418 = vunpack.c.l.b16 %v1298
      %v1419 = vunpack.c.l.b16 %v1299
      %v1420 = vunpack.c.l.b16 %v1300
      %v1421 = vunpack.c.l.b16 %v1301
      %v1422 = vunpack.c.l.b16 %v1302
      %v1423 = vunpack.c.l.b16 %v1303
      %v1424 = vunpack.c.l.b16 %v1304
      %v1425 = vunpack.c.l.b16 %v1305
      %v1426 = vunpack.c.l.b16 %v1306
      %v1427 = vunpack.c.l.b16 %v1307
      %v1428 = vunpack.c.l.b16 %v1308
      %v1429 = vpack.c.b16 %v1382, %v1381
      %v1430 = vpack.c.b16 %v1384, %v1383
      %v1431 = vpack.c.b16 %v1386, %v1385
      %v1432 = vpack.c.b16 %v1388, %v1387
      %v1433 = vpack.c.b16 %v1390, %v1389
      %v1434 = vpack.c.b16 %v1392, %v1391
      %v1435 = vpack.c.b16 %v1394, %v1393
      %v1436 = vpack.c.b16 %v1396, %v1395
      %v1437 = vpack.c.b16 %v1398, %v1397
      %v1438 = vpack.c.b16 %v1400, %v1399
      %v1439 = vpack.c.b16 %v1402, %v1401
      %v1440 = vpack.c.b16 %v1404, %v1403
      %v1441 = vpack.c.b16 %v1406, %v1405
      %v1442 = vpack.c.b16 %v1408, %v1407
      %v1443 = vpack.c.b16 %v1410, %v1409
      %v1444 = vpack.c.b16 %v1412, %v1411
      %v1445 = vpack.c.b16 %v1414, %v1413
      %v1446 = vpack.c.b16 %v1416, %v1415
      %v1447 = vpack.c.b16 %v1418, %v1417
      %v1448 = vpack.c.b16 %v1420, %v1419
      %v1449 = vpack.c.b16 %v1422, %v1421
      %v1450 = vpack.c.b16 %v1424, %v1423
      %v1451 = vpack.c.b16 %v1426, %v1425
      %v1452 = vpack.c.b16 %v1428, %v1427
      %1477 = vmatprep.subr.bf16.mxu0 0
      %1478 = vmatpush1.bf16.msra.mxu0 %v1436
      %1479 = vmatprep.subr.bf16.mxu0 0
      %1480 = vmatpush1.bf16.msra.mxu0 %v1435
      %1481 = vmatprep.subr.bf16.mxu0 0
      %1482 = vmatpush1.bf16.msra.mxu0 %v1434
      %1483 = vmatprep.subr.bf16.mxu0 0
      %1484 = vmatpush1.bf16.msra.mxu0 %v1433
      %1485 = vmatprep.subr.bf16.mxu0 0
      %1486 = vmatpush1.bf16.msra.mxu0 %v1432
      %1487 = vmatprep.subr.bf16.mxu0 0
      %1488 = vmatpush1.bf16.msra.mxu0 %v1431
      %1489 = vmatprep.subr.bf16.mxu0 0
      %1490 = vmatpush1.bf16.msra.mxu0 %v1430
      %1491 = vmatprep.subr.bf16.mxu0 0
      %1492 = vmatpush1.bf16.msra.mxu0 %v1429
      %1493 = vmatprep.subr.bf16.mxu0 0
      %1494 = vmatpush2.bf16.msra.mxu0 %v1444
      %1495 = vmatprep.subr.bf16.mxu0 0
      %1496 = vmatpush2.bf16.msra.mxu0 %v1443
      %1497 = vmatprep.subr.bf16.mxu0 0
      %1498 = vmatpush2.bf16.msra.mxu0 %v1442
      %1499 = vmatprep.subr.bf16.mxu0 0
      %1500 = vmatpush2.bf16.msra.mxu0 %v1441
      %1501 = vmatprep.subr.bf16.mxu0 0
      %1502 = vmatpush2.bf16.msra.mxu0 %v1440
      %1503 = vmatprep.subr.bf16.mxu0 0
      %1504 = vmatpush2.bf16.msra.mxu0 %v1439
      %1505 = vmatprep.subr.bf16.mxu0 0
      %1506 = vmatpush2.bf16.msra.mxu0 %v1438
      %1507 = vmatprep.subr.bf16.mxu0 0
      %1508 = vmatpush2.bf16.msra.mxu0 %v1437
      %1509 = vmatprep.mubr.bf16.mxu0 %v1325
      %1510 = vmatmul.mubr.bf16.gmra.mxu0 %v1324
      %v1511 = vpop.f32.mrf.mxu0
      %v1512 = vadd.f32 %v1331, %v1511
      %v1513 = vpop.f32.mrf.mxu0
      %v1514 = vpop.f32.mrf.mxu0
      %v1515 = vpop.f32.mrf.mxu0
      %1516 = vdwg.mxu0
      %1517 = vmatprep.subr.bf16.mxu0 0
      %1518 = vmatpush1.bf16.msra.mxu0 %v1452
      %1519 = vmatprep.subr.bf16.mxu0 0
      %1520 = vmatpush1.bf16.msra.mxu0 %v1451
      %1521 = vmatprep.subr.bf16.mxu0 0
      %1522 = vmatpush1.bf16.msra.mxu0 %v1450
      %1523 = vmatprep.subr.bf16.mxu0 0
      %1524 = vmatpush1.bf16.msra.mxu0 %v1449
      %1525 = vmatprep.subr.bf16.mxu0 0
      %1526 = vmatpush1.bf16.msra.mxu0 %v1448
      %1527 = vmatprep.subr.bf16.mxu0 0
      %1528 = vmatpush1.bf16.msra.mxu0 %v1447
      %1529 = vmatprep.subr.bf16.mxu0 0
      %1530 = vmatpush1.bf16.msra.mxu0 %v1446
      %1531 = vmatprep.subr.bf16.mxu0 0
      %1532 = vmatpush1.bf16.msra.mxu0 %v1445
      %1533 = vmatprep.subr.bf16.mxu0 0
      %1534 = vmatpush2.bf16.msra.mxu0 0
      %1535 = vmatprep.subr.bf16.mxu0 0
      %1536 = vmatpush2.bf16.msra.mxu0 0
      %1537 = vmatprep.subr.bf16.mxu0 0
      %1538 = vmatpush2.bf16.msra.mxu0 0
      %1539 = vmatprep.subr.bf16.mxu0 0
      %1540 = vmatpush2.bf16.msra.mxu0 0
      %1541 = vmatprep.subr.bf16.mxu0 0
      %1542 = vmatpush2.bf16.msra.mxu0 0
      %1543 = vmatprep.subr.bf16.mxu0 0
      %1544 = vmatpush2.bf16.msra.mxu0 0
      %1545 = vmatprep.subr.bf16.mxu0 0
      %1546 = vmatpush2.bf16.msra.mxu0 0
      %1547 = vmatprep.subr.bf16.mxu0 0
      %1548 = vmatpush2.bf16.msra.mxu0 0
      %1549 = vmatprep.mubr.bf16.mxu0 0
      %1550 = vmatmul.mubr.bf16.gmra.mxu0 %v1326
      %v1551 = vpop.f32.mrf.mxu0
      %v1552 = vadd.f32 %v1512, %v1551
      %v1553 = vpop.f32.mrf.mxu0
      %v1554 = vpop.f32.mrf.mxu0
      %v1555 = vpop.f32.mrf.mxu0
      %1556 = vdwg.mxu0
      %vm1557 = vcmp.ge.f32.partialorder %v1552, 0.0
      %v1558 = vmul.f32 %v1552, 0.1
      %v1559 = vsel %vm1557, %v1552, %v1558
      %s1560 = scalar_lea.vmem [#allocation4], 576
      %v1561 = vld [vmem:[%s1560] sm:$0xf]
      %v1562 = vld [vmem:[%s1560 + $0x4] sm:$0xf]
      %v1563 = vld [vmem:[%s1560 + $0x8] sm:$0xf]
      %v1564 = vld [vmem:[%s1560 + $0xc] sm:$0xf]
      %v1565 = vld [vmem:[%s1560 + $0x10] sm:$0xf]
      %v1566 = vld [vmem:[%s1560 + $0x14] sm:$0xf]
      %v1567 = vld [vmem:[%s1560 + $0x18] sm:$0xf]
      %v1568 = vld [vmem:[%s1560 + $0x1c] sm:$0xf]
      %v1569 = vld [vmem:[%s1560 + $0x20] sm:$0xf]
      %v1570 = vld [vmem:[%s1560 + $0x24] sm:$0xf]
      %v1571 = vld [vmem:[%s1560 + $0x28] sm:$0xf]
      %v1572 = vld [vmem:[%s1560 + $0x2c] sm:$0xf]
      %v1573 = vld [vmem:[%s1560 + $0x30] sm:$0xf]
      %v1574 = vld [vmem:[%s1560 + $0x34] sm:$0xf]
      %v1575 = vld [vmem:[%s1560 + $0x38] sm:$0xf]
      %v1576 = vld [vmem:[%s1560 + $0x3c] sm:$0xf]
      %v1577 = vld [vmem:[%s1560 + $0x40] sm:$0xf]
      %v1578 = vld [vmem:[%s1560 + $0x44] sm:$0xf]
      %v1579 = vld [vmem:[%s1560 + $0x48] sm:$0xf]
      %v1580 = vld [vmem:[%s1560 + $0x4c] sm:$0xf]
      %v1581 = vld [vmem:[%s1560 + $0x50] sm:$0xf]
      %v1582 = vld [vmem:[%s1560 + $0x54] sm:$0xf]
      %v1583 = vld [vmem:[%s1560 + $0x58] sm:$0xf]
      %v1584 = vld [vmem:[%s1560 + $0x5c] sm:$0xf]
      %v1585 = vld [vmem:[%s1560 + $0x60] sm:$0xf]
      %v1586 = vld [vmem:[%s1560 + $0x64] sm:$0xf]
      %v1587 = vld [vmem:[%s1560 + $0x68] sm:$0xf]
      %v1588 = vld [vmem:[%s1560 + $0x6c] sm:$0xf]
      %v1589 = vld [vmem:[%s1560 + $0x70] sm:$0xf]
      %v1590 = vld [vmem:[%s1560 + $0x74] sm:$0xf]
      %v1591 = vld [vmem:[%s1560 + $0x78] sm:$0xf]
      %v1592 = vld [vmem:[%s1560 + $0x7c] sm:$0xf]
      %v1593 = vld [vmem:[%s1560 + $0x80] sm:$0xf]
      %v1594 = vld [vmem:[%s1560 + $0x84] sm:$0xf]
      %v1595 = vld [vmem:[%s1560 + $0x88] sm:$0xf]
      %v1596 = vld [vmem:[%s1560 + $0x8c] sm:$0xf]
      %v1597 = vld [vmem:[%s1560 + $0x90] sm:$0xf]
      %v1598 = vld [vmem:[%s1560 + $0x94] sm:$0xf]
      %v1599 = vld [vmem:[%s1560 + $0x98] sm:$0xf]
      %v1600 = vld [vmem:[%s1560 + $0x9c] sm:$0xf]
      %v1601 = vld [vmem:[%s1560 + $0xa0] sm:$0xf]
      %v1602 = vld [vmem:[%s1560 + $0xa4] sm:$0xf]
      %v1603 = vld [vmem:[%s1560 + $0xa8] sm:$0xf]
      %v1604 = vld [vmem:[%s1560 + $0xac] sm:$0xf]
      %v1605 = vld [vmem:[%s1560 + $0xb0] sm:$0xf]
      %v1606 = vld [vmem:[%s1560 + $0xb4] sm:$0xf]
      %v1607 = vld [vmem:[%s1560 + $0xb8] sm:$0xf]
      %v1608 = vld [vmem:[%s1560 + $0xbc] sm:$0xf]
      %s1609 = scalar_lea.vmem [#allocation6], 3
      %v1610 = vld [vmem:[%s1609] sm:$0x1]
      %v1612 = vrot.slane %v1559, 7
      %v1614 = vsel %vm691, 0.0, %v1612
      %v1615 = vsel %vm1317, %v1614, 0.0
      %v1617 = vrot.slane %v1615, 1
      %v1619 = vrot.slane %v1615, 2
      %v1621 = vpack.c.bf16 %v1615, %v1615
      %v1622 = vpack.c.bf16 %v1617, %v1617
      %v1623 = vpack.c.bf16 %v1619, %v1619
      %v1625 = vlaneseq
      %v1626 = vshrl.u32 %v1625, 7
      %v1627 = vsub.s32 0, %v1626
      %v1628 = vrot.slane %v1610, %v1627
      %v1678 = vunpack.c.l.b16 %v1561
      %v1679 = vunpack.c.l.b16 %v1562
      %v1680 = vunpack.c.l.b16 %v1563
      %v1681 = vunpack.c.l.b16 %v1564
      %v1682 = vunpack.c.l.b16 %v1565
      %v1683 = vunpack.c.l.b16 %v1566
      %v1684 = vunpack.c.l.b16 %v1567
      %v1685 = vunpack.c.l.b16 %v1568
      %v1686 = vunpack.c.l.b16 %v1569
      %v1687 = vunpack.c.l.b16 %v1570
      %v1688 = vunpack.c.l.b16 %v1571
      %v1689 = vunpack.c.l.b16 %v1572
      %v1690 = vunpack.c.l.b16 %v1573
      %v1691 = vunpack.c.l.b16 %v1574
      %v1692 = vunpack.c.l.b16 %v1575
      %v1693 = vunpack.c.l.b16 %v1576
      %v1694 = vunpack.c.l.b16 %v1577
      %v1695 = vunpack.c.l.b16 %v1578
      %v1696 = vunpack.c.l.b16 %v1579
      %v1697 = vunpack.c.l.b16 %v1580
      %v1698 = vunpack.c.l.b16 %v1581
      %v1699 = vunpack.c.l.b16 %v1582
      %v1700 = vunpack.c.l.b16 %v1583
      %v1701 = vunpack.c.l.b16 %v1584
      %v1702 = vunpack.c.l.b16 %v1585
      %v1703 = vunpack.c.l.b16 %v1586
      %v1704 = vunpack.c.l.b16 %v1587
      %v1705 = vunpack.c.l.b16 %v1588
      %v1706 = vunpack.c.l.b16 %v1589
      %v1707 = vunpack.c.l.b16 %v1590
      %v1708 = vunpack.c.l.b16 %v1591
      %v1709 = vunpack.c.l.b16 %v1592
      %v1710 = vunpack.c.l.b16 %v1593
      %v1711 = vunpack.c.l.b16 %v1594
      %v1712 = vunpack.c.l.b16 %v1595
      %v1713 = vunpack.c.l.b16 %v1596
      %v1714 = vunpack.c.l.b16 %v1597
      %v1715 = vunpack.c.l.b16 %v1598
      %v1716 = vunpack.c.l.b16 %v1599
      %v1717 = vunpack.c.l.b16 %v1600
      %v1718 = vunpack.c.l.b16 %v1601
      %v1719 = vunpack.c.l.b16 %v1602
      %v1720 = vunpack.c.l.b16 %v1603
      %v1721 = vunpack.c.l.b16 %v1604
      %v1722 = vunpack.c.l.b16 %v1605
      %v1723 = vunpack.c.l.b16 %v1606
      %v1724 = vunpack.c.l.b16 %v1607
      %v1725 = vunpack.c.l.b16 %v1608
      %v1726 = vpack.c.b16 %v1679, %v1678
      %v1727 = vpack.c.b16 %v1681, %v1680
      %v1728 = vpack.c.b16 %v1683, %v1682
      %v1729 = vpack.c.b16 %v1685, %v1684
      %v1730 = vpack.c.b16 %v1687, %v1686
      %v1731 = vpack.c.b16 %v1689, %v1688
      %v1732 = vpack.c.b16 %v1691, %v1690
      %v1733 = vpack.c.b16 %v1693, %v1692
      %v1734 = vpack.c.b16 %v1695, %v1694
      %v1735 = vpack.c.b16 %v1697, %v1696
      %v1736 = vpack.c.b16 %v1699, %v1698
      %v1737 = vpack.c.b16 %v1701, %v1700
      %v1738 = vpack.c.b16 %v1703, %v1702
      %v1739 = vpack.c.b16 %v1705, %v1704
      %v1740 = vpack.c.b16 %v1707, %v1706
      %v1741 = vpack.c.b16 %v1709, %v1708
      %v1742 = vpack.c.b16 %v1711, %v1710
      %v1743 = vpack.c.b16 %v1713, %v1712
      %v1744 = vpack.c.b16 %v1715, %v1714
      %v1745 = vpack.c.b16 %v1717, %v1716
      %v1746 = vpack.c.b16 %v1719, %v1718
      %v1747 = vpack.c.b16 %v1721, %v1720
      %v1748 = vpack.c.b16 %v1723, %v1722
      %v1749 = vpack.c.b16 %v1725, %v1724
      %1774 = vmatprep.subr.bf16.mxu0 0
      %1775 = vmatpush1.bf16.msra.mxu0 %v1733
      %1776 = vmatprep.subr.bf16.mxu0 0
      %1777 = vmatpush1.bf16.msra.mxu0 %v1732
      %1778 = vmatprep.subr.bf16.mxu0 0
      %1779 = vmatpush1.bf16.msra.mxu0 %v1731
      %1780 = vmatprep.subr.bf16.mxu0 0
      %1781 = vmatpush1.bf16.msra.mxu0 %v1730
      %1782 = vmatprep.subr.bf16.mxu0 0
      %1783 = vmatpush1.bf16.msra.mxu0 %v1729
      %1784 = vmatprep.subr.bf16.mxu0 0
      %1785 = vmatpush1.bf16.msra.mxu0 %v1728
      %1786 = vmatprep.subr.bf16.mxu0 0
      %1787 = vmatpush1.bf16.msra.mxu0 %v1727
      %1788 = vmatprep.subr.bf16.mxu0 0
      %1789 = vmatpush1.bf16.msra.mxu0 %v1726
      %1790 = vmatprep.subr.bf16.mxu0 0
      %1791 = vmatpush2.bf16.msra.mxu0 %v1741
      %1792 = vmatprep.subr.bf16.mxu0 0
      %1793 = vmatpush2.bf16.msra.mxu0 %v1740
      %1794 = vmatprep.subr.bf16.mxu0 0
      %1795 = vmatpush2.bf16.msra.mxu0 %v1739
      %1796 = vmatprep.subr.bf16.mxu0 0
      %1797 = vmatpush2.bf16.msra.mxu0 %v1738
      %1798 = vmatprep.subr.bf16.mxu0 0
      %1799 = vmatpush2.bf16.msra.mxu0 %v1737
      %1800 = vmatprep.subr.bf16.mxu0 0
      %1801 = vmatpush2.bf16.msra.mxu0 %v1736
      %1802 = vmatprep.subr.bf16.mxu0 0
      %1803 = vmatpush2.bf16.msra.mxu0 %v1735
      %1804 = vmatprep.subr.bf16.mxu0 0
      %1805 = vmatpush2.bf16.msra.mxu0 %v1734
      %1806 = vmatprep.mubr.bf16.mxu0 %v1622
      %1807 = vmatmul.mubr.bf16.gmra.mxu0 %v1621
      %v1808 = vpop.f32.mrf.mxu0
      %v1809 = vadd.f32 %v1628, %v1808
      %v1810 = vpop.f32.mrf.mxu0
      %v1811 = vpop.f32.mrf.mxu0
      %v1812 = vpop.f32.mrf.mxu0
      %1813 = vdwg.mxu0
      %1814 = vmatprep.subr.bf16.mxu0 0
      %1815 = vmatpush1.bf16.msra.mxu0 %v1749
      %1816 = vmatprep.subr.bf16.mxu0 0
      %1817 = vmatpush1.bf16.msra.mxu0 %v1748
      %1818 = vmatprep.subr.bf16.mxu0 0
      %1819 = vmatpush1.bf16.msra.mxu0 %v1747
      %1820 = vmatprep.subr.bf16.mxu0 0
      %1821 = vmatpush1.bf16.msra.mxu0 %v1746
      %1822 = vmatprep.subr.bf16.mxu0 0
      %1823 = vmatpush1.bf16.msra.mxu0 %v1745
      %1824 = vmatprep.subr.bf16.mxu0 0
      %1825 = vmatpush1.bf16.msra.mxu0 %v1744
      %1826 = vmatprep.subr.bf16.mxu0 0
      %1827 = vmatpush1.bf16.msra.mxu0 %v1743
      %1828 = vmatprep.subr.bf16.mxu0 0
      %1829 = vmatpush1.bf16.msra.mxu0 %v1742
      %1830 = vmatprep.subr.bf16.mxu0 0
      %1831 = vmatpush2.bf16.msra.mxu0 0
      %1832 = vmatprep.subr.bf16.mxu0 0
      %1833 = vmatpush2.bf16.msra.mxu0 0
      %1834 = vmatprep.subr.bf16.mxu0 0
      %1835 = vmatpush2.bf16.msra.mxu0 0
      %1836 = vmatprep.subr.bf16.mxu0 0
      %1837 = vmatpush2.bf16.msra.mxu0 0
      %1838 = vmatprep.subr.bf16.mxu0 0
      %1839 = vmatpush2.bf16.msra.mxu0 0
      %1840 = vmatprep.subr.bf16.mxu0 0
      %1841 = vmatpush2.bf16.msra.mxu0 0
      %1842 = vmatprep.subr.bf16.mxu0 0
      %1843 = vmatpush2.bf16.msra.mxu0 0
      %1844 = vmatprep.subr.bf16.mxu0 0
      %1845 = vmatpush2.bf16.msra.mxu0 0
      %1846 = vmatprep.mubr.bf16.mxu0 0
      %1847 = vmatmul.mubr.bf16.gmra.mxu0 %v1623
      %v1848 = vpop.f32.mrf.mxu0
      %v1849 = vadd.f32 %v1809, %v1848
      %v1850 = vpop.f32.mrf.mxu0
      %v1851 = vpop.f32.mrf.mxu0
      %v1852 = vpop.f32.mrf.mxu0
      %1853 = vdwg.mxu0
      %v1855 = vrot.slane %v1849, 1
      %v1858 = vadd.f32 %v1252, %v1849
      %v1859 = vadd.f32 %v1259, %v1855
      %vm1860 = vcmp.ge.f32.partialorder %v1858, 0.0
      %vm1861 = vcmp.ge.f32.partialorder %v1859, 0.0
      %v1862 = vmul.f32 %v1858, 0.1
      %v1863 = vmul.f32 %v1859, 0.1
      %v1864 = vsel %vm1860, %v1858, %v1862
      %v1865 = vsel %vm1861, %v1859, %v1863
      %v1866 = vsel %vm691, %v1864, -inf
      %v1867 = vsel %vm691, %v1865, -inf
      %v1868 = vmax.f32 %v1866, %v1867
      %v1869 = vadd.f32 %v66, %v1868
    $region38: #{device_forward.4} parent=1 // loop_footer
      %s65 = sadd.s32 1, %s61
    $region39: #{device_forward.4} parent=1 // loop_footer_branch
      %60 = sbr.rel target = $region35
    $region40: #{device_forward.4} parent=1 // loop_exit
      _
    %v1870 = vmul.f32 %v66, 0.5
    %1871 = vst [vmem:[%s5] sm:$0x1] %v1870
    // Predicated region
    $region41: #{device_forward.4} parent=1 // pred_check
      _
    $region42: #{device_forward.4} parent=1 // pred_check_branch
      %1873 = sbr.rel (0) target = $region44
    $region43: #{device_forward.4} parent=1 // pred_region
      _
    $region44: #{device_forward.4} parent=1 // pred_fallthru
      _
    // Predicated region
    $region45: #{device_forward.4} parent=1 // pred_check
      _
    $region46: #{device_forward.4} parent=1 // pred_check_branch
      %1875 = sbr.rel (0) target = $region48
    $region47: #{device_forward.4} parent=1 // pred_region
      _
    $region48: #{device_forward.4} parent=1 // pred_fallthru
      _
    %1876 = vsyncpa [#allocation3], 1
    %1877 = vsyncpa [#allocation5], 1

// kernel: device_forward.5
$region0: #{device_forward.5}
  #allocation0 [shape = 'u32[]', space=smem, size = 0x4, offset = 0x4, fixed_abs, tag = 'smem constant byte address 0x4 - core index']
  #allocation1 [shape = 'u32[144,128]{1,0:T(1,128)}', space=vmem, size = 0x12000, scoped, tag = 'internal scratch']
  #allocation2 [shape = 'f32[8,384]{1,0:T(8,128)}', space=vmem, size = 0x3000, scoped, tag = 'scratch operand']
  #allocation3 [shape = 'f32[8,384]{1,0:T(8,128)}', space=vmem, size = 0x3000, scoped, tag = 'scratch operand']
  #allocation4 [shape = 'f32[8,128]{1,0:T(8,128)}', space=vmem, size = 0x1000, scoped, tag = 'scratch operand']
  #allocation5 [shape = 'f32[8,128]{1,0:T(8,128)}', space=vmem, size = 0x1000, scoped, tag = 'scratch operand']
  %s0 = inlined_call_operand.vmem [shape: bf16[8,384], index: 0, kind: input, shape index: {}]
  %s1 = inlined_call_operand.vmem [shape: bf16[768,384], index: 1, kind: input, shape index: {}]
  %s2 = inlined_call_operand.hbm [shape: f32[1,768], index: 2, kind: input, shape index: {}]
  %s3 = inlined_call_operand.hbm [shape: bf16[768,256], index: 3, kind: input, shape index: {}]
  %s4 = inlined_call_operand.hbm [shape: f32[1,768], index: 4, kind: input, shape index: {}]
  %s5 = inlined_call_operand.vmem [shape: bf16[128,256], index: 5, kind: input, shape index: {}]
  %s6 = inlined_call_operand.hbm [shape: f32[1,128], index: 6, kind: input, shape index: {}]
  %s7 = inlined_call_operand.vmem [shape: f32[8,128], index: 7, kind: output, shape index: {}]
  %s8 = sld [smem:[#allocation0]]
  $region61: #{device_forward.5} parent=0
    _
  %s10 = ssub.s32 1, %s8
  %s11 = scalar_select 0, %s10, %s8
  $region1: #{device_forward.5} parent=0
    #allocation6 [shape = 'u8[3072]{0}', space=vmem, size = 0xc00, scoped, tag = 'input window, operand 2, single buffered']
    #allocation7 [shape = 's32[1]{0}', space=sflag, size = 0x4, scoped, tag = 'scoped memory for device_forward.5']
    #allocation8 [shape = 'u8[393216]{0}', space=vmem, size = 0x60000, scoped, tag = 'input window, operand 3, single buffered']
    #allocation9 [shape = 's32[1]{0}', space=sflag, size = 0x4, scoped, tag = 'scoped memory for device_forward.5']
    #allocation10 [shape = 'u8[3072]{0}', space=vmem, size = 0xc00, scoped, tag = 'input window, operand 4, single buffered']
    #allocation11 [shape = 'u8[512]{0}', space=vmem, size = 0x400, scoped, tag = 'input window, operand 6, single buffered']
    #allocation12 [shape = 's32[1]{0}', space=sflag, size = 0x4, scoped, tag = 'scoped memory for device_forward.5']
    %12 = vsyncpa [#allocation7], 0
    %13 = vsyncpa [#allocation9], 0
    %14 = vsyncpa [#allocation12], 0
    // Predicated region
    $region2: #{device_forward.5} parent=1 // pred_check
      _
    $region3: #{device_forward.5} parent=1 // pred_check_branch
      %16 = sbr.rel (0) target = $region5
    $region4: #{device_forward.5} parent=1 // pred_region
      _
    $region5: #{device_forward.5} parent=1 // pred_fallthru
      _
    // Predicated region
    $region6: #{device_forward.5} parent=1 // pred_check
      _
    $region7: #{device_forward.5} parent=1 // pred_check_branch
      %18 = sbr.rel (0) target = $region9
    $region8: #{device_forward.5} parent=1 // pred_region
      _
    $region9: #{device_forward.5} parent=1 // pred_fallthru
      _
    // Predicated region
    $region10: #{device_forward.5} parent=1 // pred_check
      _
    $region11: #{device_forward.5} parent=1 // pred_check_branch
      %20 = sbr.rel (0) target = $region13
    $region12: #{device_forward.5} parent=1 // pred_region
      %s22 = ssub.s32 96, 96
      %23 = vsyncadd [#allocation7], %s22
      %s25 = sshll.u32 [#allocation6], 4
      %s26 = int_to_ptr.vmem [resolvable:$true] %s25
      %28 = dma.hbm_to_vmem [thread:$0]  %s2, 96, %s26, [#allocation7]
    $region13: #{device_forward.5} parent=1 // pred_fallthru
      _
    // Predicated region
    $region14: #{device_forward.5} parent=1 // pred_check
      _
    $region15: #{device_forward.5} parent=1 // pred_check_branch
      %30 = sbr.rel (0) target = $region17
    $region16: #{device_forward.5} parent=1 // pred_region
      %s32 = ssub.s32 12288, 12288
      %33 = vsyncadd [#allocation9], %s32
      %s34 = sshll.u32 [#allocation8], 4
      %s35 = int_to_ptr.vmem [resolvable:$true] %s34
      %40 = dma.hbm_to_vmem [thread:$0]  %s3, 12288, %s35, [#allocation9], 128, 128, 8
    $region17: #{device_forward.5} parent=1 // pred_fallthru
      _
    // Predicated region
    $region18: #{device_forward.5} parent=1 // pred_check
      _
    $region19: #{device_forward.5} parent=1 // pred_check_branch
      %42 = sbr.rel (0) target = $region21
    $region20: #{device_forward.5} parent=1 // pred_region
      %s44 = ssub.s32 96, 96
      %45 = vsyncadd [#allocation9], %s44
      %s47 = sshll.u32 [#allocation10], 4
      %s48 = int_to_ptr.vmem [resolvable:$true] %s47
      %50 = dma.hbm_to_vmem [thread:$0]  %s4, 96, %s48, [#allocation9]
    $region21: #{device_forward.5} parent=1 // pred_fallthru
      _
    // Predicated region
    $region22: #{device_forward.5} parent=1 // pred_check
      _
    $region23: #{device_forward.5} parent=1 // pred_check_branch
      %52 = sbr.rel (0) target = $region25
    $region24: #{device_forward.5} parent=1 // pred_region
      _
    $region25: #{device_forward.5} parent=1 // pred_fallthru
      _
    // Predicated region
    $region26: #{device_forward.5} parent=1 // pred_check
      _
    $region27: #{device_forward.5} parent=1 // pred_check_branch
      %54 = sbr.rel (0) target = $region29
    $region28: #{device_forward.5} parent=1 // pred_region
      %s56 = ssub.s32 16, 16
      %57 = vsyncadd [#allocation12], %s56
      %s59 = sshll.u32 [#allocation11], 4
      %s60 = int_to_ptr.vmem [resolvable:$true] %s59
      %62 = dma.hbm_to_vmem [thread:$0]  %s6, 16, %s60, [#allocation12]
    $region29: #{device_forward.5} parent=1 // pred_fallthru
      _
    // Predicated region
    $region30: #{device_forward.5} parent=1 // pred_check
      _
    $region31: #{device_forward.5} parent=1 // pred_check_branch
      %64 = sbr.rel (0) target = $region33
    $region32: #{device_forward.5} parent=1 // pred_region
      %65 = dma.done [#allocation7], 96
    $region33: #{device_forward.5} parent=1 // pred_fallthru
      _
    // Predicated region
    $region34: #{device_forward.5} parent=1 // pred_check
      _
    $region35: #{device_forward.5} parent=1 // pred_check_branch
      %67 = sbr.rel (0) target = $region37
    $region36: #{device_forward.5} parent=1 // pred_region
      %68 = dma.done [#allocation9], 12288
    $region37: #{device_forward.5} parent=1 // pred_fallthru
      _
    // Predicated region
    $region38: #{device_forward.5} parent=1 // pred_check
      _
    $region39: #{device_forward.5} parent=1 // pred_check_branch
      %70 = sbr.rel (0) target = $region41
    $region40: #{device_forward.5} parent=1 // pred_region
      %71 = dma.done [#allocation9], 96
    $region41: #{device_forward.5} parent=1 // pred_fallthru
      _
    // Predicated region
    $region42: #{device_forward.5} parent=1 // pred_check
      _
    $region43: #{device_forward.5} parent=1 // pred_check_branch
      %73 = sbr.rel (0) target = $region45
    $region44: #{device_forward.5} parent=1 // pred_region
      %74 = dma.done [#allocation12], 16
    $region45: #{device_forward.5} parent=1 // pred_fallthru
      _
    %v76 = vld [vmem:[%s0] sm:$0xff]
    %v77 = vld [vmem:[%s0 + $0x8] sm:$0xf]
    %v78 = vld [vmem:[%s1] sm:$0xff]
    %v79 = vld [vmem:[%s1 + $0x8] sm:$0xf]
    %v80 = vld [vmem:[%s1 + $0xc] sm:$0xff]
    %v81 = vld [vmem:[%s1 + $0x14] sm:$0xf]
    %v82 = vld [vmem:[%s1 + $0x18] sm:$0xff]
    %v83 = vld [vmem:[%s1 + $0x20] sm:$0xf]
    %v84 = vld [vmem:[%s1 + $0x24] sm:$0xff]
    %v85 = vld [vmem:[%s1 + $0x2c] sm:$0xf]
    %v86 = vld [vmem:[%s1 + $0x30] sm:$0xff]
    %v87 = vld [vmem:[%s1 + $0x38] sm:$0xf]
    %v88 = vld [vmem:[%s1 + $0x3c] sm:$0xff]
    %v89 = vld [vmem:[%s1 + $0x44] sm:$0xf]
    %v90 = vld [vmem:[%s1 + $0x48] sm:$0xff]
    %v91 = vld [vmem:[%s1 + $0x50] sm:$0xf]
    %v92 = vld [vmem:[%s1 + $0x54] sm:$0xff]
    %v93 = vld [vmem:[%s1 + $0x5c] sm:$0xf]
    %v94 = vld [vmem:[%s1 + $0x60] sm:$0xff]
    %v95 = vld [vmem:[%s1 + $0x68] sm:$0xf]
    %v96 = vld [vmem:[%s1 + $0x6c] sm:$0xff]
    %v97 = vld [vmem:[%s1 + $0x74] sm:$0xf]
    %v98 = vld [vmem:[%s1 + $0x78] sm:$0xff]
    %v99 = vld [vmem:[%s1 + $0x80] sm:$0xf]
    %v100 = vld [vmem:[%s1 + $0x84] sm:$0xff]
    %v101 = vld [vmem:[%s1 + $0x8c] sm:$0xf]
    %v102 = vld [vmem:[%s1 + $0x90] sm:$0xff]
    %v103 = vld [vmem:[%s1 + $0x98] sm:$0xf]
    %v104 = vld [vmem:[%s1 + $0x9c] sm:$0xff]
    %v105 = vld [vmem:[%s1 + $0xa4] sm:$0xf]
    %v106 = vld [vmem:[%s1 + $0xa8] sm:$0xff]
    %v107 = vld [vmem:[%s1 + $0xb0] sm:$0xf]
    %v108 = vld [vmem:[%s1 + $0xb4] sm:$0xff]
    %v109 = vld [vmem:[%s1 + $0xbc] sm:$0xf]
    %v110 = vld [vmem:[%s1 + $0xc0] sm:$0xff]
    %v111 = vld [vmem:[%s1 + $0xc8] sm:$0xf]
    %v112 = vld [vmem:[%s1 + $0xcc] sm:$0xff]
    %v113 = vld [vmem:[%s1 + $0xd4] sm:$0xf]
    %v114 = vld [vmem:[%s1 + $0xd8] sm:$0xff]
    %v115 = vld [vmem:[%s1 + $0xe0] sm:$0xf]
    %v116 = vld [vmem:[%s1 + $0xe4] sm:$0xff]
    %v117 = vld [vmem:[%s1 + $0xec] sm:$0xf]
    %v118 = vld [vmem:[%s1 + $0xf0] sm:$0xff]
    %v119 = vld [vmem:[%s1 + $0xf8] sm:$0xf]
    %v120 = vld [vmem:[%s1 + $0xfc] sm:$0xff]
    %v121 = vld [vmem:[%s1 + $0x104] sm:$0xf]
    %v122 = vld [vmem:[%s1 + $0x108] sm:$0xff]
    %v123 = vld [vmem:[%s1 + $0x110] sm:$0xf]
    %v124 = vld [vmem:[%s1 + $0x114] sm:$0xff]
    %v125 = vld [vmem:[%s1 + $0x11c] sm:$0xf]
    %v126 = vld [vmem:[%s1 + $0x120] sm:$0xff]
    %v127 = vld [vmem:[%s1 + $0x128] sm:$0xf]
    %v128 = vld [vmem:[%s1 + $0x12c] sm:$0xff]
    %v129 = vld [vmem:[%s1 + $0x134] sm:$0xf]
    %v130 = vld [vmem:[%s1 + $0x138] sm:$0xff]
    %v131 = vld [vmem:[%s1 + $0x140] sm:$0xf]
    %v132 = vld [vmem:[%s1 + $0x144] sm:$0xff]
    %v133 = vld [vmem:[%s1 + $0x14c] sm:$0xf]
    %v134 = vld [vmem:[%s1 + $0x150] sm:$0xff]
    %v135 = vld [vmem:[%s1 + $0x158] sm:$0xf]
    %v136 = vld [vmem:[%s1 + $0x15c] sm:$0xff]
    %v137 = vld [vmem:[%s1 + $0x164] sm:$0xf]
    %v138 = vld [vmem:[%s1 + $0x168] sm:$0xff]
    %v139 = vld [vmem:[%s1 + $0x170] sm:$0xf]
    %v140 = vld [vmem:[%s1 + $0x174] sm:$0xff]
    %v141 = vld [vmem:[%s1 + $0x17c] sm:$0xf]
    %v142 = vld [vmem:[%s1 + $0x180] sm:$0xff]
    %v143 = vld [vmem:[%s1 + $0x188] sm:$0xf]
    %v144 = vld [vmem:[%s1 + $0x18c] sm:$0xff]
    %v145 = vld [vmem:[%s1 + $0x194] sm:$0xf]
    %v146 = vld [vmem:[%s1 + $0x198] sm:$0xff]
    %v147 = vld [vmem:[%s1 + $0x1a0] sm:$0xf]
    %v148 = vld [vmem:[%s1 + $0x1a4] sm:$0xff]
    %v149 = vld [vmem:[%s1 + $0x1ac] sm:$0xf]
    %v150 = vld [vmem:[%s1 + $0x1b0] sm:$0xff]
    %v151 = vld [vmem:[%s1 + $0x1b8] sm:$0xf]
    %v152 = vld [vmem:[%s1 + $0x1bc] sm:$0xff]
    %v153 = vld [vmem:[%s1 + $0x1c4] sm:$0xf]
    %v154 = vld [vmem:[%s1 + $0x1c8] sm:$0xff]
    %v155 = vld [vmem:[%s1 + $0x1d0] sm:$0xf]
    %v156 = vld [vmem:[%s1 + $0x1d4] sm:$0xff]
    %v157 = vld [vmem:[%s1 + $0x1dc] sm:$0xf]
    %v158 = vld [vmem:[%s1 + $0x1e0] sm:$0xff]
    %v159 = vld [vmem:[%s1 + $0x1e8] sm:$0xf]
    %v160 = vld [vmem:[%s1 + $0x1ec] sm:$0xff]
    %v161 = vld [vmem:[%s1 + $0x1f4] sm:$0xf]
    %v162 = vld [vmem:[%s1 + $0x1f8] sm:$0xff]
    %v163 = vld [vmem:[%s1 + $0x200] sm:$0xf]
    %v164 = vld [vmem:[%s1 + $0x204] sm:$0xff]
    %v165 = vld [vmem:[%s1 + $0x20c] sm:$0xf]
    %v166 = vld [vmem:[%s1 + $0x210] sm:$0xff]
    %v167 = vld [vmem:[%s1 + $0x218] sm:$0xf]
    %v168 = vld [vmem:[%s1 + $0x21c] sm:$0xff]
    %v169 = vld [vmem:[%s1 + $0x224] sm:$0xf]
    %v170 = vld [vmem:[%s1 + $0x228] sm:$0xff]
    %v171 = vld [vmem:[%s1 + $0x230] sm:$0xf]
    %v172 = vld [vmem:[%s1 + $0x234] sm:$0xff]
    %v173 = vld [vmem:[%s1 + $0x23c] sm:$0xf]
    %v174 = vld [vmem:[%s1 + $0x240] sm:$0xff]
    %v175 = vld [vmem:[%s1 + $0x248] sm:$0xf]
    %v176 = vld [vmem:[%s1 + $0x24c] sm:$0xff]
    %v177 = vld [vmem:[%s1 + $0x254] sm:$0xf]
    %v178 = vld [vmem:[%s1 + $0x258] sm:$0xff]
    %v179 = vld [vmem:[%s1 + $0x260] sm:$0xf]
    %v180 = vld [vmem:[%s1 + $0x264] sm:$0xff]
    %v181 = vld [vmem:[%s1 + $0x26c] sm:$0xf]
    %v182 = vld [vmem:[%s1 + $0x270] sm:$0xff]
    %v183 = vld [vmem:[%s1 + $0x278] sm:$0xf]
    %v184 = vld [vmem:[%s1 + $0x27c] sm:$0xff]
    %v185 = vld [vmem:[%s1 + $0x284] sm:$0xf]
    %v186 = vld [vmem:[%s1 + $0x288] sm:$0xff]
    %v187 = vld [vmem:[%s1 + $0x290] sm:$0xf]
    %v188 = vld [vmem:[%s1 + $0x294] sm:$0xff]
    %v189 = vld [vmem:[%s1 + $0x29c] sm:$0xf]
    %v190 = vld [vmem:[%s1 + $0x2a0] sm:$0xff]
    %v191 = vld [vmem:[%s1 + $0x2a8] sm:$0xf]
    %v192 = vld [vmem:[%s1 + $0x2ac] sm:$0xff]
    %v193 = vld [vmem:[%s1 + $0x2b4] sm:$0xf]
    %v194 = vld [vmem:[%s1 + $0x2b8] sm:$0xff]
    %v195 = vld [vmem:[%s1 + $0x2c0] sm:$0xf]
    %v196 = vld [vmem:[%s1 + $0x2c4] sm:$0xff]
    %v197 = vld [vmem:[%s1 + $0x2cc] sm:$0xf]
    %v198 = vld [vmem:[%s1 + $0x2d0] sm:$0xff]
    %v199 = vld [vmem:[%s1 + $0x2d8] sm:$0xf]
    %v200 = vld [vmem:[%s1 + $0x2dc] sm:$0xff]
    %v201 = vld [vmem:[%s1 + $0x2e4] sm:$0xf]
    %v202 = vld [vmem:[%s1 + $0x2e8] sm:$0xff]
    %v203 = vld [vmem:[%s1 + $0x2f0] sm:$0xf]
    %v204 = vld [vmem:[%s1 + $0x2f4] sm:$0xff]
    %v205 = vld [vmem:[%s1 + $0x2fc] sm:$0xf]
    %v206 = vld [vmem:[%s1 + $0x300] sm:$0xff]
    %v207 = vld [vmem:[%s1 + $0x308] sm:$0xf]
    %v208 = vld [vmem:[%s1 + $0x30c] sm:$0xff]
    %v209 = vld [vmem:[%s1 + $0x314] sm:$0xf]
    %v210 = vld [vmem:[%s1 + $0x318] sm:$0xff]
    %v211 = vld [vmem:[%s1 + $0x320] sm:$0xf]
    %v212 = vld [vmem:[%s1 + $0x324] sm:$0xff]
    %v213 = vld [vmem:[%s1 + $0x32c] sm:$0xf]
    %v214 = vld [vmem:[%s1 + $0x330] sm:$0xff]
    %v215 = vld [vmem:[%s1 + $0x338] sm:$0xf]
    %v216 = vld [vmem:[%s1 + $0x33c] sm:$0xff]
    %v217 = vld [vmem:[%s1 + $0x344] sm:$0xf]
    %v218 = vld [vmem:[%s1 + $0x348] sm:$0xff]
    %v219 = vld [vmem:[%s1 + $0x350] sm:$0xf]
    %v220 = vld [vmem:[%s1 + $0x354] sm:$0xff]
    %v221 = vld [vmem:[%s1 + $0x35c] sm:$0xf]
    %v222 = vld [vmem:[%s1 + $0x360] sm:$0xff]
    %v223 = vld [vmem:[%s1 + $0x368] sm:$0xf]
    %v224 = vld [vmem:[%s1 + $0x36c] sm:$0xff]
    %v225 = vld [vmem:[%s1 + $0x374] sm:$0xf]
    %v226 = vld [vmem:[%s1 + $0x378] sm:$0xff]
    %v227 = vld [vmem:[%s1 + $0x380] sm:$0xf]
    %v228 = vld [vmem:[%s1 + $0x384] sm:$0xff]
    %v229 = vld [vmem:[%s1 + $0x38c] sm:$0xf]
    %v230 = vld [vmem:[%s1 + $0x390] sm:$0xff]
    %v231 = vld [vmem:[%s1 + $0x398] sm:$0xf]
    %v232 = vld [vmem:[%s1 + $0x39c] sm:$0xff]
    %v233 = vld [vmem:[%s1 + $0x3a4] sm:$0xf]
    %v234 = vld [vmem:[%s1 + $0x3a8] sm:$0xff]
    %v235 = vld [vmem:[%s1 + $0x3b0] sm:$0xf]
    %v236 = vld [vmem:[%s1 + $0x3b4] sm:$0xff]
    %v237 = vld [vmem:[%s1 + $0x3bc] sm:$0xf]
    %v238 = vld [vmem:[%s1 + $0x3c0] sm:$0xff]
    %v239 = vld [vmem:[%s1 + $0x3c8] sm:$0xf]
    %v240 = vld [vmem:[%s1 + $0x3cc] sm:$0xff]
    %v241 = vld [vmem:[%s1 + $0x3d4] sm:$0xf]
    %v242 = vld [vmem:[%s1 + $0x3d8] sm:$0xff]
    %v243 = vld [vmem:[%s1 + $0x3e0] sm:$0xf]
    %v244 = vld [vmem:[%s1 + $0x3e4] sm:$0xff]
    %v245 = vld [vmem:[%s1 + $0x3ec] sm:$0xf]
    %v246 = vld [vmem:[%s1 + $0x3f0] sm:$0xff]
    %v247 = vld [vmem:[%s1 + $0x3f8] sm:$0xf]
    %v248 = vld [vmem:[%s1 + $0x3fc] sm:$0xff]
    %v249 = vld [vmem:[%s1 + $0x404] sm:$0xf]
    %v250 = vld [vmem:[%s1 + $0x408] sm:$0xff]
    %v251 = vld [vmem:[%s1 + $0x410] sm:$0xf]
    %v252 = vld [vmem:[%s1 + $0x414] sm:$0xff]
    %v253 = vld [vmem:[%s1 + $0x41c] sm:$0xf]
    %v254 = vld [vmem:[%s1 + $0x420] sm:$0xff]
    %v255 = vld [vmem:[%s1 + $0x428] sm:$0xf]
    %v256 = vld [vmem:[%s1 + $0x42c] sm:$0xff]
    %v257 = vld [vmem:[%s1 + $0x434] sm:$0xf]
    %v258 = vld [vmem:[%s1 + $0x438] sm:$0xff]
    %v259 = vld [vmem:[%s1 + $0x440] sm:$0xf]
    %v260 = vld [vmem:[%s1 + $0x444] sm:$0xff]
    %v261 = vld [vmem:[%s1 + $0x44c] sm:$0xf]
    %v262 = vld [vmem:[%s1 + $0x450] sm:$0xff]
    %v263 = vld [vmem:[%s1 + $0x458] sm:$0xf]
    %v264 = vld [vmem:[%s1 + $0x45c] sm:$0xff]
    %v265 = vld [vmem:[%s1 + $0x464] sm:$0xf]
    %v266 = vld [vmem:[%s1 + $0x468] sm:$0xff]
    %v267 = vld [vmem:[%s1 + $0x470] sm:$0xf]
    %v268 = vld [vmem:[%s1 + $0x474] sm:$0xff]
    %v269 = vld [vmem:[%s1 + $0x47c] sm:$0xf]
    %v270 = vld [vmem:[#allocation6] sm:$0x3f]
    %v272 = vlaneseq
    %v273 = vshrl.u32 %v272, 7
    %v274 = vsub.s32 0, %v273
    %v275 = vrot.slane %v270, %v274
    %v276 = vlaneseq
    %v277 = vshrl.u32 %v276, 7
    %v278 = vsub.s32 1, %v277
    %v279 = vrot.slane %v270, %v278
    %v280 = vlaneseq
    %v281 = vshrl.u32 %v280, 7
    %v282 = vsub.s32 2, %v281
    %v283 = vrot.slane %v270, %v282
    %v284 = vlaneseq
    %v285 = vshrl.u32 %v284, 7
    %v286 = vsub.s32 3, %v285
    %v287 = vrot.slane %v270, %v286
    %v288 = vlaneseq
    %v289 = vshrl.u32 %v288, 7
    %v290 = vsub.s32 4, %v289
    %v291 = vrot.slane %v270, %v290
    %v292 = vlaneseq
    %v293 = vshrl.u32 %v292, 7
    %v294 = vsub.s32 5, %v293
    %v295 = vrot.slane %v270, %v294
    %v304 = vunpack.c.l.b16 %v76
    %v305 = vunpack.c.h.b16 %v76
    %v306 = vunpack.c.l.b16 %v77
    %v307 = vpack.c.b16 %v304, %v304
    %v308 = vpack.c.b16 %v305, %v305
    %v309 = vpack.c.b16 %v306, %v306
    %v505 = vunpack.c.l.b16 %v78
    %v506 = vunpack.c.h.b16 %v78
    %v507 = vunpack.c.l.b16 %v79
    %v508 = vunpack.c.l.b16 %v80
    %v509 = vunpack.c.h.b16 %v80
    %v510 = vunpack.c.l.b16 %v81
    %v511 = vunpack.c.l.b16 %v82
    %v512 = vunpack.c.h.b16 %v82
    %v513 = vunpack.c.l.b16 %v83
    %v514 = vunpack.c.l.b16 %v84
    %v515 = vunpack.c.h.b16 %v84
    %v516 = vunpack.c.l.b16 %v85
    %v517 = vunpack.c.l.b16 %v86
    %v518 = vunpack.c.h.b16 %v86
    %v519 = vunpack.c.l.b16 %v87
    %v520 = vunpack.c.l.b16 %v88
    %v521 = vunpack.c.h.b16 %v88
    %v522 = vunpack.c.l.b16 %v89
    %v523 = vunpack.c.l.b16 %v90
    %v524 = vunpack.c.h.b16 %v90
    %v525 = vunpack.c.l.b16 %v91
    %v526 = vunpack.c.l.b16 %v92
    %v527 = vunpack.c.h.b16 %v92
    %v528 = vunpack.c.l.b16 %v93
    %v529 = vunpack.c.l.b16 %v94
    %v530 = vunpack.c.h.b16 %v94
    %v531 = vunpack.c.l.b16 %v95
    %v532 = vunpack.c.l.b16 %v96
    %v533 = vunpack.c.h.b16 %v96
    %v534 = vunpack.c.l.b16 %v97
    %v535 = vunpack.c.l.b16 %v98
    %v536 = vunpack.c.h.b16 %v98
    %v537 = vunpack.c.l.b16 %v99
    %v538 = vunpack.c.l.b16 %v100
    %v539 = vunpack.c.h.b16 %v100
    %v540 = vunpack.c.l.b16 %v101
    %v541 = vunpack.c.l.b16 %v102
    %v542 = vunpack.c.h.b16 %v102
    %v543 = vunpack.c.l.b16 %v103
    %v544 = vunpack.c.l.b16 %v104
    %v545 = vunpack.c.h.b16 %v104
    %v546 = vunpack.c.l.b16 %v105
    %v547 = vunpack.c.l.b16 %v106
    %v548 = vunpack.c.h.b16 %v106
    %v549 = vunpack.c.l.b16 %v107
    %v550 = vunpack.c.l.b16 %v108
    %v551 = vunpack.c.h.b16 %v108
    %v552 = vunpack.c.l.b16 %v109
    %v553 = vunpack.c.l.b16 %v110
    %v554 = vunpack.c.h.b16 %v110
    %v555 = vunpack.c.l.b16 %v111
    %v556 = vunpack.c.l.b16 %v112
    %v557 = vunpack.c.h.b16 %v112
    %v558 = vunpack.c.l.b16 %v113
    %v559 = vunpack.c.l.b16 %v114
    %v560 = vunpack.c.h.b16 %v114
    %v561 = vunpack.c.l.b16 %v115
    %v562 = vunpack.c.l.b16 %v116
    %v563 = vunpack.c.h.b16 %v116
    %v564 = vunpack.c.l.b16 %v117
    %v565 = vunpack.c.l.b16 %v118
    %v566 = vunpack.c.h.b16 %v118
    %v567 = vunpack.c.l.b16 %v119
    %v568 = vunpack.c.l.b16 %v120
    %v569 = vunpack.c.h.b16 %v120
    %v570 = vunpack.c.l.b16 %v121
    %v571 = vunpack.c.l.b16 %v122
    %v572 = vunpack.c.h.b16 %v122
    %v573 = vunpack.c.l.b16 %v123
    %v574 = vunpack.c.l.b16 %v124
    %v575 = vunpack.c.h.b16 %v124
    %v576 = vunpack.c.l.b16 %v125
    %v577 = vunpack.c.l.b16 %v126
    %v578 = vunpack.c.h.b16 %v126
    %v579 = vunpack.c.l.b16 %v127
    %v580 = vunpack.c.l.b16 %v128
    %v581 = vunpack.c.h.b16 %v128
    %v582 = vunpack.c.l.b16 %v129
    %v583 = vunpack.c.l.b16 %v130
    %v584 = vunpack.c.h.b16 %v130
    %v585 = vunpack.c.l.b16 %v131
    %v586 = vunpack.c.l.b16 %v132
    %v587 = vunpack.c.h.b16 %v132
    %v588 = vunpack.c.l.b16 %v133
    %v589 = vunpack.c.l.b16 %v134
    %v590 = vunpack.c.h.b16 %v134
    %v591 = vunpack.c.l.b16 %v135
    %v592 = vunpack.c.l.b16 %v136
    %v593 = vunpack.c.h.b16 %v136
    %v594 = vunpack.c.l.b16 %v137
    %v595 = vunpack.c.l.b16 %v138
    %v596 = vunpack.c.h.b16 %v138
    %v597 = vunpack.c.l.b16 %v139
    %v598 = vunpack.c.l.b16 %v140
    %v599 = vunpack.c.h.b16 %v140
    %v600 = vunpack.c.l.b16 %v141
    %v601 = vunpack.c.l.b16 %v142
    %v602 = vunpack.c.h.b16 %v142
    %v603 = vunpack.c.l.b16 %v143
    %v604 = vunpack.c.l.b16 %v144
    %v605 = vunpack.c.h.b16 %v144
    %v606 = vunpack.c.l.b16 %v145
    %v607 = vunpack.c.l.b16 %v146
    %v608 = vunpack.c.h.b16 %v146
    %v609 = vunpack.c.l.b16 %v147
    %v610 = vunpack.c.l.b16 %v148
    %v611 = vunpack.c.h.b16 %v148
    %v612 = vunpack.c.l.b16 %v149
    %v613 = vunpack.c.l.b16 %v150
    %v614 = vunpack.c.h.b16 %v150
    %v615 = vunpack.c.l.b16 %v151
    %v616 = vunpack.c.l.b16 %v152
    %v617 = vunpack.c.h.b16 %v152
    %v618 = vunpack.c.l.b16 %v153
    %v619 = vunpack.c.l.b16 %v154
    %v620 = vunpack.c.h.b16 %v154
    %v621 = vunpack.c.l.b16 %v155
    %v622 = vunpack.c.l.b16 %v156
    %v623 = vunpack.c.h.b16 %v156
    %v624 = vunpack.c.l.b16 %v157
    %v625 = vunpack.c.l.b16 %v158
    %v626 = vunpack.c.h.b16 %v158
    %v627 = vunpack.c.l.b16 %v159
    %v628 = vunpack.c.l.b16 %v160
    %v629 = vunpack.c.h.b16 %v160
    %v630 = vunpack.c.l.b16 %v161
    %v631 = vunpack.c.l.b16 %v162
    %v632 = vunpack.c.h.b16 %v162
    %v633 = vunpack.c.l.b16 %v163
    %v634 = vunpack.c.l.b16 %v164
    %v635 = vunpack.c.h.b16 %v164
    %v636 = vunpack.c.l.b16 %v165
    %v637 = vunpack.c.l.b16 %v166
    %v638 = vunpack.c.h.b16 %v166
    %v639 = vunpack.c.l.b16 %v167
    %v640 = vunpack.c.l.b16 %v168
    %v641 = vunpack.c.h.b16 %v168
    %v642 = vunpack.c.l.b16 %v169
    %v643 = vunpack.c.l.b16 %v170
    %v644 = vunpack.c.h.b16 %v170
    %v645 = vunpack.c.l.b16 %v171
    %v646 = vunpack.c.l.b16 %v172
    %v647 = vunpack.c.h.b16 %v172
    %v648 = vunpack.c.l.b16 %v173
    %v649 = vunpack.c.l.b16 %v174
    %v650 = vunpack.c.h.b16 %v174
    %v651 = vunpack.c.l.b16 %v175
    %v652 = vunpack.c.l.b16 %v176
    %v653 = vunpack.c.h.b16 %v176
    %v654 = vunpack.c.l.b16 %v177
    %v655 = vunpack.c.l.b16 %v178
    %v656 = vunpack.c.h.b16 %v178
    %v657 = vunpack.c.l.b16 %v179
    %v658 = vunpack.c.l.b16 %v180
    %v659 = vunpack.c.h.b16 %v180
    %v660 = vunpack.c.l.b16 %v181
    %v661 = vunpack.c.l.b16 %v182
    %v662 = vunpack.c.h.b16 %v182
    %v663 = vunpack.c.l.b16 %v183
    %v664 = vunpack.c.l.b16 %v184
    %v665 = vunpack.c.h.b16 %v184
    %v666 = vunpack.c.l.b16 %v185
    %v667 = vunpack.c.l.b16 %v186
    %v668 = vunpack.c.h.b16 %v186
    %v669 = vunpack.c.l.b16 %v187
    %v670 = vunpack.c.l.b16 %v188
    %v671 = vunpack.c.h.b16 %v188
    %v672 = vunpack.c.l.b16 %v189
    %v673 = vunpack.c.l.b16 %v190
    %v674 = vunpack.c.h.b16 %v190
    %v675 = vunpack.c.l.b16 %v191
    %v676 = vunpack.c.l.b16 %v192
    %v677 = vunpack.c.h.b16 %v192
    %v678 = vunpack.c.l.b16 %v193
    %v679 = vunpack.c.l.b16 %v194
    %v680 = vunpack.c.h.b16 %v194
    %v681 = vunpack.c.l.b16 %v195
    %v682 = vunpack.c.l.b16 %v196
    %v683 = vunpack.c.h.b16 %v196
    %v684 = vunpack.c.l.b16 %v197
    %v685 = vunpack.c.l.b16 %v198
    %v686 = vunpack.c.h.b16 %v198
    %v687 = vunpack.c.l.b16 %v199
    %v688 = vunpack.c.l.b16 %v200
    %v689 = vunpack.c.h.b16 %v200
    %v690 = vunpack.c.l.b16 %v201
    %v691 = vunpack.c.l.b16 %v202
    %v692 = vunpack.c.h.b16 %v202
    %v693 = vunpack.c.l.b16 %v203
    %v694 = vunpack.c.l.b16 %v204
    %v695 = vunpack.c.h.b16 %v204
    %v696 = vunpack.c.l.b16 %v205
    %v697 = vunpack.c.l.b16 %v206
    %v698 = vunpack.c.h.b16 %v206
    %v699 = vunpack.c.l.b16 %v207
    %v700 = vunpack.c.l.b16 %v208
    %v701 = vunpack.c.h.b16 %v208
    %v702 = vunpack.c.l.b16 %v209
    %v703 = vunpack.c.l.b16 %v210
    %v704 = vunpack.c.h.b16 %v210
    %v705 = vunpack.c.l.b16 %v211
    %v706 = vunpack.c.l.b16 %v212
    %v707 = vunpack.c.h.b16 %v212
    %v708 = vunpack.c.l.b16 %v213
    %v709 = vunpack.c.l.b16 %v214
    %v710 = vunpack.c.h.b16 %v214
    %v711 = vunpack.c.l.b16 %v215
    %v712 = vunpack.c.l.b16 %v216
    %v713 = vunpack.c.h.b16 %v216
    %v714 = vunpack.c.l.b16 %v217
    %v715 = vunpack.c.l.b16 %v218
    %v716 = vunpack.c.h.b16 %v218
    %v717 = vunpack.c.l.b16 %v219
    %v718 = vunpack.c.l.b16 %v220
    %v719 = vunpack.c.h.b16 %v220
    %v720 = vunpack.c.l.b16 %v221
    %v721 = vunpack.c.l.b16 %v222
    %v722 = vunpack.c.h.b16 %v222
    %v723 = vunpack.c.l.b16 %v223
    %v724 = vunpack.c.l.b16 %v224
    %v725 = vunpack.c.h.b16 %v224
    %v726 = vunpack.c.l.b16 %v225
    %v727 = vunpack.c.l.b16 %v226
    %v728 = vunpack.c.h.b16 %v226
    %v729 = vunpack.c.l.b16 %v227
    %v730 = vunpack.c.l.b16 %v228
    %v731 = vunpack.c.h.b16 %v228
    %v732 = vunpack.c.l.b16 %v229
    %v733 = vunpack.c.l.b16 %v230
    %v734 = vunpack.c.h.b16 %v230
    %v735 = vunpack.c.l.b16 %v231
    %v736 = vunpack.c.l.b16 %v232
    %v737 = vunpack.c.h.b16 %v232
    %v738 = vunpack.c.l.b16 %v233
    %v739 = vunpack.c.l.b16 %v234
    %v740 = vunpack.c.h.b16 %v234
    %v741 = vunpack.c.l.b16 %v235
    %v742 = vunpack.c.l.b16 %v236
    %v743 = vunpack.c.h.b16 %v236
    %v744 = vunpack.c.l.b16 %v237
    %v745 = vunpack.c.l.b16 %v238
    %v746 = vunpack.c.h.b16 %v238
    %v747 = vunpack.c.l.b16 %v239
    %v748 = vunpack.c.l.b16 %v240
    %v749 = vunpack.c.h.b16 %v240
    %v750 = vunpack.c.l.b16 %v241
    %v751 = vunpack.c.l.b16 %v242
    %v752 = vunpack.c.h.b16 %v242
    %v753 = vunpack.c.l.b16 %v243
    %v754 = vunpack.c.l.b16 %v244
    %v755 = vunpack.c.h.b16 %v244
    %v756 = vunpack.c.l.b16 %v245
    %v757 = vunpack.c.l.b16 %v246
    %v758 = vunpack.c.h.b16 %v246
    %v759 = vunpack.c.l.b16 %v247
    %v760 = vunpack.c.l.b16 %v248
    %v761 = vunpack.c.h.b16 %v248
    %v762 = vunpack.c.l.b16 %v249
    %v763 = vunpack.c.l.b16 %v250
    %v764 = vunpack.c.h.b16 %v250
    %v765 = vunpack.c.l.b16 %v251
    %v766 = vunpack.c.l.b16 %v252
    %v767 = vunpack.c.h.b16 %v252
    %v768 = vunpack.c.l.b16 %v253
    %v769 = vunpack.c.l.b16 %v254
    %v770 = vunpack.c.h.b16 %v254
    %v771 = vunpack.c.l.b16 %v255
    %v772 = vunpack.c.l.b16 %v256
    %v773 = vunpack.c.h.b16 %v256
    %v774 = vunpack.c.l.b16 %v257
    %v775 = vunpack.c.l.b16 %v258
    %v776 = vunpack.c.h.b16 %v258
    %v777 = vunpack.c.l.b16 %v259
    %v778 = vunpack.c.l.b16 %v260
    %v779 = vunpack.c.h.b16 %v260
    %v780 = vunpack.c.l.b16 %v261
    %v781 = vunpack.c.l.b16 %v262
    %v782 = vunpack.c.h.b16 %v262
    %v783 = vunpack.c.l.b16 %v263
    %v784 = vunpack.c.l.b16 %v264
    %v785 = vunpack.c.h.b16 %v264
    %v786 = vunpack.c.l.b16 %v265
    %v787 = vunpack.c.l.b16 %v266
    %v788 = vunpack.c.h.b16 %v266
    %v789 = vunpack.c.l.b16 %v267
    %v790 = vunpack.c.l.b16 %v268
    %v791 = vunpack.c.h.b16 %v268
    %v792 = vunpack.c.l.b16 %v269
    %v793 = vpack.c.b16 %v508, %v505
    %v794 = vpack.c.b16 %v509, %v506
    %v795 = vpack.c.b16 %v510, %v507
    %v796 = vpack.c.b16 %v514, %v511
    %v797 = vpack.c.b16 %v515, %v512
    %v798 = vpack.c.b16 %v516, %v513
    %v799 = vpack.c.b16 %v520, %v517
    %v800 = vpack.c.b16 %v521, %v518
    %v801 = vpack.c.b16 %v522, %v519
    %v802 = vpack.c.b16 %v526, %v523
    %v803 = vpack.c.b16 %v527, %v524
    %v804 = vpack.c.b16 %v528, %v525
    %v805 = vpack.c.b16 %v532, %v529
    %v806 = vpack.c.b16 %v533, %v530
    %v807 = vpack.c.b16 %v534, %v531
    %v808 = vpack.c.b16 %v538, %v535
    %v809 = vpack.c.b16 %v539, %v536
    %v810 = vpack.c.b16 %v540, %v537
    %v811 = vpack.c.b16 %v544, %v541
    %v812 = vpack.c.b16 %v545, %v542
    %v813 = vpack.c.b16 %v546, %v543
    %v814 = vpack.c.b16 %v550, %v547
    %v815 = vpack.c.b16 %v551, %v548
    %v816 = vpack.c.b16 %v552, %v549
    %v817 = vpack.c.b16 %v556, %v553
    %v818 = vpack.c.b16 %v557, %v554
    %v819 = vpack.c.b16 %v558, %v555
    %v820 = vpack.c.b16 %v562, %v559
    %v821 = vpack.c.b16 %v563, %v560
    %v822 = vpack.c.b16 %v564, %v561
    %v823 = vpack.c.b16 %v568, %v565
    %v824 = vpack.c.b16 %v569, %v566
    %v825 = vpack.c.b16 %v570, %v567
    %v826 = vpack.c.b16 %v574, %v571
    %v827 = vpack.c.b16 %v575, %v572
    %v828 = vpack.c.b16 %v576, %v573
    %v829 = vpack.c.b16 %v580, %v577
    %v830 = vpack.c.b16 %v581, %v578
    %v831 = vpack.c.b16 %v582, %v579
    %v832 = vpack.c.b16 %v586, %v583
    %v833 = vpack.c.b16 %v587, %v584
    %v834 = vpack.c.b16 %v588, %v585
    %v835 = vpack.c.b16 %v592, %v589
    %v836 = vpack.c.b16 %v593, %v590
    %v837 = vpack.c.b16 %v594, %v591
    %v838 = vpack.c.b16 %v598, %v595
    %v839 = vpack.c.b16 %v599, %v596
    %v840 = vpack.c.b16 %v600, %v597
    %v841 = vpack.c.b16 %v604, %v601
    %v842 = vpack.c.b16 %v605, %v602
    %v843 = vpack.c.b16 %v606, %v603
    %v844 = vpack.c.b16 %v610, %v607
    %v845 = vpack.c.b16 %v611, %v608
    %v846 = vpack.c.b16 %v612, %v609
    %v847 = vpack.c.b16 %v616, %v613
    %v848 = vpack.c.b16 %v617, %v614
    %v849 = vpack.c.b16 %v618, %v615
    %v850 = vpack.c.b16 %v622, %v619
    %v851 = vpack.c.b16 %v623, %v620
    %v852 = vpack.c.b16 %v624, %v621
    %v853 = vpack.c.b16 %v628, %v625
    %v854 = vpack.c.b16 %v629, %v626
    %v855 = vpack.c.b16 %v630, %v627
    %v856 = vpack.c.b16 %v634, %v631
    %v857 = vpack.c.b16 %v635, %v632
    %v858 = vpack.c.b16 %v636, %v633
    %v859 = vpack.c.b16 %v640, %v637
    %v860 = vpack.c.b16 %v641, %v638
    %v861 = vpack.c.b16 %v642, %v639
    %v862 = vpack.c.b16 %v646, %v643
    %v863 = vpack.c.b16 %v647, %v644
    %v864 = vpack.c.b16 %v648, %v645
    %v865 = vpack.c.b16 %v652, %v649
    %v866 = vpack.c.b16 %v653, %v650
    %v867 = vpack.c.b16 %v654, %v651
    %v868 = vpack.c.b16 %v658, %v655
    %v869 = vpack.c.b16 %v659, %v656
    %v870 = vpack.c.b16 %v660, %v657
    %v871 = vpack.c.b16 %v664, %v661
    %v872 = vpack.c.b16 %v665, %v662
    %v873 = vpack.c.b16 %v666, %v663
    %v874 = vpack.c.b16 %v670, %v667
    %v875 = vpack.c.b16 %v671, %v668
    %v876 = vpack.c.b16 %v672, %v669
    %v877 = vpack.c.b16 %v676, %v673
    %v878 = vpack.c.b16 %v677, %v674
    %v879 = vpack.c.b16 %v678, %v675
    %v880 = vpack.c.b16 %v682, %v679
    %v881 = vpack.c.b16 %v683, %v680
    %v882 = vpack.c.b16 %v684, %v681
    %v883 = vpack.c.b16 %v688, %v685
    %v884 = vpack.c.b16 %v689, %v686
    %v885 = vpack.c.b16 %v690, %v687
    %v886 = vpack.c.b16 %v694, %v691
    %v887 = vpack.c.b16 %v695, %v692
    %v888 = vpack.c.b16 %v696, %v693
    %v889 = vpack.c.b16 %v700, %v697
    %v890 = vpack.c.b16 %v701, %v698
    %v891 = vpack.c.b16 %v702, %v699
    %v892 = vpack.c.b16 %v706, %v703
    %v893 = vpack.c.b16 %v707, %v704
    %v894 = vpack.c.b16 %v708, %v705
    %v895 = vpack.c.b16 %v712, %v709
    %v896 = vpack.c.b16 %v713, %v710
    %v897 = vpack.c.b16 %v714, %v711
    %v898 = vpack.c.b16 %v718, %v715
    %v899 = vpack.c.b16 %v719, %v716
    %v900 = vpack.c.b16 %v720, %v717
    %v901 = vpack.c.b16 %v724, %v721
    %v902 = vpack.c.b16 %v725, %v722
    %v903 = vpack.c.b16 %v726, %v723
    %v904 = vpack.c.b16 %v730, %v727
    %v905 = vpack.c.b16 %v731, %v728
    %v906 = vpack.c.b16 %v732, %v729
    %v907 = vpack.c.b16 %v736, %v733
    %v908 = vpack.c.b16 %v737, %v734
    %v909 = vpack.c.b16 %v738, %v735
    %v910 = vpack.c.b16 %v742, %v739
    %v911 = vpack.c.b16 %v743, %v740
    %v912 = vpack.c.b16 %v744, %v741
    %v913 = vpack.c.b16 %v748, %v745
    %v914 = vpack.c.b16 %v749, %v746
    %v915 = vpack.c.b16 %v750, %v747
    %v916 = vpack.c.b16 %v754, %v751
    %v917 = vpack.c.b16 %v755, %v752
    %v918 = vpack.c.b16 %v756, %v753
    %v919 = vpack.c.b16 %v760, %v757
    %v920 = vpack.c.b16 %v761, %v758
    %v921 = vpack.c.b16 %v762, %v759
    %v922 = vpack.c.b16 %v766, %v763
    %v923 = vpack.c.b16 %v767, %v764
    %v924 = vpack.c.b16 %v768, %v765
    %v925 = vpack.c.b16 %v772, %v769
    %v926 = vpack.c.b16 %v773, %v770
    %v927 = vpack.c.b16 %v774, %v771
    %v928 = vpack.c.b16 %v778, %v775
    %v929 = vpack.c.b16 %v779, %v776
    %v930 = vpack.c.b16 %v780, %v777
    %v931 = vpack.c.b16 %v784, %v781
    %v932 = vpack.c.b16 %v785, %v782
    %v933 = vpack.c.b16 %v786, %v783
    %v934 = vpack.c.b16 %v790, %v787
    %v935 = vpack.c.b16 %v791, %v788
    %v936 = vpack.c.b16 %v792, %v789
    %1081 = vmatprep.subr.bf16.mxu0 %v815
    %1082 = vmatpush1.bf16.xpose.msra.mxu0 %v814
    %1083 = vmatprep.subr.bf16.mxu0 %v812
    %1084 = vmatpush1.bf16.xpose.msra.mxu0 %v811
    %1085 = vmatprep.subr.bf16.mxu0 %v809
    %1086 = vmatpush1.bf16.xpose.msra.mxu0 %v808
    %1087 = vmatprep.subr.bf16.mxu0 %v806
    %1088 = vmatpush1.bf16.xpose.msra.mxu0 %v805
    %1089 = vmatprep.subr.bf16.mxu0 %v803
    %1090 = vmatpush1.bf16.xpose.msra.mxu0 %v802
    %1091 = vmatprep.subr.bf16.mxu0 %v800
    %1092 = vmatpush1.bf16.xpose.msra.mxu0 %v799
    %1093 = vmatprep.subr.bf16.mxu0 %v797
    %1094 = vmatpush1.bf16.xpose.msra.mxu0 %v796
    %1095 = vmatprep.subr.bf16.mxu0 %v794
    %1096 = vmatpush1.bf16.xpose.msra.mxu0 %v793
    %1097 = vmatprep.subr.bf16.mxu0 %v839
    %1098 = vmatpush2.bf16.xpose.msra.mxu0 %v838
    %1099 = vmatprep.subr.bf16.mxu0 %v836
    %1100 = vmatpush2.bf16.xpose.msra.mxu0 %v835
    %1101 = vmatprep.subr.bf16.mxu0 %v833
    %1102 = vmatpush2.bf16.xpose.msra.mxu0 %v832
    %1103 = vmatprep.subr.bf16.mxu0 %v830
    %1104 = vmatpush2.bf16.xpose.msra.mxu0 %v829
    %1105 = vmatprep.subr.bf16.mxu0 %v827
    %1106 = vmatpush2.bf16.xpose.msra.mxu0 %v826
    %1107 = vmatprep.subr.bf16.mxu0 %v824
    %1108 = vmatpush2.bf16.xpose.msra.mxu0 %v823
    %1109 = vmatprep.subr.bf16.mxu0 %v821
    %1110 = vmatpush2.bf16.xpose.msra.mxu0 %v820
    %1111 = vmatprep.subr.bf16.mxu0 %v818
    %1112 = vmatpush2.bf16.xpose.msra.mxu0 %v817
    %1113 = vmatprep.mubr.bf16.mxu0 %v308
    %1114 = vmatmul.mubr.bf16.gmra.mxu0 %v307
    %v1115 = vpop.f32.mrf.mxu0
    %v1116 = vadd.f32 %v275, %v1115
    %v1117 = vpop.f32.mrf.mxu0
    %v1118 = vadd.f32 %v279, %v1117
    %v1119 = vpop.f32.mrf.mxu0
    %v1120 = vpop.f32.mrf.mxu0
    %1121 = vdwg.mxu0
    %1122 = vmatprep.subr.bf16.mxu0 0
    %1123 = vmatpush1.bf16.xpose.msra.mxu0 %v816
    %1124 = vmatprep.subr.bf16.mxu0 0
    %1125 = vmatpush1.bf16.xpose.msra.mxu0 %v813
    %1126 = vmatprep.subr.bf16.mxu0 0
    %1127 = vmatpush1.bf16.xpose.msra.mxu0 %v810
    %1128 = vmatprep.subr.bf16.mxu0 0
    %1129 = vmatpush1.bf16.xpose.msra.mxu0 %v807
    %1130 = vmatprep.subr.bf16.mxu0 0
    %1131 = vmatpush1.bf16.xpose.msra.mxu0 %v804
    %1132 = vmatprep.subr.bf16.mxu0 0
    %1133 = vmatpush1.bf16.xpose.msra.mxu0 %v801
    %1134 = vmatprep.subr.bf16.mxu0 0
    %1135 = vmatpush1.bf16.xpose.msra.mxu0 %v798
    %1136 = vmatprep.subr.bf16.mxu0 0
    %1137 = vmatpush1.bf16.xpose.msra.mxu0 %v795
    %1138 = vmatprep.subr.bf16.mxu0 0
    %1139 = vmatpush2.bf16.xpose.msra.mxu0 %v840
    %1140 = vmatprep.subr.bf16.mxu0 0
    %1141 = vmatpush2.bf16.xpose.msra.mxu0 %v837
    %1142 = vmatprep.subr.bf16.mxu0 0
    %1143 = vmatpush2.bf16.xpose.msra.mxu0 %v834
    %1144 = vmatprep.subr.bf16.mxu0 0
    %1145 = vmatpush2.bf16.xpose.msra.mxu0 %v831
    %1146 = vmatprep.subr.bf16.mxu0 0
    %1147 = vmatpush2.bf16.xpose.msra.mxu0 %v828
    %1148 = vmatprep.subr.bf16.mxu0 0
    %1149 = vmatpush2.bf16.xpose.msra.mxu0 %v825
    %1150 = vmatprep.subr.bf16.mxu0 0
    %1151 = vmatpush2.bf16.xpose.msra.mxu0 %v822
    %1152 = vmatprep.subr.bf16.mxu0 0
    %1153 = vmatpush2.bf16.xpose.msra.mxu0 %v819
    %1154 = vmatprep.mubr.bf16.mxu0 0
    %1155 = vmatmul.mubr.bf16.gmra.mxu0 %v309
    %v1156 = vpop.f32.mrf.mxu0
    %v1157 = vadd.f32 %v1116, %v1156
    %v1158 = vpop.f32.mrf.mxu0
    %v1159 = vadd.f32 %v1118, %v1158
    %v1160 = vpop.f32.mrf.mxu0
    %v1161 = vpop.f32.mrf.mxu0
    %1162 = vdwg.mxu0
    %1163 = vmatprep.subr.bf16.mxu0 %v863
    %1164 = vmatpush1.bf16.xpose.msra.mxu0 %v862
    %1165 = vmatprep.subr.bf16.mxu0 %v860
    %1166 = vmatpush1.bf16.xpose.msra.mxu0 %v859
    %1167 = vmatprep.subr.bf16.mxu0 %v857
    %1168 = vmatpush1.bf16.xpose.msra.mxu0 %v856
    %1169 = vmatprep.subr.bf16.mxu0 %v854
    %1170 = vmatpush1.bf16.xpose.msra.mxu0 %v853
    %1171 = vmatprep.subr.bf16.mxu0 %v851
    %1172 = vmatpush1.bf16.xpose.msra.mxu0 %v850
    %1173 = vmatprep.subr.bf16.mxu0 %v848
    %1174 = vmatpush1.bf16.xpose.msra.mxu0 %v847
    %1175 = vmatprep.subr.bf16.mxu0 %v845
    %1176 = vmatpush1.bf16.xpose.msra.mxu0 %v844
    %1177 = vmatprep.subr.bf16.mxu0 %v842
    %1178 = vmatpush1.bf16.xpose.msra.mxu0 %v841
    %1179 = vmatprep.subr.bf16.mxu0 %v887
    %1180 = vmatpush2.bf16.xpose.msra.mxu0 %v886
    %1181 = vmatprep.subr.bf16.mxu0 %v884
    %1182 = vmatpush2.bf16.xpose.msra.mxu0 %v883
    %1183 = vmatprep.subr.bf16.mxu0 %v881
    %1184 = vmatpush2.bf16.xpose.msra.mxu0 %v880
    %1185 = vmatprep.subr.bf16.mxu0 %v878
    %1186 = vmatpush2.bf16.xpose.msra.mxu0 %v877
    %1187 = vmatprep.subr.bf16.mxu0 %v875
    %1188 = vmatpush2.bf16.xpose.msra.mxu0 %v874
    %1189 = vmatprep.subr.bf16.mxu0 %v872
    %1190 = vmatpush2.bf16.xpose.msra.mxu0 %v871
    %1191 = vmatprep.subr.bf16.mxu0 %v869
    %1192 = vmatpush2.bf16.xpose.msra.mxu0 %v868
    %1193 = vmatprep.subr.bf16.mxu0 %v866
    %1194 = vmatpush2.bf16.xpose.msra.mxu0 %v865
    %1195 = vmatprep.mubr.bf16.mxu0 %v308
    %1196 = vmatmul.mubr.bf16.gmra.mxu0 %v307
    %v1197 = vpop.f32.mrf.mxu0
    %v1198 = vadd.f32 %v283, %v1197
    %v1199 = vpop.f32.mrf.mxu0
    %v1200 = vadd.f32 %v287, %v1199
    %v1201 = vpop.f32.mrf.mxu0
    %v1202 = vpop.f32.mrf.mxu0
    %1203 = vdwg.mxu0
    %1204 = vmatprep.subr.bf16.mxu0 0
    %1205 = vmatpush1.bf16.xpose.msra.mxu0 %v864
    %1206 = vmatprep.subr.bf16.mxu0 0
    %1207 = vmatpush1.bf16.xpose.msra.mxu0 %v861
    %1208 = vmatprep.subr.bf16.mxu0 0
    %1209 = vmatpush1.bf16.xpose.msra.mxu0 %v858
    %1210 = vmatprep.subr.bf16.mxu0 0
    %1211 = vmatpush1.bf16.xpose.msra.mxu0 %v855
    %1212 = vmatprep.subr.bf16.mxu0 0
    %1213 = vmatpush1.bf16.xpose.msra.mxu0 %v852
    %1214 = vmatprep.subr.bf16.mxu0 0
    %1215 = vmatpush1.bf16.xpose.msra.mxu0 %v849
    %1216 = vmatprep.subr.bf16.mxu0 0
    %1217 = vmatpush1.bf16.xpose.msra.mxu0 %v846
    %1218 = vmatprep.subr.bf16.mxu0 0
    %1219 = vmatpush1.bf16.xpose.msra.mxu0 %v843
    %1220 = vmatprep.subr.bf16.mxu0 0
    %1221 = vmatpush2.bf16.xpose.msra.mxu0 %v888
    %1222 = vmatprep.subr.bf16.mxu0 0
    %1223 = vmatpush2.bf16.xpose.msra.mxu0 %v885
    %1224 = vmatprep.subr.bf16.mxu0 0
    %1225 = vmatpush2.bf16.xpose.msra.mxu0 %v882
    %1226 = vmatprep.subr.bf16.mxu0 0
    %1227 = vmatpush2.bf16.xpose.msra.mxu0 %v879
    %1228 = vmatprep.subr.bf16.mxu0 0
    %1229 = vmatpush2.bf16.xpose.msra.mxu0 %v876
    %1230 = vmatprep.subr.bf16.mxu0 0
    %1231 = vmatpush2.bf16.xpose.msra.mxu0 %v873
    %1232 = vmatprep.subr.bf16.mxu0 0
    %1233 = vmatpush2.bf16.xpose.msra.mxu0 %v870
    %1234 = vmatprep.subr.bf16.mxu0 0
    %1235 = vmatpush2.bf16.xpose.msra.mxu0 %v867
    %1236 = vmatprep.mubr.bf16.mxu0 0
    %1237 = vmatmul.mubr.bf16.gmra.mxu0 %v309
    %v1238 = vpop.f32.mrf.mxu0
    %v1239 = vadd.f32 %v1198, %v1238
    %v1240 = vpop.f32.mrf.mxu0
    %v1241 = vadd.f32 %v1200, %v1240
    %v1242 = vpop.f32.mrf.mxu0
    %v1243 = vpop.f32.mrf.mxu0
    %1244 = vdwg.mxu0
    %1245 = vmatprep.subr.bf16.mxu0 %v911
    %1246 = vmatpush1.bf16.xpose.msra.mxu0 %v910
    %1247 = vmatprep.subr.bf16.mxu0 %v908
    %1248 = vmatpush1.bf16.xpose.msra.mxu0 %v907
    %1249 = vmatprep.subr.bf16.mxu0 %v905
    %1250 = vmatpush1.bf16.xpose.msra.mxu0 %v904
    %1251 = vmatprep.subr.bf16.mxu0 %v902
    %1252 = vmatpush1.bf16.xpose.msra.mxu0 %v901
    %1253 = vmatprep.subr.bf16.mxu0 %v899
    %1254 = vmatpush1.bf16.xpose.msra.mxu0 %v898
    %1255 = vmatprep.subr.bf16.mxu0 %v896
    %1256 = vmatpush1.bf16.xpose.msra.mxu0 %v895
    %1257 = vmatprep.subr.bf16.mxu0 %v893
    %1258 = vmatpush1.bf16.xpose.msra.mxu0 %v892
    %1259 = vmatprep.subr.bf16.mxu0 %v890
    %1260 = vmatpush1.bf16.xpose.msra.mxu0 %v889
    %1261 = vmatprep.subr.bf16.mxu0 %v935
    %1262 = vmatpush2.bf16.xpose.msra.mxu0 %v934
    %1263 = vmatprep.subr.bf16.mxu0 %v932
    %1264 = vmatpush2.bf16.xpose.msra.mxu0 %v931
    %1265 = vmatprep.subr.bf16.mxu0 %v929
    %1266 = vmatpush2.bf16.xpose.msra.mxu0 %v928
    %1267 = vmatprep.subr.bf16.mxu0 %v926
    %1268 = vmatpush2.bf16.xpose.msra.mxu0 %v925
    %1269 = vmatprep.subr.bf16.mxu0 %v923
    %1270 = vmatpush2.bf16.xpose.msra.mxu0 %v922
    %1271 = vmatprep.subr.bf16.mxu0 %v920
    %1272 = vmatpush2.bf16.xpose.msra.mxu0 %v919
    %1273 = vmatprep.subr.bf16.mxu0 %v917
    %1274 = vmatpush2.bf16.xpose.msra.mxu0 %v916
    %1275 = vmatprep.subr.bf16.mxu0 %v914
    %1276 = vmatpush2.bf16.xpose.msra.mxu0 %v913
    %1277 = vmatprep.mubr.bf16.mxu0 %v308
    %1278 = vmatmul.mubr.bf16.gmra.mxu0 %v307
    %v1279 = vpop.f32.mrf.mxu0
    %v1280 = vadd.f32 %v291, %v1279
    %v1281 = vpop.f32.mrf.mxu0
    %v1282 = vadd.f32 %v295, %v1281
    %v1283 = vpop.f32.mrf.mxu0
    %v1284 = vpop.f32.mrf.mxu0
    %1285 = vdwg.mxu0
    %1286 = vmatprep.subr.bf16.mxu0 0
    %1287 = vmatpush1.bf16.xpose.msra.mxu0 %v912
    %1288 = vmatprep.subr.bf16.mxu0 0
    %1289 = vmatpush1.bf16.xpose.msra.mxu0 %v909
    %1290 = vmatprep.subr.bf16.mxu0 0
    %1291 = vmatpush1.bf16.xpose.msra.mxu0 %v906
    %1292 = vmatprep.subr.bf16.mxu0 0
    %1293 = vmatpush1.bf16.xpose.msra.mxu0 %v903
    %1294 = vmatprep.subr.bf16.mxu0 0
    %1295 = vmatpush1.bf16.xpose.msra.mxu0 %v900
    %1296 = vmatprep.subr.bf16.mxu0 0
    %1297 = vmatpush1.bf16.xpose.msra.mxu0 %v897
    %1298 = vmatprep.subr.bf16.mxu0 0
    %1299 = vmatpush1.bf16.xpose.msra.mxu0 %v894
    %1300 = vmatprep.subr.bf16.mxu0 0
    %1301 = vmatpush1.bf16.xpose.msra.mxu0 %v891
    %1302 = vmatprep.subr.bf16.mxu0 0
    %1303 = vmatpush2.bf16.xpose.msra.mxu0 %v936
    %1304 = vmatprep.subr.bf16.mxu0 0
    %1305 = vmatpush2.bf16.xpose.msra.mxu0 %v933
    %1306 = vmatprep.subr.bf16.mxu0 0
    %1307 = vmatpush2.bf16.xpose.msra.mxu0 %v930
    %1308 = vmatprep.subr.bf16.mxu0 0
    %1309 = vmatpush2.bf16.xpose.msra.mxu0 %v927
    %1310 = vmatprep.subr.bf16.mxu0 0
    %1311 = vmatpush2.bf16.xpose.msra.mxu0 %v924
    %1312 = vmatprep.subr.bf16.mxu0 0
    %1313 = vmatpush2.bf16.xpose.msra.mxu0 %v921
    %1314 = vmatprep.subr.bf16.mxu0 0
    %1315 = vmatpush2.bf16.xpose.msra.mxu0 %v918
    %1316 = vmatprep.subr.bf16.mxu0 0
    %1317 = vmatpush2.bf16.xpose.msra.mxu0 %v915
    %1318 = vmatprep.mubr.bf16.mxu0 0
    %1319 = vmatmul.mubr.bf16.gmra.mxu0 %v309
    %v1320 = vpop.f32.mrf.mxu0
    %v1321 = vadd.f32 %v1280, %v1320
    %v1322 = vpop.f32.mrf.mxu0
    %v1323 = vadd.f32 %v1282, %v1322
    %v1324 = vpop.f32.mrf.mxu0
    %v1325 = vpop.f32.mrf.mxu0
    %1326 = vdwg.mxu0
    %1327 = vst [vmem:[#allocation2] sm:$0xff] %v1157
    %1328 = vst [vmem:[#allocation2 + $0x8] sm:$0xff] %v1159
    %1329 = vst [vmem:[#allocation2 + $0x10] sm:$0xff] %v1239
    %1330 = vst [vmem:[#allocation3] sm:$0xff] %v1241
    %1331 = vst [vmem:[#allocation3 + $0x8] sm:$0xff] %v1321
    %1332 = vst [vmem:[#allocation3 + $0x10] sm:$0xff] %v1323
    %1333 = vst [vmem:[#allocation4] sm:$0xff] 0.0
    %1334 = vst [vmem:[#allocation5] sm:$0xff] 0.0
    %v1335 = vld [vmem:[#allocation8] sm:$0xff]
    %v1336 = vld [vmem:[#allocation8 + $0x8] sm:$0xff]
    %v1337 = vld [vmem:[#allocation8 + $0x10] sm:$0xff]
    %v1338 = vld [vmem:[#allocation8 + $0x18] sm:$0xff]
    %v1339 = vld [vmem:[#allocation8 + $0x20] sm:$0xff]
    %v1340 = vld [vmem:[#allocation8 + $0x28] sm:$0xff]
    %v1341 = vld [vmem:[#allocation8 + $0x30] sm:$0xff]
    %v1342 = vld [vmem:[#allocation8 + $0x38] sm:$0xff]
    %v1343 = vld [vmem:[#allocation8 + $0x40] sm:$0xff]
    %v1344 = vld [vmem:[#allocation8 + $0x48] sm:$0xff]
    %v1345 = vld [vmem:[#allocation8 + $0x50] sm:$0xff]
    %v1346 = vld [vmem:[#allocation8 + $0x58] sm:$0xff]
    %v1347 = vld [vmem:[#allocation8 + $0x60] sm:$0xff]
    %v1348 = vld [vmem:[#allocation8 + $0x68] sm:$0xff]
    %v1349 = vld [vmem:[#allocation8 + $0x70] sm:$0xff]
    %v1350 = vld [vmem:[#allocation8 + $0x78] sm:$0xff]
    %v1351 = vld [vmem:[#allocation8 + $0x80] sm:$0xff]
    %v1352 = vld [vmem:[#allocation8 + $0x88] sm:$0xff]
    %v1353 = vld [vmem:[#allocation8 + $0x90] sm:$0xff]
    %v1354 = vld [vmem:[#allocation8 + $0x98] sm:$0xff]
    %v1355 = vld [vmem:[#allocation8 + $0xa0] sm:$0xff]
    %v1356 = vld [vmem:[#allocation8 + $0xa8] sm:$0xff]
    %v1357 = vld [vmem:[#allocation8 + $0xb0] sm:$0xff]
    %v1358 = vld [vmem:[#allocation8 + $0xb8] sm:$0xff]
    %v1359 = vld [vmem:[#allocation8 + $0xc0] sm:$0xff]
    %v1360 = vld [vmem:[#allocation8 + $0xc8] sm:$0xff]
    %v1361 = vld [vmem:[#allocation8 + $0xd0] sm:$0xff]
    %v1362 = vld [vmem:[#allocation8 + $0xd8] sm:$0xff]
    %v1363 = vld [vmem:[#allocation8 + $0xe0] sm:$0xff]
    %v1364 = vld [vmem:[#allocation8 + $0xe8] sm:$0xff]
    %v1365 = vld [vmem:[#allocation8 + $0xf0] sm:$0xff]
    %v1366 = vld [vmem:[#allocation8 + $0xf8] sm:$0xff]
    %v1367 = vld [vmem:[#allocation8 + $0x100] sm:$0xff]
    %v1368 = vld [vmem:[#allocation8 + $0x108] sm:$0xff]
    %v1369 = vld [vmem:[#allocation8 + $0x110] sm:$0xff]
    %v1370 = vld [vmem:[#allocation8 + $0x118] sm:$0xff]
    %v1371 = vld [vmem:[#allocation8 + $0x120] sm:$0xff]
    %v1372 = vld [vmem:[#allocation8 + $0x128] sm:$0xff]
    %v1373 = vld [vmem:[#allocation8 + $0x130] sm:$0xff]
    %v1374 = vld [vmem:[#allocation8 + $0x138] sm:$0xff]
    %v1375 = vld [vmem:[#allocation8 + $0x140] sm:$0xff]
    %v1376 = vld [vmem:[#allocation8 + $0x148] sm:$0xff]
    %v1377 = vld [vmem:[#allocation8 + $0x150] sm:$0xff]
    %v1378 = vld [vmem:[#allocation8 + $0x158] sm:$0xff]
    %v1379 = vld [vmem:[#allocation8 + $0x160] sm:$0xff]
    %v1380 = vld [vmem:[#allocation8 + $0x168] sm:$0xff]
    %v1381 = vld [vmem:[#allocation8 + $0x170] sm:$0xff]
    %v1382 = vld [vmem:[#allocation8 + $0x178] sm:$0xff]
    %v1383 = vld [vmem:[#allocation8 + $0x180] sm:$0xff]
    %v1384 = vld [vmem:[#allocation8 + $0x188] sm:$0xff]
    %v1385 = vld [vmem:[#allocation8 + $0x190] sm:$0xff]
    %v1386 = vld [vmem:[#allocation8 + $0x198] sm:$0xff]
    %v1387 = vld [vmem:[#allocation8 + $0x1a0] sm:$0xff]
    %v1388 = vld [vmem:[#allocation8 + $0x1a8] sm:$0xff]
    %v1389 = vld [vmem:[#allocation8 + $0x1b0] sm:$0xff]
    %v1390 = vld [vmem:[#allocation8 + $0x1b8] sm:$0xff]
    %v1391 = vld [vmem:[#allocation8 + $0x1c0] sm:$0xff]
    %v1392 = vld [vmem:[#allocation8 + $0x1c8] sm:$0xff]
    %v1393 = vld [vmem:[#allocation8 + $0x1d0] sm:$0xff]
    %v1394 = vld [vmem:[#allocation8 + $0x1d8] sm:$0xff]
    %v1395 = vld [vmem:[#allocation8 + $0x1e0] sm:$0xff]
    %v1396 = vld [vmem:[#allocation8 + $0x1e8] sm:$0xff]
    %v1397 = vld [vmem:[#allocation8 + $0x1f0] sm:$0xff]
    %v1398 = vld [vmem:[#allocation8 + $0x1f8] sm:$0xff]
    %v1399 = vld [vmem:[#allocation8 + $0x200] sm:$0xff]
    %v1400 = vld [vmem:[#allocation8 + $0x208] sm:$0xff]
    %v1401 = vld [vmem:[#allocation8 + $0x210] sm:$0xff]
    %v1402 = vld [vmem:[#allocation8 + $0x218] sm:$0xff]
    %v1403 = vld [vmem:[#allocation8 + $0x220] sm:$0xff]
    %v1404 = vld [vmem:[#allocation8 + $0x228] sm:$0xff]
    %v1405 = vld [vmem:[#allocation8 + $0x230] sm:$0xff]
    %v1406 = vld [vmem:[#allocation8 + $0x238] sm:$0xff]
    %v1407 = vld [vmem:[#allocation8 + $0x240] sm:$0xff]
    %v1408 = vld [vmem:[#allocation8 + $0x248] sm:$0xff]
    %v1409 = vld [vmem:[#allocation8 + $0x250] sm:$0xff]
    %v1410 = vld [vmem:[#allocation8 + $0x258] sm:$0xff]
    %v1411 = vld [vmem:[#allocation8 + $0x260] sm:$0xff]
    %v1412 = vld [vmem:[#allocation8 + $0x268] sm:$0xff]
    %v1413 = vld [vmem:[#allocation8 + $0x270] sm:$0xff]
    %v1414 = vld [vmem:[#allocation8 + $0x278] sm:$0xff]
    %v1415 = vld [vmem:[#allocation8 + $0x280] sm:$0xff]
    %v1416 = vld [vmem:[#allocation8 + $0x288] sm:$0xff]
    %v1417 = vld [vmem:[#allocation8 + $0x290] sm:$0xff]
    %v1418 = vld [vmem:[#allocation8 + $0x298] sm:$0xff]
    %v1419 = vld [vmem:[#allocation8 + $0x2a0] sm:$0xff]
    %v1420 = vld [vmem:[#allocation8 + $0x2a8] sm:$0xff]
    %v1421 = vld [vmem:[#allocation8 + $0x2b0] sm:$0xff]
    %v1422 = vld [vmem:[#allocation8 + $0x2b8] sm:$0xff]
    %v1423 = vld [vmem:[#allocation8 + $0x2c0] sm:$0xff]
    %v1424 = vld [vmem:[#allocation8 + $0x2c8] sm:$0xff]
    %v1425 = vld [vmem:[#allocation8 + $0x2d0] sm:$0xff]
    %v1426 = vld [vmem:[#allocation8 + $0x2d8] sm:$0xff]
    %v1427 = vld [vmem:[#allocation8 + $0x2e0] sm:$0xff]
    %v1428 = vld [vmem:[#allocation8 + $0x2e8] sm:$0xff]
    %v1429 = vld [vmem:[#allocation8 + $0x2f0] sm:$0xff]
    %v1430 = vld [vmem:[#allocation8 + $0x2f8] sm:$0xff]
    %v1431 = vld [vmem:[#allocation10] sm:$0x3f]
    loop: start=0, step=1, limit=6
    $region46: #{device_forward.5} parent=1 // loop_pre_header
      _
    $region47: #{device_forward.5} parent=1 // loop_header
      %s1433 = sphi 0, %s1437
      %p1434 = scmp.ge.s32.totalorder %s1433, 6
      %v1438 = vphi 0.0, %v2164
      %v1439 = vphi 0.0, %v2168
    $region48: #{device_forward.5} parent=1 // loop_header_branch
      %1436 = sbr.rel (%p1434) target = $region52
    $region49: #{device_forward.5} parent=1 // loop_body
      %s1440 = ssub.s32 5, %s1433
      %s1441 = sshra.s32 %s1433, 3
      %s1442 = sand.u32 %s1433, 7
      %s1443 = sshra.s32 %s1433, 3
      %s1444 = sand.u32 %s1433, 7
      %s1445 = smul.u32 %s1441, 3
      %s1446 = smul.u32 %s1445, 8
      %s1447 = sadd.s32 %s1446, %s1444
      %s1448 = scalar_lea.vmem [#allocation2], %s1447
      %v1449 = vld [vmem:[%s1448] ss:$8 sm:$0x7]
      %s1450 = sshra.s32 %s1440, 3
      %s1451 = sand.u32 %s1440, 7
      %s1452 = sshra.s32 %s1440, 3
      %s1453 = sand.u32 %s1440, 7
      %s1454 = smul.u32 %s1450, 3
      %s1455 = smul.u32 %s1454, 8
      %s1456 = sadd.s32 %s1455, %s1453
      %s1457 = scalar_lea.vmem [#allocation3], %s1456
      %v1458 = vld [vmem:[%s1457] ss:$8 sm:$0x7]
      %v1460 = vlaneseq
      %v1461 = vshrl.u32 %v1460, 7
      %v1462 = vsub.s32 0, %v1461
      %v1463 = vrot.slane %v1449, %v1462
      %v1464 = vlaneseq
      %v1465 = vshrl.u32 %v1464, 7
      %v1466 = vsub.s32 1, %v1465
      %v1467 = vrot.slane %v1449, %v1466
      %v1468 = vlaneseq
      %v1469 = vshrl.u32 %v1468, 7
      %v1470 = vsub.s32 2, %v1469
      %v1471 = vrot.slane %v1449, %v1470
      %v1476 = vlaneseq
      %v1477 = vshrl.u32 %v1476, 7
      %v1478 = vsub.s32 0, %v1477
      %v1479 = vrot.slane %v1458, %v1478
      %v1480 = vlaneseq
      %v1481 = vshrl.u32 %v1480, 7
      %v1482 = vsub.s32 1, %v1481
      %v1483 = vrot.slane %v1458, %v1482
      %v1484 = vlaneseq
      %v1485 = vshrl.u32 %v1484, 7
      %v1486 = vsub.s32 2, %v1485
      %v1487 = vrot.slane %v1458, %v1486
      %v1491 = vpack.c.bf16 %v1438, %v1438
      %v1492 = vpack.c.bf16 %v1439, %v1439
      %v1589 = vunpack.c.l.b16 %v1335
      %v1590 = vunpack.c.h.b16 %v1335
      %v1591 = vunpack.c.l.b16 %v1336
      %v1592 = vunpack.c.h.b16 %v1336
      %v1593 = vunpack.c.l.b16 %v1337
      %v1594 = vunpack.c.h.b16 %v1337
      %v1595 = vunpack.c.l.b16 %v1338
      %v1596 = vunpack.c.h.b16 %v1338
      %v1597 = vunpack.c.l.b16 %v1339
      %v1598 = vunpack.c.h.b16 %v1339
      %v1599 = vunpack.c.l.b16 %v1340
      %v1600 = vunpack.c.h.b16 %v1340
      %v1601 = vunpack.c.l.b16 %v1341
      %v1602 = vunpack.c.h.b16 %v1341
      %v1603 = vunpack.c.l.b16 %v1342
      %v1604 = vunpack.c.h.b16 %v1342
      %v1605 = vunpack.c.l.b16 %v1343
      %v1606 = vunpack.c.h.b16 %v1343
      %v1607 = vunpack.c.l.b16 %v1344
      %v1608 = vunpack.c.h.b16 %v1344
      %v1609 = vunpack.c.l.b16 %v1345
      %v1610 = vunpack.c.h.b16 %v1345
      %v1611 = vunpack.c.l.b16 %v1346
      %v1612 = vunpack.c.h.b16 %v1346
      %v1613 = vunpack.c.l.b16 %v1347
      %v1614 = vunpack.c.h.b16 %v1347
      %v1615 = vunpack.c.l.b16 %v1348
      %v1616 = vunpack.c.h.b16 %v1348
      %v1617 = vunpack.c.l.b16 %v1349
      %v1618 = vunpack.c.h.b16 %v1349
      %v1619 = vunpack.c.l.b16 %v1350
      %v1620 = vunpack.c.h.b16 %v1350
      %v1621 = vunpack.c.l.b16 %v1351
      %v1622 = vunpack.c.h.b16 %v1351
      %v1623 = vunpack.c.l.b16 %v1352
      %v1624 = vunpack.c.h.b16 %v1352
      %v1625 = vunpack.c.l.b16 %v1353
      %v1626 = vunpack.c.h.b16 %v1353
      %v1627 = vunpack.c.l.b16 %v1354
      %v1628 = vunpack.c.h.b16 %v1354
      %v1629 = vunpack.c.l.b16 %v1355
      %v1630 = vunpack.c.h.b16 %v1355
      %v1631 = vunpack.c.l.b16 %v1356
      %v1632 = vunpack.c.h.b16 %v1356
      %v1633 = vunpack.c.l.b16 %v1357
      %v1634 = vunpack.c.h.b16 %v1357
      %v1635 = vunpack.c.l.b16 %v1358
      %v1636 = vunpack.c.h.b16 %v1358
      %v1637 = vunpack.c.l.b16 %v1359
      %v1638 = vunpack.c.h.b16 %v1359
      %v1639 = vunpack.c.l.b16 %v1360
      %v1640 = vunpack.c.h.b16 %v1360
      %v1641 = vunpack.c.l.b16 %v1361
      %v1642 = vunpack.c.h.b16 %v1361
      %v1643 = vunpack.c.l.b16 %v1362
      %v1644 = vunpack.c.h.b16 %v1362
      %v1645 = vunpack.c.l.b16 %v1363
      %v1646 = vunpack.c.h.b16 %v1363
      %v1647 = vunpack.c.l.b16 %v1364
      %v1648 = vunpack.c.h.b16 %v1364
      %v1649 = vunpack.c.l.b16 %v1365
      %v1650 = vunpack.c.h.b16 %v1365
      %v1651 = vunpack.c.l.b16 %v1366
      %v1652 = vunpack.c.h.b16 %v1366
      %v1653 = vunpack.c.l.b16 %v1367
      %v1654 = vunpack.c.h.b16 %v1367
      %v1655 = vunpack.c.l.b16 %v1368
      %v1656 = vunpack.c.h.b16 %v1368
      %v1657 = vunpack.c.l.b16 %v1369
      %v1658 = vunpack.c.h.b16 %v1369
      %v1659 = vunpack.c.l.b16 %v1370
      %v1660 = vunpack.c.h.b16 %v1370
      %v1661 = vunpack.c.l.b16 %v1371
      %v1662 = vunpack.c.h.b16 %v1371
      %v1663 = vunpack.c.l.b16 %v1372
      %v1664 = vunpack.c.h.b16 %v1372
      %v1665 = vunpack.c.l.b16 %v1373
      %v1666 = vunpack.c.h.b16 %v1373
      %v1667 = vunpack.c.l.b16 %v1374
      %v1668 = vunpack.c.h.b16 %v1374
      %v1669 = vunpack.c.l.b16 %v1375
      %v1670 = vunpack.c.h.b16 %v1375
      %v1671 = vunpack.c.l.b16 %v1376
      %v1672 = vunpack.c.h.b16 %v1376
      %v1673 = vunpack.c.l.b16 %v1377
      %v1674 = vunpack.c.h.b16 %v1377
      %v1675 = vunpack.c.l.b16 %v1378
      %v1676 = vunpack.c.h.b16 %v1378
      %v1677 = vunpack.c.l.b16 %v1379
      %v1678 = vunpack.c.h.b16 %v1379
      %v1679 = vunpack.c.l.b16 %v1380
      %v1680 = vunpack.c.h.b16 %v1380
      %v1681 = vunpack.c.l.b16 %v1381
      %v1682 = vunpack.c.h.b16 %v1381
      %v1683 = vunpack.c.l.b16 %v1382
      %v1684 = vunpack.c.h.b16 %v1382
      %v1685 = vunpack.c.l.b16 %v1383
      %v1686 = vunpack.c.h.b16 %v1383
      %v1687 = vunpack.c.l.b16 %v1384
      %v1688 = vunpack.c.h.b16 %v1384
      %v1689 = vunpack.c.l.b16 %v1385
      %v1690 = vunpack.c.h.b16 %v1385
      %v1691 = vunpack.c.l.b16 %v1386
      %v1692 = vunpack.c.h.b16 %v1386
      %v1693 = vunpack.c.l.b16 %v1387
      %v1694 = vunpack.c.h.b16 %v1387
      %v1695 = vunpack.c.l.b16 %v1388
      %v1696 = vunpack.c.h.b16 %v1388
      %v1697 = vunpack.c.l.b16 %v1389
      %v1698 = vunpack.c.h.b16 %v1389
      %v1699 = vunpack.c.l.b16 %v1390
      %v1700 = vunpack.c.h.b16 %v1390
      %v1701 = vunpack.c.l.b16 %v1391
      %v1702 = vunpack.c.h.b16 %v1391
      %v1703 = vunpack.c.l.b16 %v1392
      %v1704 = vunpack.c.h.b16 %v1392
      %v1705 = vunpack.c.l.b16 %v1393
      %v1706 = vunpack.c.h.b16 %v1393
      %v1707 = vunpack.c.l.b16 %v1394
      %v1708 = vunpack.c.h.b16 %v1394
      %v1709 = vunpack.c.l.b16 %v1395
      %v1710 = vunpack.c.h.b16 %v1395
      %v1711 = vunpack.c.l.b16 %v1396
      %v1712 = vunpack.c.h.b16 %v1396
      %v1713 = vunpack.c.l.b16 %v1397
      %v1714 = vunpack.c.h.b16 %v1397
      %v1715 = vunpack.c.l.b16 %v1398
      %v1716 = vunpack.c.h.b16 %v1398
      %v1717 = vunpack.c.l.b16 %v1399
      %v1718 = vunpack.c.h.b16 %v1399
      %v1719 = vunpack.c.l.b16 %v1400
      %v1720 = vunpack.c.h.b16 %v1400
      %v1721 = vunpack.c.l.b16 %v1401
      %v1722 = vunpack.c.h.b16 %v1401
      %v1723 = vunpack.c.l.b16 %v1402
      %v1724 = vunpack.c.h.b16 %v1402
      %v1725 = vunpack.c.l.b16 %v1403
      %v1726 = vunpack.c.h.b16 %v1403
      %v1727 = vunpack.c.l.b16 %v1404
      %v1728 = vunpack.c.h.b16 %v1404
      %v1729 = vunpack.c.l.b16 %v1405
      %v1730 = vunpack.c.h.b16 %v1405
      %v1731 = vunpack.c.l.b16 %v1406
      %v1732 = vunpack.c.h.b16 %v1406
      %v1733 = vunpack.c.l.b16 %v1407
      %v1734 = vunpack.c.h.b16 %v1407
      %v1735 = vunpack.c.l.b16 %v1408
      %v1736 = vunpack.c.h.b16 %v1408
      %v1737 = vunpack.c.l.b16 %v1409
      %v1738 = vunpack.c.h.b16 %v1409
      %v1739 = vunpack.c.l.b16 %v1410
      %v1740 = vunpack.c.h.b16 %v1410
      %v1741 = vunpack.c.l.b16 %v1411
      %v1742 = vunpack.c.h.b16 %v1411
      %v1743 = vunpack.c.l.b16 %v1412
      %v1744 = vunpack.c.h.b16 %v1412
      %v1745 = vunpack.c.l.b16 %v1413
      %v1746 = vunpack.c.h.b16 %v1413
      %v1747 = vunpack.c.l.b16 %v1414
      %v1748 = vunpack.c.h.b16 %v1414
      %v1749 = vunpack.c.l.b16 %v1415
      %v1750 = vunpack.c.h.b16 %v1415
      %v1751 = vunpack.c.l.b16 %v1416
      %v1752 = vunpack.c.h.b16 %v1416
      %v1753 = vunpack.c.l.b16 %v1417
      %v1754 = vunpack.c.h.b16 %v1417
      %v1755 = vunpack.c.l.b16 %v1418
      %v1756 = vunpack.c.h.b16 %v1418
      %v1757 = vunpack.c.l.b16 %v1419
      %v1758 = vunpack.c.h.b16 %v1419
      %v1759 = vunpack.c.l.b16 %v1420
      %v1760 = vunpack.c.h.b16 %v1420
      %v1761 = vunpack.c.l.b16 %v1421
      %v1762 = vunpack.c.h.b16 %v1421
      %v1763 = vunpack.c.l.b16 %v1422
      %v1764 = vunpack.c.h.b16 %v1422
      %v1765 = vunpack.c.l.b16 %v1423
      %v1766 = vunpack.c.h.b16 %v1423
      %v1767 = vunpack.c.l.b16 %v1424
      %v1768 = vunpack.c.h.b16 %v1424
      %v1769 = vunpack.c.l.b16 %v1425
      %v1770 = vunpack.c.h.b16 %v1425
      %v1771 = vunpack.c.l.b16 %v1426
      %v1772 = vunpack.c.h.b16 %v1426
      %v1773 = vunpack.c.l.b16 %v1427
      %v1774 = vunpack.c.h.b16 %v1427
      %v1775 = vunpack.c.l.b16 %v1428
      %v1776 = vunpack.c.h.b16 %v1428
      %v1777 = vunpack.c.l.b16 %v1429
      %v1778 = vunpack.c.h.b16 %v1429
      %v1779 = vunpack.c.l.b16 %v1430
      %v1780 = vunpack.c.h.b16 %v1430
      %v1781 = vpack.c.b16 %v1591, %v1589
      %v1782 = vpack.c.b16 %v1592, %v1590
      %v1783 = vpack.c.b16 %v1595, %v1593
      %v1784 = vpack.c.b16 %v1596, %v1594
      %v1785 = vpack.c.b16 %v1599, %v1597
      %v1786 = vpack.c.b16 %v1600, %v1598
      %v1787 = vpack.c.b16 %v1603, %v1601
      %v1788 = vpack.c.b16 %v1604, %v1602
      %v1789 = vpack.c.b16 %v1607, %v1605
      %v1790 = vpack.c.b16 %v1608, %v1606
      %v1791 = vpack.c.b16 %v1611, %v1609
      %v1792 = vpack.c.b16 %v1612, %v1610
      %v1793 = vpack.c.b16 %v1615, %v1613
      %v1794 = vpack.c.b16 %v1616, %v1614
      %v1795 = vpack.c.b16 %v1619, %v1617
      %v1796 = vpack.c.b16 %v1620, %v1618
      %v1797 = vpack.c.b16 %v1623, %v1621
      %v1798 = vpack.c.b16 %v1624, %v1622
      %v1799 = vpack.c.b16 %v1627, %v1625
      %v1800 = vpack.c.b16 %v1628, %v1626
      %v1801 = vpack.c.b16 %v1631, %v1629
      %v1802 = vpack.c.b16 %v1632, %v1630
      %v1803 = vpack.c.b16 %v1635, %v1633
      %v1804 = vpack.c.b16 %v1636, %v1634
      %v1805 = vpack.c.b16 %v1639, %v1637
      %v1806 = vpack.c.b16 %v1640, %v1638
      %v1807 = vpack.c.b16 %v1643, %v1641
      %v1808 = vpack.c.b16 %v1644, %v1642
      %v1809 = vpack.c.b16 %v1647, %v1645
      %v1810 = vpack.c.b16 %v1648, %v1646
      %v1811 = vpack.c.b16 %v1651, %v1649
      %v1812 = vpack.c.b16 %v1652, %v1650
      %v1813 = vpack.c.b16 %v1655, %v1653
      %v1814 = vpack.c.b16 %v1656, %v1654
      %v1815 = vpack.c.b16 %v1659, %v1657
      %v1816 = vpack.c.b16 %v1660, %v1658
      %v1817 = vpack.c.b16 %v1663, %v1661
      %v1818 = vpack.c.b16 %v1664, %v1662
      %v1819 = vpack.c.b16 %v1667, %v1665
      %v1820 = vpack.c.b16 %v1668, %v1666
      %v1821 = vpack.c.b16 %v1671, %v1669
      %v1822 = vpack.c.b16 %v1672, %v1670
      %v1823 = vpack.c.b16 %v1675, %v1673
      %v1824 = vpack.c.b16 %v1676, %v1674
      %v1825 = vpack.c.b16 %v1679, %v1677
      %v1826 = vpack.c.b16 %v1680, %v1678
      %v1827 = vpack.c.b16 %v1683, %v1681
      %v1828 = vpack.c.b16 %v1684, %v1682
      %v1829 = vpack.c.b16 %v1687, %v1685
      %v1830 = vpack.c.b16 %v1688, %v1686
      %v1831 = vpack.c.b16 %v1691, %v1689
      %v1832 = vpack.c.b16 %v1692, %v1690
      %v1833 = vpack.c.b16 %v1695, %v1693
      %v1834 = vpack.c.b16 %v1696, %v1694
      %v1835 = vpack.c.b16 %v1699, %v1697
      %v1836 = vpack.c.b16 %v1700, %v1698
      %v1837 = vpack.c.b16 %v1703, %v1701
      %v1838 = vpack.c.b16 %v1704, %v1702
      %v1839 = vpack.c.b16 %v1707, %v1705
      %v1840 = vpack.c.b16 %v1708, %v1706
      %v1841 = vpack.c.b16 %v1711, %v1709
      %v1842 = vpack.c.b16 %v1712, %v1710
      %v1843 = vpack.c.b16 %v1715, %v1713
      %v1844 = vpack.c.b16 %v1716, %v1714
      %v1845 = vpack.c.b16 %v1719, %v1717
      %v1846 = vpack.c.b16 %v1720, %v1718
      %v1847 = vpack.c.b16 %v1723, %v1721
      %v1848 = vpack.c.b16 %v1724, %v1722
      %v1849 = vpack.c.b16 %v1727, %v1725
      %v1850 = vpack.c.b16 %v1728, %v1726
      %v1851 = vpack.c.b16 %v1731, %v1729
      %v1852 = vpack.c.b16 %v1732, %v1730
      %v1853 = vpack.c.b16 %v1735, %v1733
      %v1854 = vpack.c.b16 %v1736, %v1734
      %v1855 = vpack.c.b16 %v1739, %v1737
      %v1856 = vpack.c.b16 %v1740, %v1738
      %v1857 = vpack.c.b16 %v1743, %v1741
      %v1858 = vpack.c.b16 %v1744, %v1742
      %v1859 = vpack.c.b16 %v1747, %v1745
      %v1860 = vpack.c.b16 %v1748, %v1746
      %v1861 = vpack.c.b16 %v1751, %v1749
      %v1862 = vpack.c.b16 %v1752, %v1750
      %v1863 = vpack.c.b16 %v1755, %v1753
      %v1864 = vpack.c.b16 %v1756, %v1754
      %v1865 = vpack.c.b16 %v1759, %v1757
      %v1866 = vpack.c.b16 %v1760, %v1758
      %v1867 = vpack.c.b16 %v1763, %v1761
      %v1868 = vpack.c.b16 %v1764, %v1762
      %v1869 = vpack.c.b16 %v1767, %v1765
      %v1870 = vpack.c.b16 %v1768, %v1766
      %v1871 = vpack.c.b16 %v1771, %v1769
      %v1872 = vpack.c.b16 %v1772, %v1770
      %v1873 = vpack.c.b16 %v1775, %v1773
      %v1874 = vpack.c.b16 %v1776, %v1774
      %v1875 = vpack.c.b16 %v1779, %v1777
      %v1876 = vpack.c.b16 %v1780, %v1778
      %v1974 = vlaneseq
      %v1975 = vshrl.u32 %v1974, 7
      %v1976 = vsub.s32 0, %v1975
      %v1977 = vrot.slane %v1431, %v1976
      %v1978 = vlaneseq
      %v1979 = vshrl.u32 %v1978, 7
      %v1980 = vsub.s32 1, %v1979
      %v1981 = vrot.slane %v1431, %v1980
      %v1982 = vlaneseq
      %v1983 = vshrl.u32 %v1982, 7
      %v1984 = vsub.s32 2, %v1983
      %v1985 = vrot.slane %v1431, %v1984
      %v1986 = vlaneseq
      %v1987 = vshrl.u32 %v1986, 7
      %v1988 = vsub.s32 3, %v1987
      %v1989 = vrot.slane %v1431, %v1988
      %v1990 = vlaneseq
      %v1991 = vshrl.u32 %v1990, 7
      %v1992 = vsub.s32 4, %v1991
      %v1993 = vrot.slane %v1431, %v1992
      %v1994 = vlaneseq
      %v1995 = vshrl.u32 %v1994, 7
      %v1996 = vsub.s32 5, %v1995
      %v1997 = vrot.slane %v1431, %v1996
      %2004 = vmatprep.subr.bf16.mxu0 %v1796
      %2005 = vmatpush1.bf16.xpose.msra.mxu0 %v1795
      %2006 = vmatprep.subr.bf16.mxu0 %v1794
      %2007 = vmatpush1.bf16.xpose.msra.mxu0 %v1793
      %2008 = vmatprep.subr.bf16.mxu0 %v1792
      %2009 = vmatpush1.bf16.xpose.msra.mxu0 %v1791
      %2010 = vmatprep.subr.bf16.mxu0 %v1790
      %2011 = vmatpush1.bf16.xpose.msra.mxu0 %v1789
      %2012 = vmatprep.subr.bf16.mxu0 %v1788
      %2013 = vmatpush1.bf16.xpose.msra.mxu0 %v1787
      %2014 = vmatprep.subr.bf16.mxu0 %v1786
      %2015 = vmatpush1.bf16.xpose.msra.mxu0 %v1785
      %2016 = vmatprep.subr.bf16.mxu0 %v1784
      %2017 = vmatpush1.bf16.xpose.msra.mxu0 %v1783
      %2018 = vmatprep.subr.bf16.mxu0 %v1782
      %2019 = vmatpush1.bf16.xpose.msra.mxu0 %v1781
      %2020 = vmatprep.subr.bf16.mxu0 %v1812
      %2021 = vmatpush2.bf16.xpose.msra.mxu0 %v1811
      %2022 = vmatprep.subr.bf16.mxu0 %v1810
      %2023 = vmatpush2.bf16.xpose.msra.mxu0 %v1809
      %2024 = vmatprep.subr.bf16.mxu0 %v1808
      %2025 = vmatpush2.bf16.xpose.msra.mxu0 %v1807
      %2026 = vmatprep.subr.bf16.mxu0 %v1806
      %2027 = vmatpush2.bf16.xpose.msra.mxu0 %v1805
      %2028 = vmatprep.subr.bf16.mxu0 %v1804
      %2029 = vmatpush2.bf16.xpose.msra.mxu0 %v1803
      %2030 = vmatprep.subr.bf16.mxu0 %v1802
      %2031 = vmatpush2.bf16.xpose.msra.mxu0 %v1801
      %2032 = vmatprep.subr.bf16.mxu0 %v1800
      %2033 = vmatpush2.bf16.xpose.msra.mxu0 %v1799
      %2034 = vmatprep.subr.bf16.mxu0 %v1798
      %2035 = vmatpush2.bf16.xpose.msra.mxu0 %v1797
      %2036 = vmatprep.mubr.bf16.mxu0 %v1492
      %2037 = vmatmul.mubr.bf16.gmra.mxu0 %v1491
      %v2038 = vpop.f32.mrf.mxu0
      %v2039 = vadd.f32 %v1977, %v2038
      %v2040 = vpop.f32.mrf.mxu0
      %v2041 = vadd.f32 %v1981, %v2040
      %v2042 = vpop.f32.mrf.mxu0
      %v2043 = vpop.f32.mrf.mxu0
      %2044 = vdwg.mxu0
      %2045 = vmatprep.subr.bf16.mxu0 %v1828
      %2046 = vmatpush1.bf16.xpose.msra.mxu0 %v1827
      %2047 = vmatprep.subr.bf16.mxu0 %v1826
      %2048 = vmatpush1.bf16.xpose.msra.mxu0 %v1825
      %2049 = vmatprep.subr.bf16.mxu0 %v1824
      %2050 = vmatpush1.bf16.xpose.msra.mxu0 %v1823
      %2051 = vmatprep.subr.bf16.mxu0 %v1822
      %2052 = vmatpush1.bf16.xpose.msra.mxu0 %v1821
      %2053 = vmatprep.subr.bf16.mxu0 %v1820
      %2054 = vmatpush1.bf16.xpose.msra.mxu0 %v1819
      %2055 = vmatprep.subr.bf16.mxu0 %v1818
      %2056 = vmatpush1.bf16.xpose.msra.mxu0 %v1817
      %2057 = vmatprep.subr.bf16.mxu0 %v1816
      %2058 = vmatpush1.bf16.xpose.msra.mxu0 %v1815
      %2059 = vmatprep.subr.bf16.mxu0 %v1814
      %2060 = vmatpush1.bf16.xpose.msra.mxu0 %v1813
      %2061 = vmatprep.subr.bf16.mxu0 %v1844
      %2062 = vmatpush2.bf16.xpose.msra.mxu0 %v1843
      %2063 = vmatprep.subr.bf16.mxu0 %v1842
      %2064 = vmatpush2.bf16.xpose.msra.mxu0 %v1841
      %2065 = vmatprep.subr.bf16.mxu0 %v1840
      %2066 = vmatpush2.bf16.xpose.msra.mxu0 %v1839
      %2067 = vmatprep.subr.bf16.mxu0 %v1838
      %2068 = vmatpush2.bf16.xpose.msra.mxu0 %v1837
      %2069 = vmatprep.subr.bf16.mxu0 %v1836
      %2070 = vmatpush2.bf16.xpose.msra.mxu0 %v1835
      %2071 = vmatprep.subr.bf16.mxu0 %v1834
      %2072 = vmatpush2.bf16.xpose.msra.mxu0 %v1833
      %2073 = vmatprep.subr.bf16.mxu0 %v1832
      %2074 = vmatpush2.bf16.xpose.msra.mxu0 %v1831
      %2075 = vmatprep.subr.bf16.mxu0 %v1830
      %2076 = vmatpush2.bf16.xpose.msra.mxu0 %v1829
      %2077 = vmatprep.mubr.bf16.mxu0 %v1492
      %2078 = vmatmul.mubr.bf16.gmra.mxu0 %v1491
      %v2079 = vpop.f32.mrf.mxu0
      %v2080 = vadd.f32 %v1985, %v2079
      %v2081 = vpop.f32.mrf.mxu0
      %v2082 = vadd.f32 %v1989, %v2081
      %v2083 = vpop.f32.mrf.mxu0
      %v2084 = vpop.f32.mrf.mxu0
      %2085 = vdwg.mxu0
      %2086 = vmatprep.subr.bf16.mxu0 %v1860
      %2087 = vmatpush1.bf16.xpose.msra.mxu0 %v1859
      %2088 = vmatprep.subr.bf16.mxu0 %v1858
      %2089 = vmatpush1.bf16.xpose.msra.mxu0 %v1857
      %2090 = vmatprep.subr.bf16.mxu0 %v1856
      %2091 = vmatpush1.bf16.xpose.msra.mxu0 %v1855
      %2092 = vmatprep.subr.bf16.mxu0 %v1854
      %2093 = vmatpush1.bf16.xpose.msra.mxu0 %v1853
      %2094 = vmatprep.subr.bf16.mxu0 %v1852
      %2095 = vmatpush1.bf16.xpose.msra.mxu0 %v1851
      %2096 = vmatprep.subr.bf16.mxu0 %v1850
      %2097 = vmatpush1.bf16.xpose.msra.mxu0 %v1849
      %2098 = vmatprep.subr.bf16.mxu0 %v1848
      %2099 = vmatpush1.bf16.xpose.msra.mxu0 %v1847
      %2100 = vmatprep.subr.bf16.mxu0 %v1846
      %2101 = vmatpush1.bf16.xpose.msra.mxu0 %v1845
      %2102 = vmatprep.subr.bf16.mxu0 %v1876
      %2103 = vmatpush2.bf16.xpose.msra.mxu0 %v1875
      %2104 = vmatprep.subr.bf16.mxu0 %v1874
      %2105 = vmatpush2.bf16.xpose.msra.mxu0 %v1873
      %2106 = vmatprep.subr.bf16.mxu0 %v1872
      %2107 = vmatpush2.bf16.xpose.msra.mxu0 %v1871
      %2108 = vmatprep.subr.bf16.mxu0 %v1870
      %2109 = vmatpush2.bf16.xpose.msra.mxu0 %v1869
      %2110 = vmatprep.subr.bf16.mxu0 %v1868
      %2111 = vmatpush2.bf16.xpose.msra.mxu0 %v1867
      %2112 = vmatprep.subr.bf16.mxu0 %v1866
      %2113 = vmatpush2.bf16.xpose.msra.mxu0 %v1865
      %2114 = vmatprep.subr.bf16.mxu0 %v1864
      %2115 = vmatpush2.bf16.xpose.msra.mxu0 %v1863
      %2116 = vmatprep.subr.bf16.mxu0 %v1862
      %2117 = vmatpush2.bf16.xpose.msra.mxu0 %v1861
      %2118 = vmatprep.mubr.bf16.mxu0 %v1492
      %2119 = vmatmul.mubr.bf16.gmra.mxu0 %v1491
      %v2120 = vpop.f32.mrf.mxu0
      %v2121 = vadd.f32 %v1993, %v2120
      %v2122 = vpop.f32.mrf.mxu0
      %v2123 = vadd.f32 %v1997, %v2122
      %v2124 = vpop.f32.mrf.mxu0
      %v2125 = vpop.f32.mrf.mxu0
      %2126 = vdwg.mxu0
      %v2127 = vadd.f32 %v1463, %v2039
      %v2128 = vxor.u32 %v2127, 2147483648
      %v2129 = vmul.f32 %v2128, 1.442695
      %v2130 = vpow.pop %v2129
      %v2131 = vadd.f32 %v2130, 1.0
      %v2132 = vrcp.pop %v2131
      %v2133 = vmul.f32 1.0, %v2132
      %v2134 = vadd.f32 %v1467, %v2041
      %v2135 = vxor.u32 %v2134, 2147483648
      %v2136 = vmul.f32 %v2135, 1.442695
      %v2137 = vpow.pop %v2136
      %v2138 = vadd.f32 %v2137, 1.0
      %v2139 = vrcp.pop %v2138
      %v2140 = vmul.f32 1.0, %v2139
      %v2141 = vmul.f32 %v2133, %v2080
      %v2142 = vadd.f32 %v1471, %v2141
      %v2143 = vtanh.pop %v2142
      %v2144 = vadd.f32 %v1479, %v2082
      %v2145 = vxor.u32 %v2144, 2147483648
      %v2146 = vmul.f32 %v2145, 1.442695
      %v2147 = vpow.pop %v2146
      %v2148 = vadd.f32 %v2147, 1.0
      %v2149 = vrcp.pop %v2148
      %v2150 = vmul.f32 1.0, %v2149
      %v2151 = vadd.f32 %v1483, %v2121
      %v2152 = vxor.u32 %v2151, 2147483648
      %v2153 = vmul.f32 %v2152, 1.442695
      %v2154 = vpow.pop %v2153
      %v2155 = vadd.f32 %v2154, 1.0
      %v2156 = vrcp.pop %v2155
      %v2157 = vmul.f32 1.0, %v2156
      %v2158 = vmul.f32 %v2150, %v2123
      %v2159 = vadd.f32 %v1487, %v2158
      %v2160 = vtanh.pop %v2159
      %v2161 = vsub.f32 1.0, %v2140
      %v2162 = vmul.f32 %v2161, %v2143
      %v2163 = vmul.f32 %v2140, %v1438
      %v2164 = vadd.f32 %v2162, %v2163
      %v2165 = vsub.f32 1.0, %v2157
      %v2166 = vmul.f32 %v2165, %v2160
      %v2167 = vmul.f32 %v2157, %v1439
      %v2168 = vadd.f32 %v2166, %v2167
      %s2169 = scalar_lea.vmem [#allocation4], %s1433
      %2170 = vst [vmem:[%s2169] sm:$0x1] %v2164
      %s2171 = scalar_lea.vmem [#allocation5], %s1440
      %2172 = vst [vmem:[%s2171] sm:$0x1] %v2168
    $region50: #{device_forward.5} parent=1 // loop_footer
      %s1437 = sadd.s32 1, %s1433
    $region51: #{device_forward.5} parent=1 // loop_footer_branch
      %1432 = sbr.rel target = $region47
    $region52: #{device_forward.5} parent=1 // loop_exit
      _
    %v2173 = vld [vmem:[#allocation4] sm:$0xff]
    %v2174 = vld [vmem:[#allocation5] sm:$0xff]
    %v2175 = vpack.c.bf16 %v2173, %v2173
    %v2176 = vpack.c.bf16 %v2174, %v2174
    %v2177 = vld [vmem:[%s5] sm:$0xff]
    %v2178 = vld [vmem:[%s5 + $0x8] sm:$0xff]
    %v2179 = vld [vmem:[%s5 + $0x10] sm:$0xff]
    %v2180 = vld [vmem:[%s5 + $0x18] sm:$0xff]
    %v2181 = vld [vmem:[%s5 + $0x20] sm:$0xff]
    %v2182 = vld [vmem:[%s5 + $0x28] sm:$0xff]
    %v2183 = vld [vmem:[%s5 + $0x30] sm:$0xff]
    %v2184 = vld [vmem:[%s5 + $0x38] sm:$0xff]
    %v2185 = vld [vmem:[%s5 + $0x40] sm:$0xff]
    %v2186 = vld [vmem:[%s5 + $0x48] sm:$0xff]
    %v2187 = vld [vmem:[%s5 + $0x50] sm:$0xff]
    %v2188 = vld [vmem:[%s5 + $0x58] sm:$0xff]
    %v2189 = vld [vmem:[%s5 + $0x60] sm:$0xff]
    %v2190 = vld [vmem:[%s5 + $0x68] sm:$0xff]
    %v2191 = vld [vmem:[%s5 + $0x70] sm:$0xff]
    %v2192 = vld [vmem:[%s5 + $0x78] sm:$0xff]
    %v2193 = vld [vmem:[#allocation11] sm:$0x1]
    %v2195 = vlaneseq
    %v2196 = vshrl.u32 %v2195, 7
    %v2197 = vsub.s32 0, %v2196
    %v2198 = vrot.slane %v2193, %v2197
    %v2216 = vunpack.c.l.b16 %v2177
    %v2217 = vunpack.c.h.b16 %v2177
    %v2218 = vunpack.c.l.b16 %v2178
    %v2219 = vunpack.c.h.b16 %v2178
    %v2220 = vunpack.c.l.b16 %v2179
    %v2221 = vunpack.c.h.b16 %v2179
    %v2222 = vunpack.c.l.b16 %v2180
    %v2223 = vunpack.c.h.b16 %v2180
    %v2224 = vunpack.c.l.b16 %v2181
    %v2225 = vunpack.c.h.b16 %v2181
    %v2226 = vunpack.c.l.b16 %v2182
    %v2227 = vunpack.c.h.b16 %v2182
    %v2228 = vunpack.c.l.b16 %v2183
    %v2229 = vunpack.c.h.b16 %v2183
    %v2230 = vunpack.c.l.b16 %v2184
    %v2231 = vunpack.c.h.b16 %v2184
    %v2232 = vunpack.c.l.b16 %v2185
    %v2233 = vunpack.c.h.b16 %v2185
    %v2234 = vunpack.c.l.b16 %v2186
    %v2235 = vunpack.c.h.b16 %v2186
    %v2236 = vunpack.c.l.b16 %v2187
    %v2237 = vunpack.c.h.b16 %v2187
    %v2238 = vunpack.c.l.b16 %v2188
    %v2239 = vunpack.c.h.b16 %v2188
    %v2240 = vunpack.c.l.b16 %v2189
    %v2241 = vunpack.c.h.b16 %v2189
    %v2242 = vunpack.c.l.b16 %v2190
    %v2243 = vunpack.c.h.b16 %v2190
    %v2244 = vunpack.c.l.b16 %v2191
    %v2245 = vunpack.c.h.b16 %v2191
    %v2246 = vunpack.c.l.b16 %v2192
    %v2247 = vunpack.c.h.b16 %v2192
    %v2248 = vpack.c.b16 %v2218, %v2216
    %v2249 = vpack.c.b16 %v2219, %v2217
    %v2250 = vpack.c.b16 %v2222, %v2220
    %v2251 = vpack.c.b16 %v2223, %v2221
    %v2252 = vpack.c.b16 %v2226, %v2224
    %v2253 = vpack.c.b16 %v2227, %v2225
    %v2254 = vpack.c.b16 %v2230, %v2228
    %v2255 = vpack.c.b16 %v2231, %v2229
    %v2256 = vpack.c.b16 %v2234, %v2232
    %v2257 = vpack.c.b16 %v2235, %v2233
    %v2258 = vpack.c.b16 %v2238, %v2236
    %v2259 = vpack.c.b16 %v2239, %v2237
    %v2260 = vpack.c.b16 %v2242, %v2240
    %v2261 = vpack.c.b16 %v2243, %v2241
    %v2262 = vpack.c.b16 %v2246, %v2244
    %v2263 = vpack.c.b16 %v2247, %v2245
    %2280 = vmatprep.subr.bf16.mxu0 %v2263
    %2281 = vmatpush1.bf16.xpose.msra.mxu0 %v2262
    %2282 = vmatprep.subr.bf16.mxu0 %v2261
    %2283 = vmatpush1.bf16.xpose.msra.mxu0 %v2260
    %2284 = vmatprep.subr.bf16.mxu0 %v2259
    %2285 = vmatpush1.bf16.xpose.msra.mxu0 %v2258
    %2286 = vmatprep.subr.bf16.mxu0 %v2257
    %2287 = vmatpush1.bf16.xpose.msra.mxu0 %v2256
    %2288 = vmatprep.subr.bf16.mxu0 %v2255
    %2289 = vmatpush1.bf16.xpose.msra.mxu0 %v2254
    %2290 = vmatprep.subr.bf16.mxu0 %v2253
    %2291 = vmatpush1.bf16.xpose.msra.mxu0 %v2252
    %2292 = vmatprep.subr.bf16.mxu0 %v2251
    %2293 = vmatpush1.bf16.xpose.msra.mxu0 %v2250
    %2294 = vmatprep.subr.bf16.mxu0 %v2249
    %2295 = vmatpush1.bf16.xpose.msra.mxu0 %v2248
    %2296 = vmatprep.subr.bf16.mxu0 0
    %2297 = vmatpush2.bf16.xpose.msra.mxu0 0
    %2298 = vmatprep.subr.bf16.mxu0 0
    %2299 = vmatpush2.bf16.xpose.msra.mxu0 0
    %2300 = vmatprep.subr.bf16.mxu0 0
    %2301 = vmatpush2.bf16.xpose.msra.mxu0 0
    %2302 = vmatprep.subr.bf16.mxu0 0
    %2303 = vmatpush2.bf16.xpose.msra.mxu0 0
    %2304 = vmatprep.subr.bf16.mxu0 0
    %2305 = vmatpush2.bf16.xpose.msra.mxu0 0
    %2306 = vmatprep.subr.bf16.mxu0 0
    %2307 = vmatpush2.bf16.xpose.msra.mxu0 0
    %2308 = vmatprep.subr.bf16.mxu0 0
    %2309 = vmatpush2.bf16.xpose.msra.mxu0 0
    %2310 = vmatprep.subr.bf16.mxu0 0
    %2311 = vmatpush2.bf16.xpose.msra.mxu0 0
    %2312 = vmatprep.mubr.bf16.mxu0 %v2176
    %2313 = vmatmul.mubr.bf16.gmra.mxu0 %v2175
    %v2314 = vpop.f32.mrf.mxu0
    %v2315 = vadd.f32 %v2198, %v2314
    %v2316 = vpop.f32.mrf.mxu0
    %v2317 = vpop.f32.mrf.mxu0
    %v2318 = vpop.f32.mrf.mxu0
    %2319 = vdwg.mxu0
    %2320 = vst [vmem:[%s7] sm:$0xff] %v2315
    // Predicated region
    $region53: #{device_forward.5} parent=1 // pred_check
      _
    $region54: #{device_forward.5} parent=1 // pred_check_branch
      %2322 = sbr.rel (0) target = $region56
    $region55: #{device_forward.5} parent=1 // pred_region
      _
    $region56: #{device_forward.5} parent=1 // pred_fallthru
      _
    // Predicated region
    $region57: #{device_forward.5} parent=1 // pred_check
      _
    $region58: #{device_forward.5} parent=1 // pred_check_branch
      %2324 = sbr.rel (0) target = $region60
    $region59: #{device_forward.5} parent=1 // pred_region
      _
    $region60: #{device_forward.5} parent=1 // pred_fallthru
      _
    %2325 = vsyncpa [#allocation7], 1
    %2326 = vsyncpa [#allocation9], 1
    %2327 = vsyncpa [#allocation12], 1

</llo_original>
